<compile_context>
chip_gen: v7x
topology: tpu7x:2x2x1
jax: 0.10.0
libtpu: 0.0.40
codegen_flags: <defaults>
</compile_context>

<pallas_src>
import functools

import jax
import jax.numpy as jnp
import numpy as np
from jax.experimental import pallas as pl
from jax.experimental.pallas import tpu as pltpu


def _vmem_limit_bytes():
    """Per-generation VMEM budget (leave headroom for compiler scratch)."""
    cap = 64 * 1024 * 1024
    try:
        info = pltpu.get_tpu_info()
        cap = int(getattr(info, "vmem_capacity_bytes", cap)) or cap
    except Exception:
        pass
    return int(min(cap - 8 * 1024 * 1024, 100 * 1024 * 1024))


def _choose_tq(n, heads, vmem_budget):
    """Largest query tile (multiple of 8, divides n) whose live f32 tiles fit."""
    if n % 8 != 0:
        return n                                   # single full-extent tile
    per_q_row = (heads + 3) * n * 4                # attn + mixed[g] + mean/var
    tq = min(n, 512, max(8, vmem_budget // (2 * max(per_q_row, 1))))
    tq = max(8, tq - (tq % 8))
    while n % tq:
        tq -= 8
    return tq


def _reattention_kernel(x_ref, wq_ref, wk_ref, wv_ref, reattn_w_ref, mean_c_ref,
                        ln_g_ref, ln_b_ref, wout_ref, bout_ref, o_ref,
                        k_scr, v_scr, oh_scr,
                        *, heads, dim_head, tq, ln_eps):
    """Grid = (batch ["parallel"], query-tile ["arbitrary"])."""
    qi = pl.program_id(1)
    n = x_ref.shape[1]

    # --- K/V prologue: project once per batch element (first q tile only) ---
    @pl.when(qi == 0)
    def _():
        x_full = x_ref[0]                                          # (n, dim) bf16
        for h in range(heads):
            k = jnp.dot(x_full, wk_ref[h], preferred_element_type=jnp.float32)
            v = jnp.dot(x_full, wv_ref[h], preferred_element_type=jnp.float32)
            k_scr[h] = k.astype(jnp.bfloat16)
            v_scr[h] = v.astype(jnp.bfloat16)

    # --- current query tile of x --------------------------------------------
    q_start = pl.multiple_of(qi * tq, tq)
    x_q = x_ref[0, pl.ds(q_start, tq), :]                          # (tq, dim) bf16

    # --- per-head softmax(q k^T) with h-outer incremental re-attention mix --
    # mixed[g] = sum_h W[h,g] * attn[h];  mean = sum_h c_h * attn[h]
    mixed = [None] * heads
    mean = None
    for h in range(heads):
        q = jnp.dot(x_q, wq_ref[h], preferred_element_type=jnp.float32)  # scale folded
        dots = jax.lax.dot_general(                                 # q @ k^T -> (tq, n)
            q.astype(jnp.bfloat16), k_scr[h],
            (((1,), (1,)), ((), ())), preferred_element_type=jnp.float32)
        dots = dots - jnp.max(dots, axis=-1, keepdims=True)
        p = jnp.exp(dots)
        attn = p * pl.reciprocal(jnp.sum(p, axis=-1, keepdims=True), approx=True)
        for g in range(heads):                                      # SMEM scalar * vreg tile
            term = attn * reattn_w_ref[h, g]
            mixed[g] = term if mixed[g] is None else mixed[g] + term
        mterm = attn * mean_c_ref[0, h]
        mean = mterm if mean is None else mean + mterm

    # --- LayerNorm over the head axis (biased variance, eps=1e-5) -----------
    var = None
    for g in range(heads):
        d = mixed[g] - mean
        var = d * d if var is None else var + d * d
    inv_std = jax.lax.rsqrt(var * (1.0 / heads) + ln_eps)

    # --- per-head (LN(mixed) @ V) into a lane-concatenated (tq, inner) slab --
    for g in range(heads):
        normed = (mixed[g] - mean) * inv_std * ln_g_ref[0, g] + ln_b_ref[0, g]
        og = jnp.dot(normed.astype(jnp.bfloat16), v_scr[g],
                     preferred_element_type=jnp.float32)            # (tq, dim_head)
        oh_scr[:, g * dim_head:(g + 1) * dim_head] = og.astype(jnp.bfloat16)

    # --- fused output projection: one K = inner matmul -----------------------
    out = jnp.dot(oh_scr[...], wout_ref[...], preferred_element_type=jnp.float32)
    # Dropout in to_out is identity at inference.
    o_ref[0] = (out + bout_ref[...]).astype(o_ref.dtype)


def reattention(x, params, *, heads, dim_head):
    b, n, dim = x.shape
    inner = heads * dim_head
    scale = dim_head ** (-0.5)

    vmem_limit = _vmem_limit_bytes()
    tq = _choose_tq(n, heads, vmem_limit // 2)

    # One-time wrapper-side weight relayout (weights only, no per-token work).
    w_qkv = params["w_qkv"]                                  # (dim, 3*inner)
    per_head = lambda w: w.reshape(dim, heads, dim_head).transpose(1, 0, 2)
    wq = (per_head(w_qkv[:, 0 * inner:1 * inner]) * scale).astype(jnp.bfloat16)
    wk = per_head(w_qkv[:, 1 * inner:2 * inner]).astype(jnp.bfloat16)
    wv = per_head(w_qkv[:, 2 * inner:3 * inner]).astype(jnp.bfloat16)
    wout = params["w_out"].astype(jnp.bfloat16)              # (inner, dim), fused K=inner
    reattn_w = params["reattn_w"].astype(jnp.float32)
    mean_c = reattn_w.mean(axis=1).reshape(1, heads)          # c_h = mean_g W[h,g]
    ln_g = params["ln_g"].astype(jnp.float32)
    ln_b = params["ln_b"].astype(jnp.float32)
    b_out = params["b_out"].astype(jnp.float32)
    x_bf = x.astype(jnp.bfloat16)                             # halve x DMA bytes

    kernel = functools.partial(_reattention_kernel, heads=heads,
                               dim_head=dim_head, tq=tq, ln_eps=1e-5)
    smem = pl.BlockSpec(memory_space=pltpu.MemorySpace.SMEM)

    def build(weight_mode):
        if weight_mode is None:
            wspec = lambda shape, imap: pl.BlockSpec(shape, imap)
        else:  # grid-constant weights: request single buffering
            wspec = lambda shape, imap: pl.BlockSpec(shape, imap,
                                                     pipeline_mode=weight_mode)
        return pl.pallas_call(
            kernel,
            out_shape=jax.ShapeDtypeStruct((b, n, dim), jnp.float32),
            grid_spec=pltpu.PrefetchScalarGridSpec(
                num_scalar_prefetch=0,
                grid=(b, n // tq),
                in_specs=[
                    pl.BlockSpec((1, n, dim), lambda bi, qi: (bi, 0, 0)),      # x (bf16)
                    wspec((heads, dim, dim_head), lambda bi, qi: (0, 0, 0)),   # Wq (scaled)
                    wspec((heads, dim, dim_head), lambda bi, qi: (0, 0, 0)),   # Wk
                    wspec((heads, dim, dim_head), lambda bi, qi: (0, 0, 0)),   # Wv
                    smem,                                                      # reattn_w
                    smem,                                                      # mean coeffs
                    smem,                                                      # LN gamma
                    smem,                                                      # LN beta
                    wspec((inner, dim), lambda bi, qi: (0, 0)),                # W_out
                    wspec((1, dim), lambda bi, qi: (0, 0)),                    # b_out
                ],
                out_specs=pl.BlockSpec((1, tq, dim), lambda bi, qi: (bi, qi, 0)),
                scratch_shapes=[
                    pltpu.VMEM((heads, n, dim_head), jnp.bfloat16),            # K cache
                    pltpu.VMEM((heads, n, dim_head), jnp.bfloat16),            # V cache
                    pltpu.VMEM((tq, inner), jnp.bfloat16),                     # head concat
                ],
            ),
            compiler_params=pltpu.CompilerParams(
                dimension_semantics=("parallel", "arbitrary"),
                vmem_limit_bytes=vmem_limit),
        )

    args = (x_bf, wq, wk, wv, reattn_w, mean_c, ln_g, ln_b, wout, b_out)
    try:
        return build(pl.Buffered(1))(*args)
    except Exception:
        # Fallback if this jax build rejects single-buffered pipeline_mode.
        return build(None)(*args)


def reattention_reference(x, params, *, heads, dim_head):
    """Pure-JAX (f32) reference mirroring the PyTorch forward."""
    b, n, dim = x.shape
    inner = heads * dim_head
    scale = dim_head ** (-0.5)

    qkv = jnp.einsum('bnd,de->bne', x, params["w_qkv"])
    q, k, v = jnp.split(qkv, 3, axis=-1)
    reshape = lambda t: t.reshape(b, n, heads, dim_head).transpose(0, 2, 1, 3)
    q, k, v = map(reshape, (q, k, v))

    dots = jnp.einsum('bhid,bhjd->bhij', q, k) * scale
    attn = jax.nn.softmax(dots, axis=-1)
    attn = jnp.einsum('bhij,hg->bgij', attn, params["reattn_w"])

    a = attn.transpose(0, 2, 3, 1)                       # (b, i, j, h)
    mean = jnp.mean(a, axis=-1, keepdims=True)
    var = jnp.mean((a - mean) ** 2, axis=-1, keepdims=True)
    a = (a - mean) / jnp.sqrt(var + 1e-5)
    a = a * params["ln_g"][0] + params["ln_b"][0]
    attn = a.transpose(0, 3, 1, 2)                       # (b, h, i, j)

    out = jnp.einsum('bhij,bhjd->bhid', attn, v)
    out = out.transpose(0, 2, 1, 3).reshape(b, n, inner)
    out = jnp.einsum('bne,ed->bnd', out, params["w_out"]) + params["b_out"][0]
    return out


if __name__ == "__main__":
    # Small, module-consistent shapes.
    B, N, DIM = 2, 8, 32
    HEADS, DIM_HEAD = 4, 8
    INNER = HEADS * DIM_HEAD

    key = jax.random.PRNGKey(0)
    k_x, k_qkv, k_re, k_g, k_b, k_wo, k_bo = jax.random.split(key, 7)

    x = jax.random.normal(k_x, (B, N, DIM), dtype=jnp.float32)
    params = {
        "w_qkv": jax.random.normal(k_qkv, (DIM, 3 * INNER), jnp.float32) * 0.1,
        "reattn_w": jax.random.normal(k_re, (HEADS, HEADS), jnp.float32),
        "ln_g": jax.random.normal(k_g, (1, HEADS), jnp.float32) * 0.1 + 1.0,
        "ln_b": jax.random.normal(k_b, (1, HEADS), jnp.float32) * 0.1,
        "w_out": jax.random.normal(k_wo, (INNER, DIM), jnp.float32) * 0.1,
        "b_out": jax.random.normal(k_bo, (1, DIM), jnp.float32) * 0.1,
    }

    out = reattention(x, params, heads=HEADS, dim_head=DIM_HEAD)
    out = jax.block_until_ready(out)

    ref = reattention_reference(x, params, heads=HEADS, dim_head=DIM_HEAD)
    # bf16 MXU operands + approximate softmax reciprocal => looser tolerance
    # than the pure-f32 reference.
    np.testing.assert_allclose(np.asarray(out), np.asarray(ref),
                               rtol=2e-2, atol=5e-2)

    print("KERNEL_OK")
</pallas_src>

<mosaic_0001>
module attributes {stable_mosaic.version = 11 : i64} {
  func.func @_reattention_kernel(%arg0: i32, %arg1: i32, %arg2: memref<1x8x32xbf16, #tpu.memory_space<vmem>>, %arg3: memref<4x32x8xbf16, #tpu.memory_space<vmem>>, %arg4: memref<4x32x8xbf16, #tpu.memory_space<vmem>>, %arg5: memref<4x32x8xbf16, #tpu.memory_space<vmem>>, %arg6: memref<4x4xf32, #tpu.memory_space<smem>>, %arg7: memref<1x4xf32, #tpu.memory_space<smem>>, %arg8: memref<1x4xf32, #tpu.memory_space<smem>>, %arg9: memref<1x4xf32, #tpu.memory_space<smem>>, %arg10: memref<32x32xbf16, #tpu.memory_space<vmem>>, %arg11: memref<1x32xf32, #tpu.memory_space<vmem>>, %arg12: memref<1x8x32xf32, #tpu.memory_space<vmem>>, %arg13: memref<4x8x8xbf16, #tpu.memory_space<vmem>>, %arg14: memref<4x8x8xbf16, #tpu.memory_space<vmem>>, %arg15: memref<8x32xbf16, #tpu.memory_space<vmem>>) attributes {dimension_semantics = [#tpu.dimension_semantics<parallel>, #tpu.dimension_semantics<arbitrary>], iteration_bounds = array<i64: 2, 1>, scalar_prefetch = 0 : i64, scratch_operands = 3 : i64, tpu.core_type = #tpu.core_type<tc>, window_params = [{transform_indices = @transform_0, window_bounds = array<i64: 1, 8, 32>}, {pipeline_mode = #tpu.pipeline_mode<synchronous>, transform_indices = @transform_1, window_bounds = array<i64: 4, 32, 8>}, {pipeline_mode = #tpu.pipeline_mode<synchronous>, transform_indices = @transform_2, window_bounds = array<i64: 4, 32, 8>}, {pipeline_mode = #tpu.pipeline_mode<synchronous>, transform_indices = @transform_3, window_bounds = array<i64: 4, 32, 8>}, {transform_indices = @transform_4, window_bounds = array<i64: 4, 4>}, {transform_indices = @transform_5, window_bounds = array<i64: 1, 4>}, {transform_indices = @transform_6, window_bounds = array<i64: 1, 4>}, {transform_indices = @transform_7, window_bounds = array<i64: 1, 4>}, {pipeline_mode = #tpu.pipeline_mode<synchronous>, transform_indices = @transform_8, window_bounds = array<i64: 32, 32>}, {pipeline_mode = #tpu.pipeline_mode<synchronous>, transform_indices = @transform_9, window_bounds = array<i64: 1, 32>}, {transform_indices = @transform_10, window_bounds = array<i64: 1, 8, 32>}]} {
    %c0_i32 = arith.constant 0 : i32
    %0 = arith.cmpi eq, %arg1, %c0_i32 : i32
    %1 = arith.extui %0 : i1 to i32
    %c0_i32_0 = arith.constant 0 : i32
    %2 = arith.cmpi ne, %1, %c0_i32_0 : i32
    scf.if %2 {
      %c0_127 = arith.constant 0 : index
      %c0_128 = arith.constant 0 : index
      %c0_129 = arith.constant 0 : index
      %232 = vector.load %arg2[%c0_127, %c0_128, %c0_129] : memref<1x8x32xbf16, #tpu.memory_space<vmem>>, vector<1x8x32xbf16>
      %233 = vector.shape_cast %232 : vector<1x8x32xbf16> to vector<8x32xbf16>
      %c0_130 = arith.constant 0 : index
      %c0_131 = arith.constant 0 : index
      %c0_132 = arith.constant 0 : index
      %234 = vector.load %arg4[%c0_130, %c0_131, %c0_132] : memref<4x32x8xbf16, #tpu.memory_space<vmem>>, vector<1x32x8xbf16>
      %235 = vector.shape_cast %234 : vector<1x32x8xbf16> to vector<32x8xbf16>
      %cst_133 = arith.constant dense<0.000000e+00> : vector<8x8xf32>
      %236 = tpu.matmul %233, %235, %cst_133 {dimension_numbers = #tpu.dot_dimension_numbers<[1], [0], [0], [1], [0, 0, 1, 1], [], []>} : vector<8x32xbf16>, vector<32x8xbf16>, vector<8x8xf32> -> vector<8x8xf32>
      %c0_134 = arith.constant 0 : index
      %c0_135 = arith.constant 0 : index
      %c0_136 = arith.constant 0 : index
      %237 = vector.load %arg5[%c0_134, %c0_135, %c0_136] : memref<4x32x8xbf16, #tpu.memory_space<vmem>>, vector<1x32x8xbf16>
      %238 = vector.shape_cast %237 : vector<1x32x8xbf16> to vector<32x8xbf16>
      %cst_137 = arith.constant dense<0.000000e+00> : vector<8x8xf32>
      %239 = tpu.matmul %233, %238, %cst_137 {dimension_numbers = #tpu.dot_dimension_numbers<[1], [0], [0], [1], [0, 0, 1, 1], [], []>} : vector<8x32xbf16>, vector<32x8xbf16>, vector<8x8xf32> -> vector<8x8xf32>
      %240 = arith.truncf %236 : vector<8x8xf32> to vector<8x8xbf16>
      %c0_138 = arith.constant 0 : index
      %c0_139 = arith.constant 0 : index
      %c0_140 = arith.constant 0 : index
      %241 = vector.load %arg13[%c0_138, %c0_139, %c0_140] : memref<4x8x8xbf16, #tpu.memory_space<vmem>>, vector<1x8x8xbf16>
      %242 = vector.shape_cast %241 : vector<1x8x8xbf16> to vector<8x8xbf16>
      %243 = vector.shape_cast %240 : vector<8x8xbf16> to vector<1x8x8xbf16>
      tpu.vector_store %arg13[%c0_138, %c0_139, %c0_140], %243 {strides = array<i32>} : memref<4x8x8xbf16, #tpu.memory_space<vmem>>, vector<1x8x8xbf16>,
      %244 = arith.truncf %239 : vector<8x8xf32> to vector<8x8xbf16>
      %c0_141 = arith.constant 0 : index
      %c0_142 = arith.constant 0 : index
      %c0_143 = arith.constant 0 : index
      %245 = vector.load %arg14[%c0_141, %c0_142, %c0_143] : memref<4x8x8xbf16, #tpu.memory_space<vmem>>, vector<1x8x8xbf16>
      %246 = vector.shape_cast %245 : vector<1x8x8xbf16> to vector<8x8xbf16>
      %247 = vector.shape_cast %244 : vector<8x8xbf16> to vector<1x8x8xbf16>
      tpu.vector_store %arg14[%c0_141, %c0_142, %c0_143], %247 {strides = array<i32>} : memref<4x8x8xbf16, #tpu.memory_space<vmem>>, vector<1x8x8xbf16>,
      %c1_144 = arith.constant 1 : index
      %c0_145 = arith.constant 0 : index
      %c0_146 = arith.constant 0 : index
      %248 = vector.load %arg4[%c1_144, %c0_145, %c0_146] : memref<4x32x8xbf16, #tpu.memory_space<vmem>>, vector<1x32x8xbf16>
      %249 = vector.shape_cast %248 : vector<1x32x8xbf16> to vector<32x8xbf16>
      %cst_147 = arith.constant dense<0.000000e+00> : vector<8x8xf32>
      %250 = tpu.matmul %233, %249, %cst_147 {dimension_numbers = #tpu.dot_dimension_numbers<[1], [0], [0], [1], [0, 0, 1, 1], [], []>} : vector<8x32xbf16>, vector<32x8xbf16>, vector<8x8xf32> -> vector<8x8xf32>
      %c1_148 = arith.constant 1 : index
      %c0_149 = arith.constant 0 : index
      %c0_150 = arith.constant 0 : index
      %251 = vector.load %arg5[%c1_148, %c0_149, %c0_150] : memref<4x32x8xbf16, #tpu.memory_space<vmem>>, vector<1x32x8xbf16>
      %252 = vector.shape_cast %251 : vector<1x32x8xbf16> to vector<32x8xbf16>
      %cst_151 = arith.constant dense<0.000000e+00> : vector<8x8xf32>
      %253 = tpu.matmul %233, %252, %cst_151 {dimension_numbers = #tpu.dot_dimension_numbers<[1], [0], [0], [1], [0, 0, 1, 1], [], []>} : vector<8x32xbf16>, vector<32x8xbf16>, vector<8x8xf32> -> vector<8x8xf32>
      %254 = arith.truncf %250 : vector<8x8xf32> to vector<8x8xbf16>
      %c1_152 = arith.constant 1 : index
      %c0_153 = arith.constant 0 : index
      %c0_154 = arith.constant 0 : index
      %255 = vector.load %arg13[%c1_152, %c0_153, %c0_154] : memref<4x8x8xbf16, #tpu.memory_space<vmem>>, vector<1x8x8xbf16>
      %256 = vector.shape_cast %255 : vector<1x8x8xbf16> to vector<8x8xbf16>
      %257 = vector.shape_cast %254 : vector<8x8xbf16> to vector<1x8x8xbf16>
      tpu.vector_store %arg13[%c1_152, %c0_153, %c0_154], %257 {strides = array<i32>} : memref<4x8x8xbf16, #tpu.memory_space<vmem>>, vector<1x8x8xbf16>,
      %258 = arith.truncf %253 : vector<8x8xf32> to vector<8x8xbf16>
      %c1_155 = arith.constant 1 : index
      %c0_156 = arith.constant 0 : index
      %c0_157 = arith.constant 0 : index
      %259 = vector.load %arg14[%c1_155, %c0_156, %c0_157] : memref<4x8x8xbf16, #tpu.memory_space<vmem>>, vector<1x8x8xbf16>
      %260 = vector.shape_cast %259 : vector<1x8x8xbf16> to vector<8x8xbf16>
      %261 = vector.shape_cast %258 : vector<8x8xbf16> to vector<1x8x8xbf16>
      tpu.vector_store %arg14[%c1_155, %c0_156, %c0_157], %261 {strides = array<i32>} : memref<4x8x8xbf16, #tpu.memory_space<vmem>>, vector<1x8x8xbf16>,
      %c2_158 = arith.constant 2 : index
      %c0_159 = arith.constant 0 : index
      %c0_160 = arith.constant 0 : index
      %262 = vector.load %arg4[%c2_158, %c0_159, %c0_160] : memref<4x32x8xbf16, #tpu.memory_space<vmem>>, vector<1x32x8xbf16>
      %263 = vector.shape_cast %262 : vector<1x32x8xbf16> to vector<32x8xbf16>
      %cst_161 = arith.constant dense<0.000000e+00> : vector<8x8xf32>
      %264 = tpu.matmul %233, %263, %cst_161 {dimension_numbers = #tpu.dot_dimension_numbers<[1], [0], [0], [1], [0, 0, 1, 1], [], []>} : vector<8x32xbf16>, vector<32x8xbf16>, vector<8x8xf32> -> vector<8x8xf32>
      %c2_162 = arith.constant 2 : index
      %c0_163 = arith.constant 0 : index
      %c0_164 = arith.constant 0 : index
      %265 = vector.load %arg5[%c2_162, %c0_163, %c0_164] : memref<4x32x8xbf16, #tpu.memory_space<vmem>>, vector<1x32x8xbf16>
      %266 = vector.shape_cast %265 : vector<1x32x8xbf16> to vector<32x8xbf16>
      %cst_165 = arith.constant dense<0.000000e+00> : vector<8x8xf32>
      %267 = tpu.matmul %233, %266, %cst_165 {dimension_numbers = #tpu.dot_dimension_numbers<[1], [0], [0], [1], [0, 0, 1, 1], [], []>} : vector<8x32xbf16>, vector<32x8xbf16>, vector<8x8xf32> -> vector<8x8xf32>
      %268 = arith.truncf %264 : vector<8x8xf32> to vector<8x8xbf16>
      %c2_166 = arith.constant 2 : index
      %c0_167 = arith.constant 0 : index
      %c0_168 = arith.constant 0 : index
      %269 = vector.load %arg13[%c2_166, %c0_167, %c0_168] : memref<4x8x8xbf16, #tpu.memory_space<vmem>>, vector<1x8x8xbf16>
      %270 = vector.shape_cast %269 : vector<1x8x8xbf16> to vector<8x8xbf16>
      %271 = vector.shape_cast %268 : vector<8x8xbf16> to vector<1x8x8xbf16>
      tpu.vector_store %arg13[%c2_166, %c0_167, %c0_168], %271 {strides = array<i32>} : memref<4x8x8xbf16, #tpu.memory_space<vmem>>, vector<1x8x8xbf16>,
      %272 = arith.truncf %267 : vector<8x8xf32> to vector<8x8xbf16>
      %c2_169 = arith.constant 2 : index
      %c0_170 = arith.constant 0 : index
      %c0_171 = arith.constant 0 : index
      %273 = vector.load %arg14[%c2_169, %c0_170, %c0_171] : memref<4x8x8xbf16, #tpu.memory_space<vmem>>, vector<1x8x8xbf16>
      %274 = vector.shape_cast %273 : vector<1x8x8xbf16> to vector<8x8xbf16>
      %275 = vector.shape_cast %272 : vector<8x8xbf16> to vector<1x8x8xbf16>
      tpu.vector_store %arg14[%c2_169, %c0_170, %c0_171], %275 {strides = array<i32>} : memref<4x8x8xbf16, #tpu.memory_space<vmem>>, vector<1x8x8xbf16>,
      %c3_172 = arith.constant 3 : index
      %c0_173 = arith.constant 0 : index
      %c0_174 = arith.constant 0 : index
      %276 = vector.load %arg4[%c3_172, %c0_173, %c0_174] : memref<4x32x8xbf16, #tpu.memory_space<vmem>>, vector<1x32x8xbf16>
      %277 = vector.shape_cast %276 : vector<1x32x8xbf16> to vector<32x8xbf16>
      %cst_175 = arith.constant dense<0.000000e+00> : vector<8x8xf32>
      %278 = tpu.matmul %233, %277, %cst_175 {dimension_numbers = #tpu.dot_dimension_numbers<[1], [0], [0], [1], [0, 0, 1, 1], [], []>} : vector<8x32xbf16>, vector<32x8xbf16>, vector<8x8xf32> -> vector<8x8xf32>
      %c3_176 = arith.constant 3 : index
      %c0_177 = arith.constant 0 : index
      %c0_178 = arith.constant 0 : index
      %279 = vector.load %arg5[%c3_176, %c0_177, %c0_178] : memref<4x32x8xbf16, #tpu.memory_space<vmem>>, vector<1x32x8xbf16>
      %280 = vector.shape_cast %279 : vector<1x32x8xbf16> to vector<32x8xbf16>
      %cst_179 = arith.constant dense<0.000000e+00> : vector<8x8xf32>
      %281 = tpu.matmul %233, %280, %cst_179 {dimension_numbers = #tpu.dot_dimension_numbers<[1], [0], [0], [1], [0, 0, 1, 1], [], []>} : vector<8x32xbf16>, vector<32x8xbf16>, vector<8x8xf32> -> vector<8x8xf32>
      %282 = arith.truncf %278 : vector<8x8xf32> to vector<8x8xbf16>
      %c3_180 = arith.constant 3 : index
      %c0_181 = arith.constant 0 : index
      %c0_182 = arith.constant 0 : index
      %283 = vector.load %arg13[%c3_180, %c0_181, %c0_182] : memref<4x8x8xbf16, #tpu.memory_space<vmem>>, vector<1x8x8xbf16>
      %284 = vector.shape_cast %283 : vector<1x8x8xbf16> to vector<8x8xbf16>
      %285 = vector.shape_cast %282 : vector<8x8xbf16> to vector<1x8x8xbf16>
      tpu.vector_store %arg13[%c3_180, %c0_181, %c0_182], %285 {strides = array<i32>} : memref<4x8x8xbf16, #tpu.memory_space<vmem>>, vector<1x8x8xbf16>,
      %286 = arith.truncf %281 : vector<8x8xf32> to vector<8x8xbf16>
      %c3_183 = arith.constant 3 : index
      %c0_184 = arith.constant 0 : index
      %c0_185 = arith.constant 0 : index
      %287 = vector.load %arg14[%c3_183, %c0_184, %c0_185] : memref<4x8x8xbf16, #tpu.memory_space<vmem>>, vector<1x8x8xbf16>
      %288 = vector.shape_cast %287 : vector<1x8x8xbf16> to vector<8x8xbf16>
      %289 = vector.shape_cast %286 : vector<8x8xbf16> to vector<1x8x8xbf16>
      tpu.vector_store %arg14[%c3_183, %c0_184, %c0_185], %289 {strides = array<i32>} : memref<4x8x8xbf16, #tpu.memory_space<vmem>>, vector<1x8x8xbf16>,
    } else {
    }
    %c8_i32 = arith.constant 8 : i32
    %3 = arith.muli %arg1, %c8_i32 : i32
    %4 = tpu.assume_multiple %3, 8 : i32
    %c0 = arith.constant 0 : index
    %5 = arith.index_cast %4 : i32 to index
    %c0_1 = arith.constant 0 : index
    %6 = vector.load %arg2[%c0, %5, %c0_1] : memref<1x8x32xbf16, #tpu.memory_space<vmem>>, vector<1x8x32xbf16>
    %7 = vector.shape_cast %6 : vector<1x8x32xbf16> to vector<8x32xbf16>
    %c0_2 = arith.constant 0 : index
    %c0_3 = arith.constant 0 : index
    %c0_4 = arith.constant 0 : index
    %8 = vector.load %arg3[%c0_2, %c0_3, %c0_4] : memref<4x32x8xbf16, #tpu.memory_space<vmem>>, vector<1x32x8xbf16>
    %9 = vector.shape_cast %8 : vector<1x32x8xbf16> to vector<32x8xbf16>
    %cst = arith.constant dense<0.000000e+00> : vector<8x8xf32>
    %10 = tpu.matmul %7, %9, %cst {dimension_numbers = #tpu.dot_dimension_numbers<[1], [0], [0], [1], [0, 0, 1, 1], [], []>} : vector<8x32xbf16>, vector<32x8xbf16>, vector<8x8xf32> -> vector<8x8xf32>
    %11 = arith.truncf %10 : vector<8x8xf32> to vector<8x8xbf16>
    %c0_5 = arith.constant 0 : index
    %c0_6 = arith.constant 0 : index
    %c0_7 = arith.constant 0 : index
    %12 = vector.load %arg13[%c0_5, %c0_6, %c0_7] : memref<4x8x8xbf16, #tpu.memory_space<vmem>>, vector<1x8x8xbf16>
    %13 = vector.shape_cast %12 : vector<1x8x8xbf16> to vector<8x8xbf16>
    %cst_8 = arith.constant dense<0.000000e+00> : vector<8x8xf32>
    %14 = tpu.matmul %11, %13, %cst_8 {dimension_numbers = #tpu.dot_dimension_numbers<[1], [1], [0], [0], [0, 0, 1, 0], [], []>} : vector<8x8xbf16>, vector<8x8xbf16>, vector<8x8xf32> -> vector<8x8xf32>
    %cst_9 = arith.constant dense<0xFF800000> : vector<8xf32>
    %15 = vector.multi_reduction <maximumf>, %14, %cst_9 [1] : vector<8x8xf32> to vector<8xf32>
    %16 = vector.shape_cast %15 : vector<8xf32> to vector<8x1xf32>
    %17 = vector.broadcast %16 : vector<8x1xf32> to vector<8x8xf32>
    %18 = arith.subf %14, %17 : vector<8x8xf32>
    %19 = math.exp %18 : vector<8x8xf32>
    %cst_10 = arith.constant dense<0.000000e+00> : vector<8xf32>
    %20 = vector.multi_reduction <add>, %19, %cst_10 [1] : vector<8x8xf32> to vector<8xf32>
    %21 = vector.shape_cast %20 : vector<8xf32> to vector<8x1xf32>
    %22 = tpu.reciprocal %21 {approx = true} : vector<8x1xf32> -> vector<8x1xf32>
    %23 = vector.broadcast %22 : vector<8x1xf32> to vector<8x8xf32>
    %24 = arith.mulf %19, %23 : vector<8x8xf32>
    %c0_11 = arith.constant 0 : index
    %c0_12 = arith.constant 0 : index
    %25 = memref.load %arg6[%c0_11, %c0_12] : memref<4x4xf32, #tpu.memory_space<smem>>
    %26 = vector.broadcast %25 : f32 to vector<8x8xf32>
    %27 = arith.mulf %24, %26 : vector<8x8xf32>
    %c0_13 = arith.constant 0 : index
    %c1 = arith.constant 1 : index
    %28 = memref.load %arg6[%c0_13, %c1] : memref<4x4xf32, #tpu.memory_space<smem>>
    %29 = vector.broadcast %28 : f32 to vector<8x8xf32>
    %30 = arith.mulf %24, %29 : vector<8x8xf32>
    %c0_14 = arith.constant 0 : index
    %c2 = arith.constant 2 : index
    %31 = memref.load %arg6[%c0_14, %c2] : memref<4x4xf32, #tpu.memory_space<smem>>
    %32 = vector.broadcast %31 : f32 to vector<8x8xf32>
    %33 = arith.mulf %24, %32 : vector<8x8xf32>
    %c0_15 = arith.constant 0 : index
    %c3 = arith.constant 3 : index
    %34 = memref.load %arg6[%c0_15, %c3] : memref<4x4xf32, #tpu.memory_space<smem>>
    %35 = vector.broadcast %34 : f32 to vector<8x8xf32>
    %36 = arith.mulf %24, %35 : vector<8x8xf32>
    %c0_16 = arith.constant 0 : index
    %c0_17 = arith.constant 0 : index
    %37 = memref.load %arg7[%c0_16, %c0_17] : memref<1x4xf32, #tpu.memory_space<smem>>
    %38 = vector.broadcast %37 : f32 to vector<8x8xf32>
    %39 = arith.mulf %24, %38 : vector<8x8xf32>
    %c1_18 = arith.constant 1 : index
    %c0_19 = arith.constant 0 : index
    %c0_20 = arith.constant 0 : index
    %40 = vector.load %arg3[%c1_18, %c0_19, %c0_20] : memref<4x32x8xbf16, #tpu.memory_space<vmem>>, vector<1x32x8xbf16>
    %41 = vector.shape_cast %40 : vector<1x32x8xbf16> to vector<32x8xbf16>
    %cst_21 = arith.constant dense<0.000000e+00> : vector<8x8xf32>
    %42 = tpu.matmul %7, %41, %cst_21 {dimension_numbers = #tpu.dot_dimension_numbers<[1], [0], [0], [1], [0, 0, 1, 1], [], []>} : vector<8x32xbf16>, vector<32x8xbf16>, vector<8x8xf32> -> vector<8x8xf32>
    %43 = arith.truncf %42 : vector<8x8xf32> to vector<8x8xbf16>
    %c1_22 = arith.constant 1 : index
    %c0_23 = arith.constant 0 : index
    %c0_24 = arith.constant 0 : index
    %44 = vector.load %arg13[%c1_22, %c0_23, %c0_24] : memref<4x8x8xbf16, #tpu.memory_space<vmem>>, vector<1x8x8xbf16>
    %45 = vector.shape_cast %44 : vector<1x8x8xbf16> to vector<8x8xbf16>
    %cst_25 = arith.constant dense<0.000000e+00> : vector<8x8xf32>
    %46 = tpu.matmul %43, %45, %cst_25 {dimension_numbers = #tpu.dot_dimension_numbers<[1], [1], [0], [0], [0, 0, 1, 0], [], []>} : vector<8x8xbf16>, vector<8x8xbf16>, vector<8x8xf32> -> vector<8x8xf32>
    %cst_26 = arith.constant dense<0xFF800000> : vector<8xf32>
    %47 = vector.multi_reduction <maximumf>, %46, %cst_26 [1] : vector<8x8xf32> to vector<8xf32>
    %48 = vector.shape_cast %47 : vector<8xf32> to vector<8x1xf32>
    %49 = vector.broadcast %48 : vector<8x1xf32> to vector<8x8xf32>
    %50 = arith.subf %46, %49 : vector<8x8xf32>
    %51 = math.exp %50 : vector<8x8xf32>
    %cst_27 = arith.constant dense<0.000000e+00> : vector<8xf32>
    %52 = vector.multi_reduction <add>, %51, %cst_27 [1] : vector<8x8xf32> to vector<8xf32>
    %53 = vector.shape_cast %52 : vector<8xf32> to vector<8x1xf32>
    %54 = tpu.reciprocal %53 {approx = true} : vector<8x1xf32> -> vector<8x1xf32>
    %55 = vector.broadcast %54 : vector<8x1xf32> to vector<8x8xf32>
    %56 = arith.mulf %51, %55 : vector<8x8xf32>
    %c1_28 = arith.constant 1 : index
    %c0_29 = arith.constant 0 : index
    %57 = memref.load %arg6[%c1_28, %c0_29] : memref<4x4xf32, #tpu.memory_space<smem>>
    %58 = vector.broadcast %57 : f32 to vector<8x8xf32>
    %59 = arith.mulf %56, %58 : vector<8x8xf32>
    %60 = arith.addf %27, %59 : vector<8x8xf32>
    %c1_30 = arith.constant 1 : index
    %c1_31 = arith.constant 1 : index
    %61 = memref.load %arg6[%c1_30, %c1_31] : memref<4x4xf32, #tpu.memory_space<smem>>
    %62 = vector.broadcast %61 : f32 to vector<8x8xf32>
    %63 = arith.mulf %56, %62 : vector<8x8xf32>
    %64 = arith.addf %30, %63 : vector<8x8xf32>
    %c1_32 = arith.constant 1 : index
    %c2_33 = arith.constant 2 : index
    %65 = memref.load %arg6[%c1_32, %c2_33] : memref<4x4xf32, #tpu.memory_space<smem>>
    %66 = vector.broadcast %65 : f32 to vector<8x8xf32>
    %67 = arith.mulf %56, %66 : vector<8x8xf32>
    %68 = arith.addf %33, %67 : vector<8x8xf32>
    %c1_34 = arith.constant 1 : index
    %c3_35 = arith.constant 3 : index
    %69 = memref.load %arg6[%c1_34, %c3_35] : memref<4x4xf32, #tpu.memory_space<smem>>
    %70 = vector.broadcast %69 : f32 to vector<8x8xf32>
    %71 = arith.mulf %56, %70 : vector<8x8xf32>
    %72 = arith.addf %36, %71 : vector<8x8xf32>
    %c0_36 = arith.constant 0 : index
    %c1_37 = arith.constant 1 : index
    %73 = memref.load %arg7[%c0_36, %c1_37] : memref<1x4xf32, #tpu.memory_space<smem>>
    %74 = vector.broadcast %73 : f32 to vector<8x8xf32>
    %75 = arith.mulf %56, %74 : vector<8x8xf32>
    %76 = arith.addf %39, %75 : vector<8x8xf32>
    %c2_38 = arith.constant 2 : index
    %c0_39 = arith.constant 0 : index
    %c0_40 = arith.constant 0 : index
    %77 = vector.load %arg3[%c2_38, %c0_39, %c0_40] : memref<4x32x8xbf16, #tpu.memory_space<vmem>>, vector<1x32x8xbf16>
    %78 = vector.shape_cast %77 : vector<1x32x8xbf16> to vector<32x8xbf16>
    %cst_41 = arith.constant dense<0.000000e+00> : vector<8x8xf32>
    %79 = tpu.matmul %7, %78, %cst_41 {dimension_numbers = #tpu.dot_dimension_numbers<[1], [0], [0], [1], [0, 0, 1, 1], [], []>} : vector<8x32xbf16>, vector<32x8xbf16>, vector<8x8xf32> -> vector<8x8xf32>
    %80 = arith.truncf %79 : vector<8x8xf32> to vector<8x8xbf16>
    %c2_42 = arith.constant 2 : index
    %c0_43 = arith.constant 0 : index
    %c0_44 = arith.constant 0 : index
    %81 = vector.load %arg13[%c2_42, %c0_43, %c0_44] : memref<4x8x8xbf16, #tpu.memory_space<vmem>>, vector<1x8x8xbf16>
    %82 = vector.shape_cast %81 : vector<1x8x8xbf16> to vector<8x8xbf16>
    %cst_45 = arith.constant dense<0.000000e+00> : vector<8x8xf32>
    %83 = tpu.matmul %80, %82, %cst_45 {dimension_numbers = #tpu.dot_dimension_numbers<[1], [1], [0], [0], [0, 0, 1, 0], [], []>} : vector<8x8xbf16>, vector<8x8xbf16>, vector<8x8xf32> -> vector<8x8xf32>
    %cst_46 = arith.constant dense<0xFF800000> : vector<8xf32>
    %84 = vector.multi_reduction <maximumf>, %83, %cst_46 [1] : vector<8x8xf32> to vector<8xf32>
    %85 = vector.shape_cast %84 : vector<8xf32> to vector<8x1xf32>
    %86 = vector.broadcast %85 : vector<8x1xf32> to vector<8x8xf32>
    %87 = arith.subf %83, %86 : vector<8x8xf32>
    %88 = math.exp %87 : vector<8x8xf32>
    %cst_47 = arith.constant dense<0.000000e+00> : vector<8xf32>
    %89 = vector.multi_reduction <add>, %88, %cst_47 [1] : vector<8x8xf32> to vector<8xf32>
    %90 = vector.shape_cast %89 : vector<8xf32> to vector<8x1xf32>
    %91 = tpu.reciprocal %90 {approx = true} : vector<8x1xf32> -> vector<8x1xf32>
    %92 = vector.broadcast %91 : vector<8x1xf32> to vector<8x8xf32>
    %93 = arith.mulf %88, %92 : vector<8x8xf32>
    %c2_48 = arith.constant 2 : index
    %c0_49 = arith.constant 0 : index
    %94 = memref.load %arg6[%c2_48, %c0_49] : memref<4x4xf32, #tpu.memory_space<smem>>
    %95 = vector.broadcast %94 : f32 to vector<8x8xf32>
    %96 = arith.mulf %93, %95 : vector<8x8xf32>
    %97 = arith.addf %60, %96 : vector<8x8xf32>
    %c2_50 = arith.constant 2 : index
    %c1_51 = arith.constant 1 : index
    %98 = memref.load %arg6[%c2_50, %c1_51] : memref<4x4xf32, #tpu.memory_space<smem>>
    %99 = vector.broadcast %98 : f32 to vector<8x8xf32>
    %100 = arith.mulf %93, %99 : vector<8x8xf32>
    %101 = arith.addf %64, %100 : vector<8x8xf32>
    %c2_52 = arith.constant 2 : index
    %c2_53 = arith.constant 2 : index
    %102 = memref.load %arg6[%c2_52, %c2_53] : memref<4x4xf32, #tpu.memory_space<smem>>
    %103 = vector.broadcast %102 : f32 to vector<8x8xf32>
    %104 = arith.mulf %93, %103 : vector<8x8xf32>
    %105 = arith.addf %68, %104 : vector<8x8xf32>
    %c2_54 = arith.constant 2 : index
    %c3_55 = arith.constant 3 : index
    %106 = memref.load %arg6[%c2_54, %c3_55] : memref<4x4xf32, #tpu.memory_space<smem>>
    %107 = vector.broadcast %106 : f32 to vector<8x8xf32>
    %108 = arith.mulf %93, %107 : vector<8x8xf32>
    %109 = arith.addf %72, %108 : vector<8x8xf32>
    %c0_56 = arith.constant 0 : index
    %c2_57 = arith.constant 2 : index
    %110 = memref.load %arg7[%c0_56, %c2_57] : memref<1x4xf32, #tpu.memory_space<smem>>
    %111 = vector.broadcast %110 : f32 to vector<8x8xf32>
    %112 = arith.mulf %93, %111 : vector<8x8xf32>
    %113 = arith.addf %76, %112 : vector<8x8xf32>
    %c3_58 = arith.constant 3 : index
    %c0_59 = arith.constant 0 : index
    %c0_60 = arith.constant 0 : index
    %114 = vector.load %arg3[%c3_58, %c0_59, %c0_60] : memref<4x32x8xbf16, #tpu.memory_space<vmem>>, vector<1x32x8xbf16>
    %115 = vector.shape_cast %114 : vector<1x32x8xbf16> to vector<32x8xbf16>
    %cst_61 = arith.constant dense<0.000000e+00> : vector<8x8xf32>
    %116 = tpu.matmul %7, %115, %cst_61 {dimension_numbers = #tpu.dot_dimension_numbers<[1], [0], [0], [1], [0, 0, 1, 1], [], []>} : vector<8x32xbf16>, vector<32x8xbf16>, vector<8x8xf32> -> vector<8x8xf32>
    %117 = arith.truncf %116 : vector<8x8xf32> to vector<8x8xbf16>
    %c3_62 = arith.constant 3 : index
    %c0_63 = arith.constant 0 : index
    %c0_64 = arith.constant 0 : index
    %118 = vector.load %arg13[%c3_62, %c0_63, %c0_64] : memref<4x8x8xbf16, #tpu.memory_space<vmem>>, vector<1x8x8xbf16>
    %119 = vector.shape_cast %118 : vector<1x8x8xbf16> to vector<8x8xbf16>
    %cst_65 = arith.constant dense<0.000000e+00> : vector<8x8xf32>
    %120 = tpu.matmul %117, %119, %cst_65 {dimension_numbers = #tpu.dot_dimension_numbers<[1], [1], [0], [0], [0, 0, 1, 0], [], []>} : vector<8x8xbf16>, vector<8x8xbf16>, vector<8x8xf32> -> vector<8x8xf32>
    %cst_66 = arith.constant dense<0xFF800000> : vector<8xf32>
    %121 = vector.multi_reduction <maximumf>, %120, %cst_66 [1] : vector<8x8xf32> to vector<8xf32>
    %122 = vector.shape_cast %121 : vector<8xf32> to vector<8x1xf32>
    %123 = vector.broadcast %122 : vector<8x1xf32> to vector<8x8xf32>
    %124 = arith.subf %120, %123 : vector<8x8xf32>
    %125 = math.exp %124 : vector<8x8xf32>
    %cst_67 = arith.constant dense<0.000000e+00> : vector<8xf32>
    %126 = vector.multi_reduction <add>, %125, %cst_67 [1] : vector<8x8xf32> to vector<8xf32>
    %127 = vector.shape_cast %126 : vector<8xf32> to vector<8x1xf32>
    %128 = tpu.reciprocal %127 {approx = true} : vector<8x1xf32> -> vector<8x1xf32>
    %129 = vector.broadcast %128 : vector<8x1xf32> to vector<8x8xf32>
    %130 = arith.mulf %125, %129 : vector<8x8xf32>
    %c3_68 = arith.constant 3 : index
    %c0_69 = arith.constant 0 : index
    %131 = memref.load %arg6[%c3_68, %c0_69] : memref<4x4xf32, #tpu.memory_space<smem>>
    %132 = vector.broadcast %131 : f32 to vector<8x8xf32>
    %133 = arith.mulf %130, %132 : vector<8x8xf32>
    %134 = arith.addf %97, %133 : vector<8x8xf32>
    %c3_70 = arith.constant 3 : index
    %c1_71 = arith.constant 1 : index
    %135 = memref.load %arg6[%c3_70, %c1_71] : memref<4x4xf32, #tpu.memory_space<smem>>
    %136 = vector.broadcast %135 : f32 to vector<8x8xf32>
    %137 = arith.mulf %130, %136 : vector<8x8xf32>
    %138 = arith.addf %101, %137 : vector<8x8xf32>
    %c3_72 = arith.constant 3 : index
    %c2_73 = arith.constant 2 : index
    %139 = memref.load %arg6[%c3_72, %c2_73] : memref<4x4xf32, #tpu.memory_space<smem>>
    %140 = vector.broadcast %139 : f32 to vector<8x8xf32>
    %141 = arith.mulf %130, %140 : vector<8x8xf32>
    %142 = arith.addf %105, %141 : vector<8x8xf32>
    %c3_74 = arith.constant 3 : index
    %c3_75 = arith.constant 3 : index
    %143 = memref.load %arg6[%c3_74, %c3_75] : memref<4x4xf32, #tpu.memory_space<smem>>
    %144 = vector.broadcast %143 : f32 to vector<8x8xf32>
    %145 = arith.mulf %130, %144 : vector<8x8xf32>
    %146 = arith.addf %109, %145 : vector<8x8xf32>
    %c0_76 = arith.constant 0 : index
    %c3_77 = arith.constant 3 : index
    %147 = memref.load %arg7[%c0_76, %c3_77] : memref<1x4xf32, #tpu.memory_space<smem>>
    %148 = vector.broadcast %147 : f32 to vector<8x8xf32>
    %149 = arith.mulf %130, %148 : vector<8x8xf32>
    %150 = arith.addf %113, %149 : vector<8x8xf32>
    %151 = arith.subf %134, %150 : vector<8x8xf32>
    %152 = arith.mulf %151, %151 : vector<8x8xf32>
    %153 = arith.subf %138, %150 : vector<8x8xf32>
    %154 = arith.mulf %153, %153 : vector<8x8xf32>
    %155 = arith.addf %152, %154 : vector<8x8xf32>
    %156 = arith.subf %142, %150 : vector<8x8xf32>
    %157 = arith.mulf %156, %156 : vector<8x8xf32>
    %158 = arith.addf %155, %157 : vector<8x8xf32>
    %159 = arith.subf %146, %150 : vector<8x8xf32>
    %160 = arith.mulf %159, %159 : vector<8x8xf32>
    %161 = arith.addf %158, %160 : vector<8x8xf32>
    %cst_78 = arith.constant 2.500000e-01 : f32
    %162 = vector.broadcast %cst_78 : f32 to vector<8x8xf32>
    %163 = arith.mulf %161, %162 : vector<8x8xf32>
    %cst_79 = arith.constant 9.99999974E-6 : f32
    %164 = vector.broadcast %cst_79 : f32 to vector<8x8xf32>
    %165 = arith.addf %163, %164 : vector<8x8xf32>
    %166 = math.rsqrt %165 : vector<8x8xf32>
    %167 = arith.subf %134, %150 : vector<8x8xf32>
    %168 = arith.mulf %167, %166 : vector<8x8xf32>
    %c0_80 = arith.constant 0 : index
    %c0_81 = arith.constant 0 : index
    %169 = memref.load %arg8[%c0_80, %c0_81] : memref<1x4xf32, #tpu.memory_space<smem>>
    %170 = vector.broadcast %169 : f32 to vector<8x8xf32>
    %171 = arith.mulf %168, %170 : vector<8x8xf32>
    %c0_82 = arith.constant 0 : index
    %c0_83 = arith.constant 0 : index
    %172 = memref.load %arg9[%c0_82, %c0_83] : memref<1x4xf32, #tpu.memory_space<smem>>
    %173 = vector.broadcast %172 : f32 to vector<8x8xf32>
    %174 = arith.addf %171, %173 : vector<8x8xf32>
    %175 = arith.truncf %174 : vector<8x8xf32> to vector<8x8xbf16>
    %c0_84 = arith.constant 0 : index
    %c0_85 = arith.constant 0 : index
    %c0_86 = arith.constant 0 : index
    %176 = vector.load %arg14[%c0_84, %c0_85, %c0_86] : memref<4x8x8xbf16, #tpu.memory_space<vmem>>, vector<1x8x8xbf16>
    %177 = vector.shape_cast %176 : vector<1x8x8xbf16> to vector<8x8xbf16>
    %cst_87 = arith.constant dense<0.000000e+00> : vector<8x8xf32>
    %178 = tpu.matmul %175, %177, %cst_87 {dimension_numbers = #tpu.dot_dimension_numbers<[1], [0], [0], [1], [0, 0, 1, 1], [], []>} : vector<8x8xbf16>, vector<8x8xbf16>, vector<8x8xf32> -> vector<8x8xf32>
    %179 = arith.truncf %178 : vector<8x8xf32> to vector<8x8xbf16>
    %c0_88 = arith.constant 0 : index
    %c0_89 = arith.constant 0 : index
    %180 = vector.load %arg15[%c0_88, %c0_89] : memref<8x32xbf16, #tpu.memory_space<vmem>>, vector<8x8xbf16>
    tpu.vector_store %arg15[%c0_88, %c0_89], %179 {strides = array<i32>} : memref<8x32xbf16, #tpu.memory_space<vmem>>, vector<8x8xbf16>,
    %181 = arith.subf %138, %150 : vector<8x8xf32>
    %182 = arith.mulf %181, %166 : vector<8x8xf32>
    %c0_90 = arith.constant 0 : index
    %c1_91 = arith.constant 1 : index
    %183 = memref.load %arg8[%c0_90, %c1_91] : memref<1x4xf32, #tpu.memory_space<smem>>
    %184 = vector.broadcast %183 : f32 to vector<8x8xf32>
    %185 = arith.mulf %182, %184 : vector<8x8xf32>
    %c0_92 = arith.constant 0 : index
    %c1_93 = arith.constant 1 : index
    %186 = memref.load %arg9[%c0_92, %c1_93] : memref<1x4xf32, #tpu.memory_space<smem>>
    %187 = vector.broadcast %186 : f32 to vector<8x8xf32>
    %188 = arith.addf %185, %187 : vector<8x8xf32>
    %189 = arith.truncf %188 : vector<8x8xf32> to vector<8x8xbf16>
    %c1_94 = arith.constant 1 : index
    %c0_95 = arith.constant 0 : index
    %c0_96 = arith.constant 0 : index
    %190 = vector.load %arg14[%c1_94, %c0_95, %c0_96] : memref<4x8x8xbf16, #tpu.memory_space<vmem>>, vector<1x8x8xbf16>
    %191 = vector.shape_cast %190 : vector<1x8x8xbf16> to vector<8x8xbf16>
    %cst_97 = arith.constant dense<0.000000e+00> : vector<8x8xf32>
    %192 = tpu.matmul %189, %191, %cst_97 {dimension_numbers = #tpu.dot_dimension_numbers<[1], [0], [0], [1], [0, 0, 1, 1], [], []>} : vector<8x8xbf16>, vector<8x8xbf16>, vector<8x8xf32> -> vector<8x8xf32>
    %193 = arith.truncf %192 : vector<8x8xf32> to vector<8x8xbf16>
    %c0_98 = arith.constant 0 : index
    %c8 = arith.constant 8 : index
    %194 = vector.load %arg15[%c0_98, %c8] : memref<8x32xbf16, #tpu.memory_space<vmem>>, vector<8x8xbf16>
    tpu.vector_store %arg15[%c0_98, %c8], %193 {strides = array<i32>} : memref<8x32xbf16, #tpu.memory_space<vmem>>, vector<8x8xbf16>,
    %195 = arith.subf %142, %150 : vector<8x8xf32>
    %196 = arith.mulf %195, %166 : vector<8x8xf32>
    %c0_99 = arith.constant 0 : index
    %c2_100 = arith.constant 2 : index
    %197 = memref.load %arg8[%c0_99, %c2_100] : memref<1x4xf32, #tpu.memory_space<smem>>
    %198 = vector.broadcast %197 : f32 to vector<8x8xf32>
    %199 = arith.mulf %196, %198 : vector<8x8xf32>
    %c0_101 = arith.constant 0 : index
    %c2_102 = arith.constant 2 : index
    %200 = memref.load %arg9[%c0_101, %c2_102] : memref<1x4xf32, #tpu.memory_space<smem>>
    %201 = vector.broadcast %200 : f32 to vector<8x8xf32>
    %202 = arith.addf %199, %201 : vector<8x8xf32>
    %203 = arith.truncf %202 : vector<8x8xf32> to vector<8x8xbf16>
    %c2_103 = arith.constant 2 : index
    %c0_104 = arith.constant 0 : index
    %c0_105 = arith.constant 0 : index
    %204 = vector.load %arg14[%c2_103, %c0_104, %c0_105] : memref<4x8x8xbf16, #tpu.memory_space<vmem>>, vector<1x8x8xbf16>
    %205 = vector.shape_cast %204 : vector<1x8x8xbf16> to vector<8x8xbf16>
    %cst_106 = arith.constant dense<0.000000e+00> : vector<8x8xf32>
    %206 = tpu.matmul %203, %205, %cst_106 {dimension_numbers = #tpu.dot_dimension_numbers<[1], [0], [0], [1], [0, 0, 1, 1], [], []>} : vector<8x8xbf16>, vector<8x8xbf16>, vector<8x8xf32> -> vector<8x8xf32>
    %207 = arith.truncf %206 : vector<8x8xf32> to vector<8x8xbf16>
    %c0_107 = arith.constant 0 : index
    %c16 = arith.constant 16 : index
    %208 = vector.load %arg15[%c0_107, %c16] : memref<8x32xbf16, #tpu.memory_space<vmem>>, vector<8x8xbf16>
    tpu.vector_store %arg15[%c0_107, %c16], %207 {strides = array<i32>} : memref<8x32xbf16, #tpu.memory_space<vmem>>, vector<8x8xbf16>,
    %209 = arith.subf %146, %150 : vector<8x8xf32>
    %210 = arith.mulf %209, %166 : vector<8x8xf32>
    %c0_108 = arith.constant 0 : index
    %c3_109 = arith.constant 3 : index
    %211 = memref.load %arg8[%c0_108, %c3_109] : memref<1x4xf32, #tpu.memory_space<smem>>
    %212 = vector.broadcast %211 : f32 to vector<8x8xf32>
    %213 = arith.mulf %210, %212 : vector<8x8xf32>
    %c0_110 = arith.constant 0 : index
    %c3_111 = arith.constant 3 : index
    %214 = memref.load %arg9[%c0_110, %c3_111] : memref<1x4xf32, #tpu.memory_space<smem>>
    %215 = vector.broadcast %214 : f32 to vector<8x8xf32>
    %216 = arith.addf %213, %215 : vector<8x8xf32>
    %217 = arith.truncf %216 : vector<8x8xf32> to vector<8x8xbf16>
    %c3_112 = arith.constant 3 : index
    %c0_113 = arith.constant 0 : index
    %c0_114 = arith.constant 0 : index
    %218 = vector.load %arg14[%c3_112, %c0_113, %c0_114] : memref<4x8x8xbf16, #tpu.memory_space<vmem>>, vector<1x8x8xbf16>
    %219 = vector.shape_cast %218 : vector<1x8x8xbf16> to vector<8x8xbf16>
    %cst_115 = arith.constant dense<0.000000e+00> : vector<8x8xf32>
    %220 = tpu.matmul %217, %219, %cst_115 {dimension_numbers = #tpu.dot_dimension_numbers<[1], [0], [0], [1], [0, 0, 1, 1], [], []>} : vector<8x8xbf16>, vector<8x8xbf16>, vector<8x8xf32> -> vector<8x8xf32>
    %221 = arith.truncf %220 : vector<8x8xf32> to vector<8x8xbf16>
    %c0_116 = arith.constant 0 : index
    %c24 = arith.constant 24 : index
    %222 = vector.load %arg15[%c0_116, %c24] : memref<8x32xbf16, #tpu.memory_space<vmem>>, vector<8x8xbf16>
    tpu.vector_store %arg15[%c0_116, %c24], %221 {strides = array<i32>} : memref<8x32xbf16, #tpu.memory_space<vmem>>, vector<8x8xbf16>,
    %c0_117 = arith.constant 0 : index
    %c0_118 = arith.constant 0 : index
    %223 = vector.load %arg15[%c0_117, %c0_118] : memref<8x32xbf16, #tpu.memory_space<vmem>>, vector<8x32xbf16>
    %c0_119 = arith.constant 0 : index
    %c0_120 = arith.constant 0 : index
    %224 = vector.load %arg10[%c0_119, %c0_120] : memref<32x32xbf16, #tpu.memory_space<vmem>>, vector<32x32xbf16>
    %cst_121 = arith.constant dense<0.000000e+00> : vector<8x32xf32>
    %225 = tpu.matmul %223, %224, %cst_121 {dimension_numbers = #tpu.dot_dimension_numbers<[1], [0], [0], [1], [0, 0, 1, 1], [], []>} : vector<8x32xbf16>, vector<32x32xbf16>, vector<8x32xf32> -> vector<8x32xf32>
    %c0_122 = arith.constant 0 : index
    %c0_123 = arith.constant 0 : index
    %226 = vector.load %arg11[%c0_122, %c0_123] : memref<1x32xf32, #tpu.memory_space<vmem>>, vector<1x32xf32>
    %227 = vector.broadcast %226 : vector<1x32xf32> to vector<8x32xf32>
    %228 = arith.addf %225, %227 : vector<8x32xf32>
    %c0_124 = arith.constant 0 : index
    %c0_125 = arith.constant 0 : index
    %c0_126 = arith.constant 0 : index
    %229 = vector.load %arg12[%c0_124, %c0_125, %c0_126] : memref<1x8x32xf32, #tpu.memory_space<vmem>>, vector<1x8x32xf32>
    %230 = vector.shape_cast %229 : vector<1x8x32xf32> to vector<8x32xf32>
    %231 = vector.shape_cast %228 : vector<8x32xf32> to vector<1x8x32xf32>
    tpu.vector_store %arg12[%c0_124, %c0_125, %c0_126], %231 {strides = array<i32>} : memref<1x8x32xf32, #tpu.memory_space<vmem>>, vector<1x8x32xf32>,
    return
  }
  func.func @transform_0(%arg0: i32, %arg1: i32) -> (i32, i32, i32) {
    %c0_i32 = arith.constant 0 : i32
    %c0_i32_0 = arith.constant 0 : i32
    %c0_i32_1 = arith.constant 0 : i32
    return %arg0, %c0_i32, %c0_i32_0 : i32, i32, i32
  }
  func.func @transform_1(%arg0: i32, %arg1: i32) -> (i32, i32, i32) {
    %c0_i32 = arith.constant 0 : i32
    %c0_i32_0 = arith.constant 0 : i32
    %c0_i32_1 = arith.constant 0 : i32
    %c0_i32_2 = arith.constant 0 : i32
    return %c0_i32, %c0_i32_0, %c0_i32_1 : i32, i32, i32
  }
  func.func @transform_2(%arg0: i32, %arg1: i32) -> (i32, i32, i32) {
    %c0_i32 = arith.constant 0 : i32
    %c0_i32_0 = arith.constant 0 : i32
    %c0_i32_1 = arith.constant 0 : i32
    %c0_i32_2 = arith.constant 0 : i32
    return %c0_i32, %c0_i32_0, %c0_i32_1 : i32, i32, i32
  }
  func.func @transform_3(%arg0: i32, %arg1: i32) -> (i32, i32, i32) {
    %c0_i32 = arith.constant 0 : i32
    %c0_i32_0 = arith.constant 0 : i32
    %c0_i32_1 = arith.constant 0 : i32
    %c0_i32_2 = arith.constant 0 : i32
    return %c0_i32, %c0_i32_0, %c0_i32_1 : i32, i32, i32
  }
  func.func @transform_4(%arg0: i32, %arg1: i32) -> (i32, i32) {
    %c0_i32 = arith.constant 0 : i32
    %c0_i32_0 = arith.constant 0 : i32
    %c0_i32_1 = arith.constant 0 : i32
    return %c0_i32, %c0_i32_0 : i32, i32
  }
  func.func @transform_5(%arg0: i32, %arg1: i32) -> (i32, i32) {
    %c0_i32 = arith.constant 0 : i32
    %c0_i32_0 = arith.constant 0 : i32
    %c0_i32_1 = arith.constant 0 : i32
    return %c0_i32, %c0_i32_0 : i32, i32
  }
  func.func @transform_6(%arg0: i32, %arg1: i32) -> (i32, i32) {
    %c0_i32 = arith.constant 0 : i32
    %c0_i32_0 = arith.constant 0 : i32
    %c0_i32_1 = arith.constant 0 : i32
    return %c0_i32, %c0_i32_0 : i32, i32
  }
  func.func @transform_7(%arg0: i32, %arg1: i32) -> (i32, i32) {
    %c0_i32 = arith.constant 0 : i32
    %c0_i32_0 = arith.constant 0 : i32
    %c0_i32_1 = arith.constant 0 : i32
    return %c0_i32, %c0_i32_0 : i32, i32
  }
  func.func @transform_8(%arg0: i32, %arg1: i32) -> (i32, i32) {
    %c0_i32 = arith.constant 0 : i32
    %c0_i32_0 = arith.constant 0 : i32
    %c0_i32_1 = arith.constant 0 : i32
    return %c0_i32, %c0_i32_0 : i32, i32
  }
  func.func @transform_9(%arg0: i32, %arg1: i32) -> (i32, i32) {
    %c0_i32 = arith.constant 0 : i32
    %c0_i32_0 = arith.constant 0 : i32
    %c0_i32_1 = arith.constant 0 : i32
    return %c0_i32, %c0_i32_0 : i32, i32
  }
  func.func @transform_10(%arg0: i32, %arg1: i32) -> (i32, i32, i32) {
    %c0_i32 = arith.constant 0 : i32
    %c0_i32_0 = arith.constant 0 : i32
    return %arg0, %arg1, %c0_i32 : i32, i32, i32
  }
}

module attributes {stable_mosaic.version = 11 : i64} {
  func.func @_reattention_kernel(%arg0: i32, %arg1: i32, %arg2: memref<1x8x32xbf16, #tpu.memory_space<vmem>>, %arg3: memref<4x32x8xbf16, #tpu.memory_space<vmem>>, %arg4: memref<4x32x8xbf16, #tpu.memory_space<vmem>>, %arg5: memref<4x32x8xbf16, #tpu.memory_space<vmem>>, %arg6: memref<4x4xf32, #tpu.memory_space<smem>>, %arg7: memref<1x4xf32, #tpu.memory_space<smem>>, %arg8: memref<1x4xf32, #tpu.memory_space<smem>>, %arg9: memref<1x4xf32, #tpu.memory_space<smem>>, %arg10: memref<32x32xbf16, #tpu.memory_space<vmem>>, %arg11: memref<1x32xf32, #tpu.memory_space<vmem>>, %arg12: memref<1x8x32xf32, #tpu.memory_space<vmem>>, %arg13: memref<4x8x8xbf16, #tpu.memory_space<vmem>>, %arg14: memref<4x8x8xbf16, #tpu.memory_space<vmem>>, %arg15: memref<8x32xbf16, #tpu.memory_space<vmem>>) attributes {dimension_semantics = [#tpu.dimension_semantics<parallel>, #tpu.dimension_semantics<arbitrary>], iteration_bounds = array<i64: 2, 1>, scalar_prefetch = 0 : i64, scratch_operands = 3 : i64, tpu.core_type = #tpu.core_type<tc>, window_params = [{transform_indices = @transform_0, window_bounds = array<i64: 1, 8, 32>}, {pipeline_mode = #tpu.pipeline_mode<synchronous>, transform_indices = @transform_1, window_bounds = array<i64: 4, 32, 8>}, {pipeline_mode = #tpu.pipeline_mode<synchronous>, transform_indices = @transform_2, window_bounds = array<i64: 4, 32, 8>}, {pipeline_mode = #tpu.pipeline_mode<synchronous>, transform_indices = @transform_3, window_bounds = array<i64: 4, 32, 8>}, {transform_indices = @transform_4, window_bounds = array<i64: 4, 4>}, {transform_indices = @transform_5, window_bounds = array<i64: 1, 4>}, {transform_indices = @transform_6, window_bounds = array<i64: 1, 4>}, {transform_indices = @transform_7, window_bounds = array<i64: 1, 4>}, {pipeline_mode = #tpu.pipeline_mode<synchronous>, transform_indices = @transform_8, window_bounds = array<i64: 32, 32>}, {pipeline_mode = #tpu.pipeline_mode<synchronous>, transform_indices = @transform_9, window_bounds = array<i64: 1, 32>}, {transform_indices = @transform_10, window_bounds = array<i64: 1, 8, 32>}]} {
    %c0_i32 = arith.constant 0 : i32
    %0 = arith.cmpi eq, %arg1, %c0_i32 : i32
    %1 = arith.extui %0 : i1 to i32
    %c0_i32_0 = arith.constant 0 : i32
    %2 = arith.cmpi ne, %1, %c0_i32_0 : i32
    scf.if %2 {
      %c0_127 = arith.constant 0 : index
      %c0_128 = arith.constant 0 : index
      %c0_129 = arith.constant 0 : index
      %232 = vector.load %arg2[%c0_127, %c0_128, %c0_129] : memref<1x8x32xbf16, #tpu.memory_space<vmem>>, vector<1x8x32xbf16>
      %233 = vector.shape_cast %232 : vector<1x8x32xbf16> to vector<8x32xbf16>
      %c0_130 = arith.constant 0 : index
      %c0_131 = arith.constant 0 : index
      %c0_132 = arith.constant 0 : index
      %234 = vector.load %arg4[%c0_130, %c0_131, %c0_132] : memref<4x32x8xbf16, #tpu.memory_space<vmem>>, vector<1x32x8xbf16>
      %235 = vector.shape_cast %234 : vector<1x32x8xbf16> to vector<32x8xbf16>
      %cst_133 = arith.constant dense<0.000000e+00> : vector<8x8xf32>
      %236 = tpu.matmul %233, %235, %cst_133 {dimension_numbers = #tpu.dot_dimension_numbers<[1], [0], [0], [1], [0, 0, 1, 1], [], []>} : vector<8x32xbf16>, vector<32x8xbf16>, vector<8x8xf32> -> vector<8x8xf32>
      %c0_134 = arith.constant 0 : index
      %c0_135 = arith.constant 0 : index
      %c0_136 = arith.constant 0 : index
      %237 = vector.load %arg5[%c0_134, %c0_135, %c0_136] : memref<4x32x8xbf16, #tpu.memory_space<vmem>>, vector<1x32x8xbf16>
      %238 = vector.shape_cast %237 : vector<1x32x8xbf16> to vector<32x8xbf16>
      %cst_137 = arith.constant dense<0.000000e+00> : vector<8x8xf32>
      %239 = tpu.matmul %233, %238, %cst_137 {dimension_numbers = #tpu.dot_dimension_numbers<[1], [0], [0], [1], [0, 0, 1, 1], [], []>} : vector<8x32xbf16>, vector<32x8xbf16>, vector<8x8xf32> -> vector<8x8xf32>
      %240 = arith.truncf %236 : vector<8x8xf32> to vector<8x8xbf16>
      %c0_138 = arith.constant 0 : index
      %c0_139 = arith.constant 0 : index
      %c0_140 = arith.constant 0 : index
      %241 = vector.load %arg13[%c0_138, %c0_139, %c0_140] : memref<4x8x8xbf16, #tpu.memory_space<vmem>>, vector<1x8x8xbf16>
      %242 = vector.shape_cast %241 : vector<1x8x8xbf16> to vector<8x8xbf16>
      %243 = vector.shape_cast %240 : vector<8x8xbf16> to vector<1x8x8xbf16>
      tpu.vector_store %arg13[%c0_138, %c0_139, %c0_140], %243 {strides = array<i32>} : memref<4x8x8xbf16, #tpu.memory_space<vmem>>, vector<1x8x8xbf16>,
      %244 = arith.truncf %239 : vector<8x8xf32> to vector<8x8xbf16>
      %c0_141 = arith.constant 0 : index
      %c0_142 = arith.constant 0 : index
      %c0_143 = arith.constant 0 : index
      %245 = vector.load %arg14[%c0_141, %c0_142, %c0_143] : memref<4x8x8xbf16, #tpu.memory_space<vmem>>, vector<1x8x8xbf16>
      %246 = vector.shape_cast %245 : vector<1x8x8xbf16> to vector<8x8xbf16>
      %247 = vector.shape_cast %244 : vector<8x8xbf16> to vector<1x8x8xbf16>
      tpu.vector_store %arg14[%c0_141, %c0_142, %c0_143], %247 {strides = array<i32>} : memref<4x8x8xbf16, #tpu.memory_space<vmem>>, vector<1x8x8xbf16>,
      %c1_144 = arith.constant 1 : index
      %c0_145 = arith.constant 0 : index
      %c0_146 = arith.constant 0 : index
      %248 = vector.load %arg4[%c1_144, %c0_145, %c0_146] : memref<4x32x8xbf16, #tpu.memory_space<vmem>>, vector<1x32x8xbf16>
      %249 = vector.shape_cast %248 : vector<1x32x8xbf16> to vector<32x8xbf16>
      %cst_147 = arith.constant dense<0.000000e+00> : vector<8x8xf32>
      %250 = tpu.matmul %233, %249, %cst_147 {dimension_numbers = #tpu.dot_dimension_numbers<[1], [0], [0], [1], [0, 0, 1, 1], [], []>} : vector<8x32xbf16>, vector<32x8xbf16>, vector<8x8xf32> -> vector<8x8xf32>
      %c1_148 = arith.constant 1 : index
      %c0_149 = arith.constant 0 : index
      %c0_150 = arith.constant 0 : index
      %251 = vector.load %arg5[%c1_148, %c0_149, %c0_150] : memref<4x32x8xbf16, #tpu.memory_space<vmem>>, vector<1x32x8xbf16>
      %252 = vector.shape_cast %251 : vector<1x32x8xbf16> to vector<32x8xbf16>
      %cst_151 = arith.constant dense<0.000000e+00> : vector<8x8xf32>
      %253 = tpu.matmul %233, %252, %cst_151 {dimension_numbers = #tpu.dot_dimension_numbers<[1], [0], [0], [1], [0, 0, 1, 1], [], []>} : vector<8x32xbf16>, vector<32x8xbf16>, vector<8x8xf32> -> vector<8x8xf32>
      %254 = arith.truncf %250 : vector<8x8xf32> to vector<8x8xbf16>
      %c1_152 = arith.constant 1 : index
      %c0_153 = arith.constant 0 : index
      %c0_154 = arith.constant 0 : index
      %255 = vector.load %arg13[%c1_152, %c0_153, %c0_154] : memref<4x8x8xbf16, #tpu.memory_space<vmem>>, vector<1x8x8xbf16>
      %256 = vector.shape_cast %255 : vector<1x8x8xbf16> to vector<8x8xbf16>
      %257 = vector.shape_cast %254 : vector<8x8xbf16> to vector<1x8x8xbf16>
      tpu.vector_store %arg13[%c1_152, %c0_153, %c0_154], %257 {strides = array<i32>} : memref<4x8x8xbf16, #tpu.memory_space<vmem>>, vector<1x8x8xbf16>,
      %258 = arith.truncf %253 : vector<8x8xf32> to vector<8x8xbf16>
      %c1_155 = arith.constant 1 : index
      %c0_156 = arith.constant 0 : index
      %c0_157 = arith.constant 0 : index
      %259 = vector.load %arg14[%c1_155, %c0_156, %c0_157] : memref<4x8x8xbf16, #tpu.memory_space<vmem>>, vector<1x8x8xbf16>
      %260 = vector.shape_cast %259 : vector<1x8x8xbf16> to vector<8x8xbf16>
      %261 = vector.shape_cast %258 : vector<8x8xbf16> to vector<1x8x8xbf16>
      tpu.vector_store %arg14[%c1_155, %c0_156, %c0_157], %261 {strides = array<i32>} : memref<4x8x8xbf16, #tpu.memory_space<vmem>>, vector<1x8x8xbf16>,
      %c2_158 = arith.constant 2 : index
      %c0_159 = arith.constant 0 : index
      %c0_160 = arith.constant 0 : index
      %262 = vector.load %arg4[%c2_158, %c0_159, %c0_160] : memref<4x32x8xbf16, #tpu.memory_space<vmem>>, vector<1x32x8xbf16>
      %263 = vector.shape_cast %262 : vector<1x32x8xbf16> to vector<32x8xbf16>
      %cst_161 = arith.constant dense<0.000000e+00> : vector<8x8xf32>
      %264 = tpu.matmul %233, %263, %cst_161 {dimension_numbers = #tpu.dot_dimension_numbers<[1], [0], [0], [1], [0, 0, 1, 1], [], []>} : vector<8x32xbf16>, vector<32x8xbf16>, vector<8x8xf32> -> vector<8x8xf32>
      %c2_162 = arith.constant 2 : index
      %c0_163 = arith.constant 0 : index
      %c0_164 = arith.constant 0 : index
      %265 = vector.load %arg5[%c2_162, %c0_163, %c0_164] : memref<4x32x8xbf16, #tpu.memory_space<vmem>>, vector<1x32x8xbf16>
      %266 = vector.shape_cast %265 : vector<1x32x8xbf16> to vector<32x8xbf16>
      %cst_165 = arith.constant dense<0.000000e+00> : vector<8x8xf32>
      %267 = tpu.matmul %233, %266, %cst_165 {dimension_numbers = #tpu.dot_dimension_numbers<[1], [0], [0], [1], [0, 0, 1, 1], [], []>} : vector<8x32xbf16>, vector<32x8xbf16>, vector<8x8xf32> -> vector<8x8xf32>
      %268 = arith.truncf %264 : vector<8x8xf32> to vector<8x8xbf16>
      %c2_166 = arith.constant 2 : index
      %c0_167 = arith.constant 0 : index
      %c0_168 = arith.constant 0 : index
      %269 = vector.load %arg13[%c2_166, %c0_167, %c0_168] : memref<4x8x8xbf16, #tpu.memory_space<vmem>>, vector<1x8x8xbf16>
      %270 = vector.shape_cast %269 : vector<1x8x8xbf16> to vector<8x8xbf16>
      %271 = vector.shape_cast %268 : vector<8x8xbf16> to vector<1x8x8xbf16>
      tpu.vector_store %arg13[%c2_166, %c0_167, %c0_168], %271 {strides = array<i32>} : memref<4x8x8xbf16, #tpu.memory_space<vmem>>, vector<1x8x8xbf16>,
      %272 = arith.truncf %267 : vector<8x8xf32> to vector<8x8xbf16>
      %c2_169 = arith.constant 2 : index
      %c0_170 = arith.constant 0 : index
      %c0_171 = arith.constant 0 : index
      %273 = vector.load %arg14[%c2_169, %c0_170, %c0_171] : memref<4x8x8xbf16, #tpu.memory_space<vmem>>, vector<1x8x8xbf16>
      %274 = vector.shape_cast %273 : vector<1x8x8xbf16> to vector<8x8xbf16>
      %275 = vector.shape_cast %272 : vector<8x8xbf16> to vector<1x8x8xbf16>
      tpu.vector_store %arg14[%c2_169, %c0_170, %c0_171], %275 {strides = array<i32>} : memref<4x8x8xbf16, #tpu.memory_space<vmem>>, vector<1x8x8xbf16>,
      %c3_172 = arith.constant 3 : index
      %c0_173 = arith.constant 0 : index
      %c0_174 = arith.constant 0 : index
      %276 = vector.load %arg4[%c3_172, %c0_173, %c0_174] : memref<4x32x8xbf16, #tpu.memory_space<vmem>>, vector<1x32x8xbf16>
      %277 = vector.shape_cast %276 : vector<1x32x8xbf16> to vector<32x8xbf16>
      %cst_175 = arith.constant dense<0.000000e+00> : vector<8x8xf32>
      %278 = tpu.matmul %233, %277, %cst_175 {dimension_numbers = #tpu.dot_dimension_numbers<[1], [0], [0], [1], [0, 0, 1, 1], [], []>} : vector<8x32xbf16>, vector<32x8xbf16>, vector<8x8xf32> -> vector<8x8xf32>
      %c3_176 = arith.constant 3 : index
      %c0_177 = arith.constant 0 : index
      %c0_178 = arith.constant 0 : index
      %279 = vector.load %arg5[%c3_176, %c0_177, %c0_178] : memref<4x32x8xbf16, #tpu.memory_space<vmem>>, vector<1x32x8xbf16>
      %280 = vector.shape_cast %279 : vector<1x32x8xbf16> to vector<32x8xbf16>
      %cst_179 = arith.constant dense<0.000000e+00> : vector<8x8xf32>
      %281 = tpu.matmul %233, %280, %cst_179 {dimension_numbers = #tpu.dot_dimension_numbers<[1], [0], [0], [1], [0, 0, 1, 1], [], []>} : vector<8x32xbf16>, vector<32x8xbf16>, vector<8x8xf32> -> vector<8x8xf32>
      %282 = arith.truncf %278 : vector<8x8xf32> to vector<8x8xbf16>
      %c3_180 = arith.constant 3 : index
      %c0_181 = arith.constant 0 : index
      %c0_182 = arith.constant 0 : index
      %283 = vector.load %arg13[%c3_180, %c0_181, %c0_182] : memref<4x8x8xbf16, #tpu.memory_space<vmem>>, vector<1x8x8xbf16>
      %284 = vector.shape_cast %283 : vector<1x8x8xbf16> to vector<8x8xbf16>
      %285 = vector.shape_cast %282 : vector<8x8xbf16> to vector<1x8x8xbf16>
      tpu.vector_store %arg13[%c3_180, %c0_181, %c0_182], %285 {strides = array<i32>} : memref<4x8x8xbf16, #tpu.memory_space<vmem>>, vector<1x8x8xbf16>,
      %286 = arith.truncf %281 : vector<8x8xf32> to vector<8x8xbf16>
      %c3_183 = arith.constant 3 : index
      %c0_184 = arith.constant 0 : index
      %c0_185 = arith.constant 0 : index
      %287 = vector.load %arg14[%c3_183, %c0_184, %c0_185] : memref<4x8x8xbf16, #tpu.memory_space<vmem>>, vector<1x8x8xbf16>
      %288 = vector.shape_cast %287 : vector<1x8x8xbf16> to vector<8x8xbf16>
      %289 = vector.shape_cast %286 : vector<8x8xbf16> to vector<1x8x8xbf16>
      tpu.vector_store %arg14[%c3_183, %c0_184, %c0_185], %289 {strides = array<i32>} : memref<4x8x8xbf16, #tpu.memory_space<vmem>>, vector<1x8x8xbf16>,
    } else {
    }
    %c8_i32 = arith.constant 8 : i32
    %3 = arith.muli %arg1, %c8_i32 : i32
    %4 = tpu.assume_multiple %3, 8 : i32
    %c0 = arith.constant 0 : index
    %5 = arith.index_cast %4 : i32 to index
    %c0_1 = arith.constant 0 : index
    %6 = vector.load %arg2[%c0, %5, %c0_1] : memref<1x8x32xbf16, #tpu.memory_space<vmem>>, vector<1x8x32xbf16>
    %7 = vector.shape_cast %6 : vector<1x8x32xbf16> to vector<8x32xbf16>
    %c0_2 = arith.constant 0 : index
    %c0_3 = arith.constant 0 : index
    %c0_4 = arith.constant 0 : index
    %8 = vector.load %arg3[%c0_2, %c0_3, %c0_4] : memref<4x32x8xbf16, #tpu.memory_space<vmem>>, vector<1x32x8xbf16>
    %9 = vector.shape_cast %8 : vector<1x32x8xbf16> to vector<32x8xbf16>
    %cst = arith.constant dense<0.000000e+00> : vector<8x8xf32>
    %10 = tpu.matmul %7, %9, %cst {dimension_numbers = #tpu.dot_dimension_numbers<[1], [0], [0], [1], [0, 0, 1, 1], [], []>} : vector<8x32xbf16>, vector<32x8xbf16>, vector<8x8xf32> -> vector<8x8xf32>
    %11 = arith.truncf %10 : vector<8x8xf32> to vector<8x8xbf16>
    %c0_5 = arith.constant 0 : index
    %c0_6 = arith.constant 0 : index
    %c0_7 = arith.constant 0 : index
    %12 = vector.load %arg13[%c0_5, %c0_6, %c0_7] : memref<4x8x8xbf16, #tpu.memory_space<vmem>>, vector<1x8x8xbf16>
    %13 = vector.shape_cast %12 : vector<1x8x8xbf16> to vector<8x8xbf16>
    %cst_8 = arith.constant dense<0.000000e+00> : vector<8x8xf32>
    %14 = tpu.matmul %11, %13, %cst_8 {dimension_numbers = #tpu.dot_dimension_numbers<[1], [1], [0], [0], [0, 0, 1, 0], [], []>} : vector<8x8xbf16>, vector<8x8xbf16>, vector<8x8xf32> -> vector<8x8xf32>
    %cst_9 = arith.constant dense<0xFF800000> : vector<8xf32>
    %15 = vector.multi_reduction <maximumf>, %14, %cst_9 [1] : vector<8x8xf32> to vector<8xf32>
    %16 = vector.shape_cast %15 : vector<8xf32> to vector<8x1xf32>
    %17 = vector.broadcast %16 : vector<8x1xf32> to vector<8x8xf32>
    %18 = arith.subf %14, %17 : vector<8x8xf32>
    %19 = math.exp %18 : vector<8x8xf32>
    %cst_10 = arith.constant dense<0.000000e+00> : vector<8xf32>
    %20 = vector.multi_reduction <add>, %19, %cst_10 [1] : vector<8x8xf32> to vector<8xf32>
    %21 = vector.shape_cast %20 : vector<8xf32> to vector<8x1xf32>
    %22 = tpu.reciprocal %21 {approx = true} : vector<8x1xf32> -> vector<8x1xf32>
    %23 = vector.broadcast %22 : vector<8x1xf32> to vector<8x8xf32>
    %24 = arith.mulf %19, %23 : vector<8x8xf32>
    %c0_11 = arith.constant 0 : index
    %c0_12 = arith.constant 0 : index
    %25 = memref.load %arg6[%c0_11, %c0_12] : memref<4x4xf32, #tpu.memory_space<smem>>
    %26 = vector.broadcast %25 : f32 to vector<8x8xf32>
    %27 = arith.mulf %24, %26 : vector<8x8xf32>
    %c0_13 = arith.constant 0 : index
    %c1 = arith.constant 1 : index
    %28 = memref.load %arg6[%c0_13, %c1] : memref<4x4xf32, #tpu.memory_space<smem>>
    %29 = vector.broadcast %28 : f32 to vector<8x8xf32>
    %30 = arith.mulf %24, %29 : vector<8x8xf32>
    %c0_14 = arith.constant 0 : index
    %c2 = arith.constant 2 : index
    %31 = memref.load %arg6[%c0_14, %c2] : memref<4x4xf32, #tpu.memory_space<smem>>
    %32 = vector.broadcast %31 : f32 to vector<8x8xf32>
    %33 = arith.mulf %24, %32 : vector<8x8xf32>
    %c0_15 = arith.constant 0 : index
    %c3 = arith.constant 3 : index
    %34 = memref.load %arg6[%c0_15, %c3] : memref<4x4xf32, #tpu.memory_space<smem>>
    %35 = vector.broadcast %34 : f32 to vector<8x8xf32>
    %36 = arith.mulf %24, %35 : vector<8x8xf32>
    %c0_16 = arith.constant 0 : index
    %c0_17 = arith.constant 0 : index
    %37 = memref.load %arg7[%c0_16, %c0_17] : memref<1x4xf32, #tpu.memory_space<smem>>
    %38 = vector.broadcast %37 : f32 to vector<8x8xf32>
    %39 = arith.mulf %24, %38 : vector<8x8xf32>
    %c1_18 = arith.constant 1 : index
    %c0_19 = arith.constant 0 : index
    %c0_20 = arith.constant 0 : index
    %40 = vector.load %arg3[%c1_18, %c0_19, %c0_20] : memref<4x32x8xbf16, #tpu.memory_space<vmem>>, vector<1x32x8xbf16>
    %41 = vector.shape_cast %40 : vector<1x32x8xbf16> to vector<32x8xbf16>
    %cst_21 = arith.constant dense<0.000000e+00> : vector<8x8xf32>
    %42 = tpu.matmul %7, %41, %cst_21 {dimension_numbers = #tpu.dot_dimension_numbers<[1], [0], [0], [1], [0, 0, 1, 1], [], []>} : vector<8x32xbf16>, vector<32x8xbf16>, vector<8x8xf32> -> vector<8x8xf32>
    %43 = arith.truncf %42 : vector<8x8xf32> to vector<8x8xbf16>
    %c1_22 = arith.constant 1 : index
    %c0_23 = arith.constant 0 : index
    %c0_24 = arith.constant 0 : index
    %44 = vector.load %arg13[%c1_22, %c0_23, %c0_24] : memref<4x8x8xbf16, #tpu.memory_space<vmem>>, vector<1x8x8xbf16>
    %45 = vector.shape_cast %44 : vector<1x8x8xbf16> to vector<8x8xbf16>
    %cst_25 = arith.constant dense<0.000000e+00> : vector<8x8xf32>
    %46 = tpu.matmul %43, %45, %cst_25 {dimension_numbers = #tpu.dot_dimension_numbers<[1], [1], [0], [0], [0, 0, 1, 0], [], []>} : vector<8x8xbf16>, vector<8x8xbf16>, vector<8x8xf32> -> vector<8x8xf32>
    %cst_26 = arith.constant dense<0xFF800000> : vector<8xf32>
    %47 = vector.multi_reduction <maximumf>, %46, %cst_26 [1] : vector<8x8xf32> to vector<8xf32>
    %48 = vector.shape_cast %47 : vector<8xf32> to vector<8x1xf32>
    %49 = vector.broadcast %48 : vector<8x1xf32> to vector<8x8xf32>
    %50 = arith.subf %46, %49 : vector<8x8xf32>
    %51 = math.exp %50 : vector<8x8xf32>
    %cst_27 = arith.constant dense<0.000000e+00> : vector<8xf32>
    %52 = vector.multi_reduction <add>, %51, %cst_27 [1] : vector<8x8xf32> to vector<8xf32>
    %53 = vector.shape_cast %52 : vector<8xf32> to vector<8x1xf32>
    %54 = tpu.reciprocal %53 {approx = true} : vector<8x1xf32> -> vector<8x1xf32>
    %55 = vector.broadcast %54 : vector<8x1xf32> to vector<8x8xf32>
    %56 = arith.mulf %51, %55 : vector<8x8xf32>
    %c1_28 = arith.constant 1 : index
    %c0_29 = arith.constant 0 : index
    %57 = memref.load %arg6[%c1_28, %c0_29] : memref<4x4xf32, #tpu.memory_space<smem>>
    %58 = vector.broadcast %57 : f32 to vector<8x8xf32>
    %59 = arith.mulf %56, %58 : vector<8x8xf32>
    %60 = arith.addf %27, %59 : vector<8x8xf32>
    %c1_30 = arith.constant 1 : index
    %c1_31 = arith.constant 1 : index
    %61 = memref.load %arg6[%c1_30, %c1_31] : memref<4x4xf32, #tpu.memory_space<smem>>
    %62 = vector.broadcast %61 : f32 to vector<8x8xf32>
    %63 = arith.mulf %56, %62 : vector<8x8xf32>
    %64 = arith.addf %30, %63 : vector<8x8xf32>
    %c1_32 = arith.constant 1 : index
    %c2_33 = arith.constant 2 : index
    %65 = memref.load %arg6[%c1_32, %c2_33] : memref<4x4xf32, #tpu.memory_space<smem>>
    %66 = vector.broadcast %65 : f32 to vector<8x8xf32>
    %67 = arith.mulf %56, %66 : vector<8x8xf32>
    %68 = arith.addf %33, %67 : vector<8x8xf32>
    %c1_34 = arith.constant 1 : index
    %c3_35 = arith.constant 3 : index
    %69 = memref.load %arg6[%c1_34, %c3_35] : memref<4x4xf32, #tpu.memory_space<smem>>
    %70 = vector.broadcast %69 : f32 to vector<8x8xf32>
    %71 = arith.mulf %56, %70 : vector<8x8xf32>
    %72 = arith.addf %36, %71 : vector<8x8xf32>
    %c0_36 = arith.constant 0 : index
    %c1_37 = arith.constant 1 : index
    %73 = memref.load %arg7[%c0_36, %c1_37] : memref<1x4xf32, #tpu.memory_space<smem>>
    %74 = vector.broadcast %73 : f32 to vector<8x8xf32>
    %75 = arith.mulf %56, %74 : vector<8x8xf32>
    %76 = arith.addf %39, %75 : vector<8x8xf32>
    %c2_38 = arith.constant 2 : index
    %c0_39 = arith.constant 0 : index
    %c0_40 = arith.constant 0 : index
    %77 = vector.load %arg3[%c2_38, %c0_39, %c0_40] : memref<4x32x8xbf16, #tpu.memory_space<vmem>>, vector<1x32x8xbf16>
    %78 = vector.shape_cast %77 : vector<1x32x8xbf16> to vector<32x8xbf16>
    %cst_41 = arith.constant dense<0.000000e+00> : vector<8x8xf32>
    %79 = tpu.matmul %7, %78, %cst_41 {dimension_numbers = #tpu.dot_dimension_numbers<[1], [0], [0], [1], [0, 0, 1, 1], [], []>} : vector<8x32xbf16>, vector<32x8xbf16>, vector<8x8xf32> -> vector<8x8xf32>
    %80 = arith.truncf %79 : vector<8x8xf32> to vector<8x8xbf16>
    %c2_42 = arith.constant 2 : index
    %c0_43 = arith.constant 0 : index
    %c0_44 = arith.constant 0 : index
    %81 = vector.load %arg13[%c2_42, %c0_43, %c0_44] : memref<4x8x8xbf16, #tpu.memory_space<vmem>>, vector<1x8x8xbf16>
    %82 = vector.shape_cast %81 : vector<1x8x8xbf16> to vector<8x8xbf16>
    %cst_45 = arith.constant dense<0.000000e+00> : vector<8x8xf32>
    %83 = tpu.matmul %80, %82, %cst_45 {dimension_numbers = #tpu.dot_dimension_numbers<[1], [1], [0], [0], [0, 0, 1, 0], [], []>} : vector<8x8xbf16>, vector<8x8xbf16>, vector<8x8xf32> -> vector<8x8xf32>
    %cst_46 = arith.constant dense<0xFF800000> : vector<8xf32>
    %84 = vector.multi_reduction <maximumf>, %83, %cst_46 [1] : vector<8x8xf32> to vector<8xf32>
    %85 = vector.shape_cast %84 : vector<8xf32> to vector<8x1xf32>
    %86 = vector.broadcast %85 : vector<8x1xf32> to vector<8x8xf32>
    %87 = arith.subf %83, %86 : vector<8x8xf32>
    %88 = math.exp %87 : vector<8x8xf32>
    %cst_47 = arith.constant dense<0.000000e+00> : vector<8xf32>
    %89 = vector.multi_reduction <add>, %88, %cst_47 [1] : vector<8x8xf32> to vector<8xf32>
    %90 = vector.shape_cast %89 : vector<8xf32> to vector<8x1xf32>
    %91 = tpu.reciprocal %90 {approx = true} : vector<8x1xf32> -> vector<8x1xf32>
    %92 = vector.broadcast %91 : vector<8x1xf32> to vector<8x8xf32>
    %93 = arith.mulf %88, %92 : vector<8x8xf32>
    %c2_48 = arith.constant 2 : index
    %c0_49 = arith.constant 0 : index
    %94 = memref.load %arg6[%c2_48, %c0_49] : memref<4x4xf32, #tpu.memory_space<smem>>
    %95 = vector.broadcast %94 : f32 to vector<8x8xf32>
    %96 = arith.mulf %93, %95 : vector<8x8xf32>
    %97 = arith.addf %60, %96 : vector<8x8xf32>
    %c2_50 = arith.constant 2 : index
    %c1_51 = arith.constant 1 : index
    %98 = memref.load %arg6[%c2_50, %c1_51] : memref<4x4xf32, #tpu.memory_space<smem>>
    %99 = vector.broadcast %98 : f32 to vector<8x8xf32>
    %100 = arith.mulf %93, %99 : vector<8x8xf32>
    %101 = arith.addf %64, %100 : vector<8x8xf32>
    %c2_52 = arith.constant 2 : index
    %c2_53 = arith.constant 2 : index
    %102 = memref.load %arg6[%c2_52, %c2_53] : memref<4x4xf32, #tpu.memory_space<smem>>
    %103 = vector.broadcast %102 : f32 to vector<8x8xf32>
    %104 = arith.mulf %93, %103 : vector<8x8xf32>
    %105 = arith.addf %68, %104 : vector<8x8xf32>
    %c2_54 = arith.constant 2 : index
    %c3_55 = arith.constant 3 : index
    %106 = memref.load %arg6[%c2_54, %c3_55] : memref<4x4xf32, #tpu.memory_space<smem>>
    %107 = vector.broadcast %106 : f32 to vector<8x8xf32>
    %108 = arith.mulf %93, %107 : vector<8x8xf32>
    %109 = arith.addf %72, %108 : vector<8x8xf32>
    %c0_56 = arith.constant 0 : index
    %c2_57 = arith.constant 2 : index
    %110 = memref.load %arg7[%c0_56, %c2_57] : memref<1x4xf32, #tpu.memory_space<smem>>
    %111 = vector.broadcast %110 : f32 to vector<8x8xf32>
    %112 = arith.mulf %93, %111 : vector<8x8xf32>
    %113 = arith.addf %76, %112 : vector<8x8xf32>
    %c3_58 = arith.constant 3 : index
    %c0_59 = arith.constant 0 : index
    %c0_60 = arith.constant 0 : index
    %114 = vector.load %arg3[%c3_58, %c0_59, %c0_60] : memref<4x32x8xbf16, #tpu.memory_space<vmem>>, vector<1x32x8xbf16>
    %115 = vector.shape_cast %114 : vector<1x32x8xbf16> to vector<32x8xbf16>
    %cst_61 = arith.constant dense<0.000000e+00> : vector<8x8xf32>
    %116 = tpu.matmul %7, %115, %cst_61 {dimension_numbers = #tpu.dot_dimension_numbers<[1], [0], [0], [1], [0, 0, 1, 1], [], []>} : vector<8x32xbf16>, vector<32x8xbf16>, vector<8x8xf32> -> vector<8x8xf32>
    %117 = arith.truncf %116 : vector<8x8xf32> to vector<8x8xbf16>
    %c3_62 = arith.constant 3 : index
    %c0_63 = arith.constant 0 : index
    %c0_64 = arith.constant 0 : index
    %118 = vector.load %arg13[%c3_62, %c0_63, %c0_64] : memref<4x8x8xbf16, #tpu.memory_space<vmem>>, vector<1x8x8xbf16>
    %119 = vector.shape_cast %118 : vector<1x8x8xbf16> to vector<8x8xbf16>
    %cst_65 = arith.constant dense<0.000000e+00> : vector<8x8xf32>
    %120 = tpu.matmul %117, %119, %cst_65 {dimension_numbers = #tpu.dot_dimension_numbers<[1], [1], [0], [0], [0, 0, 1, 0], [], []>} : vector<8x8xbf16>, vector<8x8xbf16>, vector<8x8xf32> -> vector<8x8xf32>
    %cst_66 = arith.constant dense<0xFF800000> : vector<8xf32>
    %121 = vector.multi_reduction <maximumf>, %120, %cst_66 [1] : vector<8x8xf32> to vector<8xf32>
    %122 = vector.shape_cast %121 : vector<8xf32> to vector<8x1xf32>
    %123 = vector.broadcast %122 : vector<8x1xf32> to vector<8x8xf32>
    %124 = arith.subf %120, %123 : vector<8x8xf32>
    %125 = math.exp %124 : vector<8x8xf32>
    %cst_67 = arith.constant dense<0.000000e+00> : vector<8xf32>
    %126 = vector.multi_reduction <add>, %125, %cst_67 [1] : vector<8x8xf32> to vector<8xf32>
    %127 = vector.shape_cast %126 : vector<8xf32> to vector<8x1xf32>
    %128 = tpu.reciprocal %127 {approx = true} : vector<8x1xf32> -> vector<8x1xf32>
    %129 = vector.broadcast %128 : vector<8x1xf32> to vector<8x8xf32>
    %130 = arith.mulf %125, %129 : vector<8x8xf32>
    %c3_68 = arith.constant 3 : index
    %c0_69 = arith.constant 0 : index
    %131 = memref.load %arg6[%c3_68, %c0_69] : memref<4x4xf32, #tpu.memory_space<smem>>
    %132 = vector.broadcast %131 : f32 to vector<8x8xf32>
    %133 = arith.mulf %130, %132 : vector<8x8xf32>
    %134 = arith.addf %97, %133 : vector<8x8xf32>
    %c3_70 = arith.constant 3 : index
    %c1_71 = arith.constant 1 : index
    %135 = memref.load %arg6[%c3_70, %c1_71] : memref<4x4xf32, #tpu.memory_space<smem>>
    %136 = vector.broadcast %135 : f32 to vector<8x8xf32>
    %137 = arith.mulf %130, %136 : vector<8x8xf32>
    %138 = arith.addf %101, %137 : vector<8x8xf32>
    %c3_72 = arith.constant 3 : index
    %c2_73 = arith.constant 2 : index
    %139 = memref.load %arg6[%c3_72, %c2_73] : memref<4x4xf32, #tpu.memory_space<smem>>
    %140 = vector.broadcast %139 : f32 to vector<8x8xf32>
    %141 = arith.mulf %130, %140 : vector<8x8xf32>
    %142 = arith.addf %105, %141 : vector<8x8xf32>
    %c3_74 = arith.constant 3 : index
    %c3_75 = arith.constant 3 : index
    %143 = memref.load %arg6[%c3_74, %c3_75] : memref<4x4xf32, #tpu.memory_space<smem>>
    %144 = vector.broadcast %143 : f32 to vector<8x8xf32>
    %145 = arith.mulf %130, %144 : vector<8x8xf32>
    %146 = arith.addf %109, %145 : vector<8x8xf32>
    %c0_76 = arith.constant 0 : index
    %c3_77 = arith.constant 3 : index
    %147 = memref.load %arg7[%c0_76, %c3_77] : memref<1x4xf32, #tpu.memory_space<smem>>
    %148 = vector.broadcast %147 : f32 to vector<8x8xf32>
    %149 = arith.mulf %130, %148 : vector<8x8xf32>
    %150 = arith.addf %113, %149 : vector<8x8xf32>
    %151 = arith.subf %134, %150 : vector<8x8xf32>
    %152 = arith.mulf %151, %151 : vector<8x8xf32>
    %153 = arith.subf %138, %150 : vector<8x8xf32>
    %154 = arith.mulf %153, %153 : vector<8x8xf32>
    %155 = arith.addf %152, %154 : vector<8x8xf32>
    %156 = arith.subf %142, %150 : vector<8x8xf32>
    %157 = arith.mulf %156, %156 : vector<8x8xf32>
    %158 = arith.addf %155, %157 : vector<8x8xf32>
    %159 = arith.subf %146, %150 : vector<8x8xf32>
    %160 = arith.mulf %159, %159 : vector<8x8xf32>
    %161 = arith.addf %158, %160 : vector<8x8xf32>
    %cst_78 = arith.constant 2.500000e-01 : f32
    %162 = vector.broadcast %cst_78 : f32 to vector<8x8xf32>
    %163 = arith.mulf %161, %162 : vector<8x8xf32>
    %cst_79 = arith.constant 9.99999974E-6 : f32
    %164 = vector.broadcast %cst_79 : f32 to vector<8x8xf32>
    %165 = arith.addf %163, %164 : vector<8x8xf32>
    %166 = math.rsqrt %165 : vector<8x8xf32>
    %167 = arith.subf %134, %150 : vector<8x8xf32>
    %168 = arith.mulf %167, %166 : vector<8x8xf32>
    %c0_80 = arith.constant 0 : index
    %c0_81 = arith.constant 0 : index
    %169 = memref.load %arg8[%c0_80, %c0_81] : memref<1x4xf32, #tpu.memory_space<smem>>
    %170 = vector.broadcast %169 : f32 to vector<8x8xf32>
    %171 = arith.mulf %168, %170 : vector<8x8xf32>
    %c0_82 = arith.constant 0 : index
    %c0_83 = arith.constant 0 : index
    %172 = memref.load %arg9[%c0_82, %c0_83] : memref<1x4xf32, #tpu.memory_space<smem>>
    %173 = vector.broadcast %172 : f32 to vector<8x8xf32>
    %174 = arith.addf %171, %173 : vector<8x8xf32>
    %175 = arith.truncf %174 : vector<8x8xf32> to vector<8x8xbf16>
    %c0_84 = arith.constant 0 : index
    %c0_85 = arith.constant 0 : index
    %c0_86 = arith.constant 0 : index
    %176 = vector.load %arg14[%c0_84, %c0_85, %c0_86] : memref<4x8x8xbf16, #tpu.memory_space<vmem>>, vector<1x8x8xbf16>
    %177 = vector.shape_cast %176 : vector<1x8x8xbf16> to vector<8x8xbf16>
    %cst_87 = arith.constant dense<0.000000e+00> : vector<8x8xf32>
    %178 = tpu.matmul %175, %177, %cst_87 {dimension_numbers = #tpu.dot_dimension_numbers<[1], [0], [0], [1], [0, 0, 1, 1], [], []>} : vector<8x8xbf16>, vector<8x8xbf16>, vector<8x8xf32> -> vector<8x8xf32>
    %179 = arith.truncf %178 : vector<8x8xf32> to vector<8x8xbf16>
    %c0_88 = arith.constant 0 : index
    %c0_89 = arith.constant 0 : index
    %180 = vector.load %arg15[%c0_88, %c0_89] : memref<8x32xbf16, #tpu.memory_space<vmem>>, vector<8x8xbf16>
    tpu.vector_store %arg15[%c0_88, %c0_89], %179 {strides = array<i32>} : memref<8x32xbf16, #tpu.memory_space<vmem>>, vector<8x8xbf16>,
    %181 = arith.subf %138, %150 : vector<8x8xf32>
    %182 = arith.mulf %181, %166 : vector<8x8xf32>
    %c0_90 = arith.constant 0 : index
    %c1_91 = arith.constant 1 : index
    %183 = memref.load %arg8[%c0_90, %c1_91] : memref<1x4xf32, #tpu.memory_space<smem>>
    %184 = vector.broadcast %183 : f32 to vector<8x8xf32>
    %185 = arith.mulf %182, %184 : vector<8x8xf32>
    %c0_92 = arith.constant 0 : index
    %c1_93 = arith.constant 1 : index
    %186 = memref.load %arg9[%c0_92, %c1_93] : memref<1x4xf32, #tpu.memory_space<smem>>
    %187 = vector.broadcast %186 : f32 to vector<8x8xf32>
    %188 = arith.addf %185, %187 : vector<8x8xf32>
    %189 = arith.truncf %188 : vector<8x8xf32> to vector<8x8xbf16>
    %c1_94 = arith.constant 1 : index
    %c0_95 = arith.constant 0 : index
    %c0_96 = arith.constant 0 : index
    %190 = vector.load %arg14[%c1_94, %c0_95, %c0_96] : memref<4x8x8xbf16, #tpu.memory_space<vmem>>, vector<1x8x8xbf16>
    %191 = vector.shape_cast %190 : vector<1x8x8xbf16> to vector<8x8xbf16>
    %cst_97 = arith.constant dense<0.000000e+00> : vector<8x8xf32>
    %192 = tpu.matmul %189, %191, %cst_97 {dimension_numbers = #tpu.dot_dimension_numbers<[1], [0], [0], [1], [0, 0, 1, 1], [], []>} : vector<8x8xbf16>, vector<8x8xbf16>, vector<8x8xf32> -> vector<8x8xf32>
    %193 = arith.truncf %192 : vector<8x8xf32> to vector<8x8xbf16>
    %c0_98 = arith.constant 0 : index
    %c8 = arith.constant 8 : index
    %194 = vector.load %arg15[%c0_98, %c8] : memref<8x32xbf16, #tpu.memory_space<vmem>>, vector<8x8xbf16>
    tpu.vector_store %arg15[%c0_98, %c8], %193 {strides = array<i32>} : memref<8x32xbf16, #tpu.memory_space<vmem>>, vector<8x8xbf16>,
    %195 = arith.subf %142, %150 : vector<8x8xf32>
    %196 = arith.mulf %195, %166 : vector<8x8xf32>
    %c0_99 = arith.constant 0 : index
    %c2_100 = arith.constant 2 : index
    %197 = memref.load %arg8[%c0_99, %c2_100] : memref<1x4xf32, #tpu.memory_space<smem>>
    %198 = vector.broadcast %197 : f32 to vector<8x8xf32>
    %199 = arith.mulf %196, %198 : vector<8x8xf32>
    %c0_101 = arith.constant 0 : index
    %c2_102 = arith.constant 2 : index
    %200 = memref.load %arg9[%c0_101, %c2_102] : memref<1x4xf32, #tpu.memory_space<smem>>
    %201 = vector.broadcast %200 : f32 to vector<8x8xf32>
    %202 = arith.addf %199, %201 : vector<8x8xf32>
    %203 = arith.truncf %202 : vector<8x8xf32> to vector<8x8xbf16>
    %c2_103 = arith.constant 2 : index
    %c0_104 = arith.constant 0 : index
    %c0_105 = arith.constant 0 : index
    %204 = vector.load %arg14[%c2_103, %c0_104, %c0_105] : memref<4x8x8xbf16, #tpu.memory_space<vmem>>, vector<1x8x8xbf16>
    %205 = vector.shape_cast %204 : vector<1x8x8xbf16> to vector<8x8xbf16>
    %cst_106 = arith.constant dense<0.000000e+00> : vector<8x8xf32>
    %206 = tpu.matmul %203, %205, %cst_106 {dimension_numbers = #tpu.dot_dimension_numbers<[1], [0], [0], [1], [0, 0, 1, 1], [], []>} : vector<8x8xbf16>, vector<8x8xbf16>, vector<8x8xf32> -> vector<8x8xf32>
    %207 = arith.truncf %206 : vector<8x8xf32> to vector<8x8xbf16>
    %c0_107 = arith.constant 0 : index
    %c16 = arith.constant 16 : index
    %208 = vector.load %arg15[%c0_107, %c16] : memref<8x32xbf16, #tpu.memory_space<vmem>>, vector<8x8xbf16>
    tpu.vector_store %arg15[%c0_107, %c16], %207 {strides = array<i32>} : memref<8x32xbf16, #tpu.memory_space<vmem>>, vector<8x8xbf16>,
    %209 = arith.subf %146, %150 : vector<8x8xf32>
    %210 = arith.mulf %209, %166 : vector<8x8xf32>
    %c0_108 = arith.constant 0 : index
    %c3_109 = arith.constant 3 : index
    %211 = memref.load %arg8[%c0_108, %c3_109] : memref<1x4xf32, #tpu.memory_space<smem>>
    %212 = vector.broadcast %211 : f32 to vector<8x8xf32>
    %213 = arith.mulf %210, %212 : vector<8x8xf32>
    %c0_110 = arith.constant 0 : index
    %c3_111 = arith.constant 3 : index
    %214 = memref.load %arg9[%c0_110, %c3_111] : memref<1x4xf32, #tpu.memory_space<smem>>
    %215 = vector.broadcast %214 : f32 to vector<8x8xf32>
    %216 = arith.addf %213, %215 : vector<8x8xf32>
    %217 = arith.truncf %216 : vector<8x8xf32> to vector<8x8xbf16>
    %c3_112 = arith.constant 3 : index
    %c0_113 = arith.constant 0 : index
    %c0_114 = arith.constant 0 : index
    %218 = vector.load %arg14[%c3_112, %c0_113, %c0_114] : memref<4x8x8xbf16, #tpu.memory_space<vmem>>, vector<1x8x8xbf16>
    %219 = vector.shape_cast %218 : vector<1x8x8xbf16> to vector<8x8xbf16>
    %cst_115 = arith.constant dense<0.000000e+00> : vector<8x8xf32>
    %220 = tpu.matmul %217, %219, %cst_115 {dimension_numbers = #tpu.dot_dimension_numbers<[1], [0], [0], [1], [0, 0, 1, 1], [], []>} : vector<8x8xbf16>, vector<8x8xbf16>, vector<8x8xf32> -> vector<8x8xf32>
    %221 = arith.truncf %220 : vector<8x8xf32> to vector<8x8xbf16>
    %c0_116 = arith.constant 0 : index
    %c24 = arith.constant 24 : index
    %222 = vector.load %arg15[%c0_116, %c24] : memref<8x32xbf16, #tpu.memory_space<vmem>>, vector<8x8xbf16>
    tpu.vector_store %arg15[%c0_116, %c24], %221 {strides = array<i32>} : memref<8x32xbf16, #tpu.memory_space<vmem>>, vector<8x8xbf16>,
    %c0_117 = arith.constant 0 : index
    %c0_118 = arith.constant 0 : index
    %223 = vector.load %arg15[%c0_117, %c0_118] : memref<8x32xbf16, #tpu.memory_space<vmem>>, vector<8x32xbf16>
    %c0_119 = arith.constant 0 : index
    %c0_120 = arith.constant 0 : index
    %224 = vector.load %arg10[%c0_119, %c0_120] : memref<32x32xbf16, #tpu.memory_space<vmem>>, vector<32x32xbf16>
    %cst_121 = arith.constant dense<0.000000e+00> : vector<8x32xf32>
    %225 = tpu.matmul %223, %224, %cst_121 {dimension_numbers = #tpu.dot_dimension_numbers<[1], [0], [0], [1], [0, 0, 1, 1], [], []>} : vector<8x32xbf16>, vector<32x32xbf16>, vector<8x32xf32> -> vector<8x32xf32>
    %c0_122 = arith.constant 0 : index
    %c0_123 = arith.constant 0 : index
    %226 = vector.load %arg11[%c0_122, %c0_123] : memref<1x32xf32, #tpu.memory_space<vmem>>, vector<1x32xf32>
    %227 = vector.broadcast %226 : vector<1x32xf32> to vector<8x32xf32>
    %228 = arith.addf %225, %227 : vector<8x32xf32>
    %c0_124 = arith.constant 0 : index
    %c0_125 = arith.constant 0 : index
    %c0_126 = arith.constant 0 : index
    %229 = vector.load %arg12[%c0_124, %c0_125, %c0_126] : memref<1x8x32xf32, #tpu.memory_space<vmem>>, vector<1x8x32xf32>
    %230 = vector.shape_cast %229 : vector<1x8x32xf32> to vector<8x32xf32>
    %231 = vector.shape_cast %228 : vector<8x32xf32> to vector<1x8x32xf32>
    tpu.vector_store %arg12[%c0_124, %c0_125, %c0_126], %231 {strides = array<i32>} : memref<1x8x32xf32, #tpu.memory_space<vmem>>, vector<1x8x32xf32>,
    return
  }
  func.func @transform_0(%arg0: i32, %arg1: i32) -> (i32, i32, i32) {
    %c0_i32 = arith.constant 0 : i32
    %c0_i32_0 = arith.constant 0 : i32
    %c0_i32_1 = arith.constant 0 : i32
    return %arg0, %c0_i32, %c0_i32_0 : i32, i32, i32
  }
  func.func @transform_1(%arg0: i32, %arg1: i32) -> (i32, i32, i32) {
    %c0_i32 = arith.constant 0 : i32
    %c0_i32_0 = arith.constant 0 : i32
    %c0_i32_1 = arith.constant 0 : i32
    %c0_i32_2 = arith.constant 0 : i32
    return %c0_i32, %c0_i32_0, %c0_i32_1 : i32, i32, i32
  }
  func.func @transform_2(%arg0: i32, %arg1: i32) -> (i32, i32, i32) {
    %c0_i32 = arith.constant 0 : i32
    %c0_i32_0 = arith.constant 0 : i32
    %c0_i32_1 = arith.constant 0 : i32
    %c0_i32_2 = arith.constant 0 : i32
    return %c0_i32, %c0_i32_0, %c0_i32_1 : i32, i32, i32
  }
  func.func @transform_3(%arg0: i32, %arg1: i32) -> (i32, i32, i32) {
    %c0_i32 = arith.constant 0 : i32
    %c0_i32_0 = arith.constant 0 : i32
    %c0_i32_1 = arith.constant 0 : i32
    %c0_i32_2 = arith.constant 0 : i32
    return %c0_i32, %c0_i32_0, %c0_i32_1 : i32, i32, i32
  }
  func.func @transform_4(%arg0: i32, %arg1: i32) -> (i32, i32) {
    %c0_i32 = arith.constant 0 : i32
    %c0_i32_0 = arith.constant 0 : i32
    %c0_i32_1 = arith.constant 0 : i32
    return %c0_i32, %c0_i32_0 : i32, i32
  }
  func.func @transform_5(%arg0: i32, %arg1: i32) -> (i32, i32) {
    %c0_i32 = arith.constant 0 : i32
    %c0_i32_0 = arith.constant 0 : i32
    %c0_i32_1 = arith.constant 0 : i32
    return %c0_i32, %c0_i32_0 : i32, i32
  }
  func.func @transform_6(%arg0: i32, %arg1: i32) -> (i32, i32) {
    %c0_i32 = arith.constant 0 : i32
    %c0_i32_0 = arith.constant 0 : i32
    %c0_i32_1 = arith.constant 0 : i32
    return %c0_i32, %c0_i32_0 : i32, i32
  }
  func.func @transform_7(%arg0: i32, %arg1: i32) -> (i32, i32) {
    %c0_i32 = arith.constant 0 : i32
    %c0_i32_0 = arith.constant 0 : i32
    %c0_i32_1 = arith.constant 0 : i32
    return %c0_i32, %c0_i32_0 : i32, i32
  }
  func.func @transform_8(%arg0: i32, %arg1: i32) -> (i32, i32) {
    %c0_i32 = arith.constant 0 : i32
    %c0_i32_0 = arith.constant 0 : i32
    %c0_i32_1 = arith.constant 0 : i32
    return %c0_i32, %c0_i32_0 : i32, i32
  }
  func.func @transform_9(%arg0: i32, %arg1: i32) -> (i32, i32) {
    %c0_i32 = arith.constant 0 : i32
    %c0_i32_0 = arith.constant 0 : i32
    %c0_i32_1 = arith.constant 0 : i32
    return %c0_i32, %c0_i32_0 : i32, i32
  }
  func.func @transform_10(%arg0: i32, %arg1: i32) -> (i32, i32, i32) {
    %c0_i32 = arith.constant 0 : i32
    %c0_i32_0 = arith.constant 0 : i32
    return %arg0, %arg1, %c0_i32 : i32, i32, i32
  }
}

</mosaic_0001>

<llo_original>
// kernel: tpu_custom_call.1
$region0: #{tpu_custom_call.1}
  #allocation0 [shape = 'u32[]', space=smem, size = 0x4, offset = 0x4, fixed_abs, tag = 'smem constant byte address 0x4 - core index']
  #allocation1 [shape = 'u32[144,128]{1,0:T(1,128)}', space=vmem, size = 0x12000, scoped, tag = 'internal scratch']
  #allocation2 [shape = 'bf16[4,8,8]{2,1,0:T(8,128)(2,1)}', space=vmem, size = 0x2000, scoped, tag = 'scratch operand']
  #allocation3 [shape = 'bf16[4,8,8]{2,1,0:T(8,128)(2,1)}', space=vmem, size = 0x2000, scoped, tag = 'scratch operand']
  #allocation4 [shape = 'bf16[8,32]{1,0:T(8,128)(2,1)}', space=vmem, size = 0x800, scoped, tag = 'scratch operand']
  %s0 = inlined_call_operand.vmem [shape: bf16[2,8,32], index: 0, kind: input, shape index: {}]
  %s1 = inlined_call_operand.vmem [shape: bf16[4,32,8], index: 1, kind: input, shape index: {}]
  %s2 = inlined_call_operand.vmem [shape: bf16[4,32,8], index: 2, kind: input, shape index: {}]
  %s3 = inlined_call_operand.vmem [shape: bf16[4,32,8], index: 3, kind: input, shape index: {}]
  %s4 = inlined_call_operand.vmem [shape: f32[4,4], index: 4, kind: input, shape index: {}]
  %s5 = inlined_call_operand.vmem [shape: f32[1,4], index: 5, kind: input, shape index: {}]
  %s6 = inlined_call_operand.vmem [shape: f32[1,4], index: 6, kind: input, shape index: {}]
  %s7 = inlined_call_operand.vmem [shape: f32[1,4], index: 7, kind: input, shape index: {}]
  %s8 = inlined_call_operand.vmem [shape: bf16[32,32], index: 8, kind: input, shape index: {}]
  %s9 = inlined_call_operand.vmem [shape: f32[1,32], index: 9, kind: input, shape index: {}]
  %s10 = inlined_call_operand.hbm [shape: f32[2,8,32], index: 10, kind: output, shape index: {}]
  %s11 = sld [smem:[#allocation0]]
  $region93: #{tpu_custom_call.1} parent=0
    _
  %s13 = ssub.s32 1, %s11
  %s14 = scalar_select 0, %s13, %s11
  $region1: #{tpu_custom_call.1} parent=0
    #allocation5 [shape = 'u8[2048]{0}', space=smem, size = 0x800, scoped, tag = 'input window, operand 4, single buffered']
    #allocation6 [shape = 's32[2]{0}', space=sflag, size = 0x8, scoped, tag = 'scoped memory for tpu_custom_call.1']
    #allocation7 [shape = 's32[2]{0}', space=sflag, size = 0x8, scoped, tag = 'scoped memory for tpu_custom_call.1']
    #allocation8 [shape = 'u8[512]{0}', space=smem, size = 0x200, scoped, tag = 'input window, operand 5, single buffered']
    #allocation9 [shape = 's32[1]{0}', space=sflag, size = 0x4, scoped, tag = 'scoped memory for tpu_custom_call.1']
    #allocation10 [shape = 'u8[512]{0}', space=smem, size = 0x200, scoped, tag = 'input window, operand 6, single buffered']
    #allocation11 [shape = 'u8[512]{0}', space=smem, size = 0x200, scoped, tag = 'input window, operand 7, single buffered']
    #allocation12 [shape = 's32[1]{0}', space=sflag, size = 0x4, scoped, tag = 'scoped memory for tpu_custom_call.1']
    #allocation13 [shape = 'u8[8192]{0}', space=vmem, size = 0x2000, scoped, tag = 'output window, operand 0']
    %15 = vsyncpa [#allocation7], 0
    %16 = vsyncpa [#allocation9], 0
    %17 = vsyncpa [#allocation12], 0
    %18 = vsyncpa [#allocation6], 0
    %s19 = scalar_lea.sflag [#allocation6], 1
    %20 = vsyncpa %s19, 0
    loop: start=0, step=1, limit=4
    $region2: #{tpu_custom_call.1} parent=1 // loop_pre_header
      _
    $region3: #{tpu_custom_call.1} parent=1 // loop_header
      %s22 = sphi 0, %s26
      %p23 = scmp.ge.s32.totalorder %s22, 4
      %s29 = sphi 0, %s41
      %s30 = sphi 0, %s37
      %s31 = sphi 0, %s29
      %s32 = sphi 0, %s30
      %s33 = sphi 0, %s31
      %s34 = sphi 0, %s32
      %s44 = sphi 0, %s46
      %s47 = sphi 0, %s44
      %s48 = sphi 0, %s47
      %s64 = sphi 0, %s48
      %s68 = sphi 0, %s68
      %s70 = sphi 0, %s68
      %s71 = sphi 0, %s70
      %s85 = sphi 0, %s71
      %s89 = sphi 0, %s89
      %s91 = sphi 0, %s89
      %s92 = sphi 0, %s91
      %s106 = sphi 0, %s92
      %s110 = sphi 0, %s110
      %s112 = sphi 0, %s110
      %s113 = sphi 0, %s112
      %s127 = sphi 0, %s113
      %s131 = sphi 0, %s131
      %s133 = sphi 0, %s131
      %s134 = sphi 0, %s133
      %s148 = sphi 0, %s134
      %s152 = sphi 0, %s152
      %s154 = sphi 0, %s152
      %s155 = sphi 0, %s154
      %s169 = sphi 0, %s155
      %s173 = sphi 0, %s173
      %s175 = sphi 0, %s173
      %s176 = sphi 0, %s175
      %s190 = sphi 0, %s176
      %s194 = sphi 0, %s194
      %s196 = sphi 0, %s194
      %s197 = sphi 0, %s196
      %s211 = sphi 0, %s197
      %s215 = sphi 0, %s215
      %s217 = sphi 0, %s215
      %s218 = sphi 0, %s217
      %s232 = sphi 0, %s218
      %s236 = sphi 0, %s236
      %s238 = sphi 0, %s236
      %s239 = sphi 0, %s238
      %s253 = sphi 0, %s239
      %s261 = sphi 0, %s263
      %s264 = sphi 0, %s261
      %s265 = sphi 0, %s264
      %s281 = sphi 0, %s265
    $region4: #{tpu_custom_call.1} parent=1 // loop_header_branch
      %25 = sbr.rel (%p23) target = $region8
    $region5: #{tpu_custom_call.1} parent=1 // loop_body
      %s27 = ssub.s32 %s22, 1
      %s28 = ssub.s32 %s22, 2
      %s35 = sadd.s32 1, %s30
      %p36 = scmp.ge.s32.totalorder %s35, 1
      %s37 = scalar_select %p36, 0, %s35
      %s38 = sadd.s32 1, %s29
      %s39 = scalar_select %p36, %s38, %s29
      %p40 = scmp.ge.s32.totalorder %s39, 2
      %s41 = scalar_select %p40, 0, %s39
      %s42 = ssub.s32 %s29, %s41
      %p43 = scmp.eq.s32.totalorder %s42, 0
      %s45 = sadd.s32 %s44, 1
      %s46 = scalar_select %p43, %s44, %s45
      %p49 = pneg %p43
      %p50 = scmp.eq.s32.totalorder %s22, 1
      %p51 = por %p49, %p50
      %p52 = scmp.ne.s32.totalorder %s44, %s47
      %p53 = scmp.eq.s32.totalorder %s22, 0
      %p54 = por %p52, %p53
      %p55 = scmp.ne.s32.totalorder %s44, %s47
      %p56 = scmp.eq.s32.totalorder %s27, 1
      %p57 = por %p55, %p56
      %p58 = scmp.ne.s32.totalorder %s47, %s48
      %p59 = scmp.eq.s32.totalorder %s27, 0
      %p60 = por %p58, %p59
      %p61 = scmp.ne.s32.totalorder %s47, %s48
      %p62 = scmp.eq.s32.totalorder %s28, 1
      %p63 = por %p61, %p62
      %p65 = scmp.ne.s32.totalorder %s48, %s64
      %p66 = scmp.eq.s32.totalorder %s28, 0
      %p67 = por %p65, %p66
      %s69 = sadd.s32 %s68, 1
      %p72 = scmp.eq.s32.totalorder %s22, 1
      %p73 = scmp.ne.s32.totalorder %s68, %s70
      %p74 = scmp.eq.s32.totalorder %s22, 0
      %p75 = por %p73, %p74
      %p76 = scmp.ne.s32.totalorder %s68, %s70
      %p77 = scmp.eq.s32.totalorder %s27, 1
      %p78 = por %p76, %p77
      %p79 = scmp.ne.s32.totalorder %s70, %s71
      %p80 = scmp.eq.s32.totalorder %s27, 0
      %p81 = por %p79, %p80
      %p82 = scmp.ne.s32.totalorder %s70, %s71
      %p83 = scmp.eq.s32.totalorder %s28, 1
      %p84 = por %p82, %p83
      %p86 = scmp.ne.s32.totalorder %s71, %s85
      %p87 = scmp.eq.s32.totalorder %s28, 0
      %p88 = por %p86, %p87
      %s90 = sadd.s32 %s89, 1
      %p93 = scmp.eq.s32.totalorder %s22, 1
      %p94 = scmp.ne.s32.totalorder %s89, %s91
      %p95 = scmp.eq.s32.totalorder %s22, 0
      %p96 = por %p94, %p95
      %p97 = scmp.ne.s32.totalorder %s89, %s91
      %p98 = scmp.eq.s32.totalorder %s27, 1
      %p99 = por %p97, %p98
      %p100 = scmp.ne.s32.totalorder %s91, %s92
      %p101 = scmp.eq.s32.totalorder %s27, 0
      %p102 = por %p100, %p101
      %p103 = scmp.ne.s32.totalorder %s91, %s92
      %p104 = scmp.eq.s32.totalorder %s28, 1
      %p105 = por %p103, %p104
      %p107 = scmp.ne.s32.totalorder %s92, %s106
      %p108 = scmp.eq.s32.totalorder %s28, 0
      %p109 = por %p107, %p108
      %s111 = sadd.s32 %s110, 1
      %p114 = scmp.eq.s32.totalorder %s22, 1
      %p115 = scmp.ne.s32.totalorder %s110, %s112
      %p116 = scmp.eq.s32.totalorder %s22, 0
      %p117 = por %p115, %p116
      %p118 = scmp.ne.s32.totalorder %s110, %s112
      %p119 = scmp.eq.s32.totalorder %s27, 1
      %p120 = por %p118, %p119
      %p121 = scmp.ne.s32.totalorder %s112, %s113
      %p122 = scmp.eq.s32.totalorder %s27, 0
      %p123 = por %p121, %p122
      %p124 = scmp.ne.s32.totalorder %s112, %s113
      %p125 = scmp.eq.s32.totalorder %s28, 1
      %p126 = por %p124, %p125
      %p128 = scmp.ne.s32.totalorder %s113, %s127
      %p129 = scmp.eq.s32.totalorder %s28, 0
      %p130 = por %p128, %p129
      %s132 = sadd.s32 %s131, 1
      %p135 = scmp.eq.s32.totalorder %s22, 1
      %p136 = scmp.ne.s32.totalorder %s131, %s133
      %p137 = scmp.eq.s32.totalorder %s22, 0
      %p138 = por %p136, %p137
      %p139 = scmp.ne.s32.totalorder %s131, %s133
      %p140 = scmp.eq.s32.totalorder %s27, 1
      %p141 = por %p139, %p140
      %p142 = scmp.ne.s32.totalorder %s133, %s134
      %p143 = scmp.eq.s32.totalorder %s27, 0
      %p144 = por %p142, %p143
      %p145 = scmp.ne.s32.totalorder %s133, %s134
      %p146 = scmp.eq.s32.totalorder %s28, 1
      %p147 = por %p145, %p146
      %p149 = scmp.ne.s32.totalorder %s134, %s148
      %p150 = scmp.eq.s32.totalorder %s28, 0
      %p151 = por %p149, %p150
      %s153 = sadd.s32 %s152, 1
      %p156 = scmp.eq.s32.totalorder %s22, 1
      %p157 = scmp.ne.s32.totalorder %s152, %s154
      %p158 = scmp.eq.s32.totalorder %s22, 0
      %p159 = por %p157, %p158
      %p160 = scmp.ne.s32.totalorder %s152, %s154
      %p161 = scmp.eq.s32.totalorder %s27, 1
      %p162 = por %p160, %p161
      %p163 = scmp.ne.s32.totalorder %s154, %s155
      %p164 = scmp.eq.s32.totalorder %s27, 0
      %p165 = por %p163, %p164
      %p166 = scmp.ne.s32.totalorder %s154, %s155
      %p167 = scmp.eq.s32.totalorder %s28, 1
      %p168 = por %p166, %p167
      %p170 = scmp.ne.s32.totalorder %s155, %s169
      %p171 = scmp.eq.s32.totalorder %s28, 0
      %p172 = por %p170, %p171
      %s174 = sadd.s32 %s173, 1
      %p177 = scmp.eq.s32.totalorder %s22, 1
      %p178 = scmp.ne.s32.totalorder %s173, %s175
      %p179 = scmp.eq.s32.totalorder %s22, 0
      %p180 = por %p178, %p179
      %p181 = scmp.ne.s32.totalorder %s173, %s175
      %p182 = scmp.eq.s32.totalorder %s27, 1
      %p183 = por %p181, %p182
      %p184 = scmp.ne.s32.totalorder %s175, %s176
      %p185 = scmp.eq.s32.totalorder %s27, 0
      %p186 = por %p184, %p185
      %p187 = scmp.ne.s32.totalorder %s175, %s176
      %p188 = scmp.eq.s32.totalorder %s28, 1
      %p189 = por %p187, %p188
      %p191 = scmp.ne.s32.totalorder %s176, %s190
      %p192 = scmp.eq.s32.totalorder %s28, 0
      %p193 = por %p191, %p192
      %s195 = sadd.s32 %s194, 1
      %p198 = scmp.eq.s32.totalorder %s22, 1
      %p199 = scmp.ne.s32.totalorder %s194, %s196
      %p200 = scmp.eq.s32.totalorder %s22, 0
      %p201 = por %p199, %p200
      %p202 = scmp.ne.s32.totalorder %s194, %s196
      %p203 = scmp.eq.s32.totalorder %s27, 1
      %p204 = por %p202, %p203
      %p205 = scmp.ne.s32.totalorder %s196, %s197
      %p206 = scmp.eq.s32.totalorder %s27, 0
      %p207 = por %p205, %p206
      %p208 = scmp.ne.s32.totalorder %s196, %s197
      %p209 = scmp.eq.s32.totalorder %s28, 1
      %p210 = por %p208, %p209
      %p212 = scmp.ne.s32.totalorder %s197, %s211
      %p213 = scmp.eq.s32.totalorder %s28, 0
      %p214 = por %p212, %p213
      %s216 = sadd.s32 %s215, 1
      %p219 = scmp.eq.s32.totalorder %s22, 1
      %p220 = scmp.ne.s32.totalorder %s215, %s217
      %p221 = scmp.eq.s32.totalorder %s22, 0
      %p222 = por %p220, %p221
      %p223 = scmp.ne.s32.totalorder %s215, %s217
      %p224 = scmp.eq.s32.totalorder %s27, 1
      %p225 = por %p223, %p224
      %p226 = scmp.ne.s32.totalorder %s217, %s218
      %p227 = scmp.eq.s32.totalorder %s27, 0
      %p228 = por %p226, %p227
      %p229 = scmp.ne.s32.totalorder %s217, %s218
      %p230 = scmp.eq.s32.totalorder %s28, 1
      %p231 = por %p229, %p230
      %p233 = scmp.ne.s32.totalorder %s218, %s232
      %p234 = scmp.eq.s32.totalorder %s28, 0
      %p235 = por %p233, %p234
      %s237 = sadd.s32 %s236, 1
      %p240 = scmp.eq.s32.totalorder %s22, 1
      %p241 = scmp.ne.s32.totalorder %s236, %s238
      %p242 = scmp.eq.s32.totalorder %s22, 0
      %p243 = por %p241, %p242
      %p244 = scmp.ne.s32.totalorder %s236, %s238
      %p245 = scmp.eq.s32.totalorder %s27, 1
      %p246 = por %p244, %p245
      %p247 = scmp.ne.s32.totalorder %s238, %s239
      %p248 = scmp.eq.s32.totalorder %s27, 0
      %p249 = por %p247, %p248
      %p250 = scmp.ne.s32.totalorder %s238, %s239
      %p251 = scmp.eq.s32.totalorder %s28, 1
      %p252 = por %p250, %p251
      %p254 = scmp.ne.s32.totalorder %s239, %s253
      %p255 = scmp.eq.s32.totalorder %s28, 0
      %p256 = por %p254, %p255
      %s257 = ssub.s32 %s29, %s41
      %s258 = ssub.s32 %s30, %s37
      %s259 = sor.u32 %s257, %s258
      %p260 = scmp.eq.s32.totalorder %s259, 0
      %s262 = sadd.s32 %s261, 1
      %s263 = scalar_select %p260, %s261, %s262
      %p266 = pneg %p260
      %p267 = scmp.eq.s32.totalorder %s22, 1
      %p268 = por %p266, %p267
      %p269 = scmp.ne.s32.totalorder %s261, %s264
      %p270 = scmp.eq.s32.totalorder %s22, 0
      %p271 = por %p269, %p270
      %p272 = scmp.ne.s32.totalorder %s261, %s264
      %p273 = scmp.eq.s32.totalorder %s27, 1
      %p274 = por %p272, %p273
      %p275 = scmp.ne.s32.totalorder %s264, %s265
      %p276 = scmp.eq.s32.totalorder %s27, 0
      %p277 = por %p275, %p276
      %p278 = scmp.ne.s32.totalorder %s264, %s265
      %p279 = scmp.eq.s32.totalorder %s28, 1
      %p280 = por %p278, %p279
      %p282 = scmp.ne.s32.totalorder %s265, %s281
      %p283 = scmp.eq.s32.totalorder %s28, 0
      %p284 = por %p282, %p283
      %p285 = scmp.le.s32.totalorder 1, %s22
      %p286 = scmp.lt.s32.totalorder %s22, 3
      %p287 = pnand %p285, %p286
      %p288 = pneg %p287
      // Predicated region
      $region9: #{tpu_custom_call.1} parent=5 // pred_check
        _
      $region10: #{tpu_custom_call.1} parent=5 // pred_check_branch
        %290 = sbr.rel (%p287) target = $region12
      $region11: #{tpu_custom_call.1} parent=5 // pred_region
        %s291 = ssub.s32 %s22, 1
        // Predicated region
        $region13: #{tpu_custom_call.1} parent=11 // pred_check
          %p292 = pneg %p81
        $region14: #{tpu_custom_call.1} parent=11 // pred_check_branch
          %294 = sbr.rel (%p292) target = $region16
        $region15: #{tpu_custom_call.1} parent=11 // pred_region
          _
        $region16: #{tpu_custom_call.1} parent=11 // pred_fallthru
          _
        // Predicated region
        $region17: #{tpu_custom_call.1} parent=11 // pred_check
          %p295 = pneg %p102
        $region18: #{tpu_custom_call.1} parent=11 // pred_check_branch
          %297 = sbr.rel (%p295) target = $region20
        $region19: #{tpu_custom_call.1} parent=11 // pred_region
          _
        $region20: #{tpu_custom_call.1} parent=11 // pred_fallthru
          _
        // Predicated region
        $region21: #{tpu_custom_call.1} parent=11 // pred_check
          %p298 = pneg %p123
        $region22: #{tpu_custom_call.1} parent=11 // pred_check_branch
          %300 = sbr.rel (%p298) target = $region24
        $region23: #{tpu_custom_call.1} parent=11 // pred_region
          _
        $region24: #{tpu_custom_call.1} parent=11 // pred_fallthru
          _
        // Predicated region
        $region25: #{tpu_custom_call.1} parent=11 // pred_check
          %p301 = pneg %p144
        $region26: #{tpu_custom_call.1} parent=11 // pred_check_branch
          %303 = sbr.rel (%p301) target = $region28
        $region27: #{tpu_custom_call.1} parent=11 // pred_region
          %s305 = ssub.s32 64, 64
          %306 = vsyncadd [#allocation7], %s305
          %s308 = sshll.u32 %s4, 4
          %s309 = int_to_ptr.vmem [resolvable:$true] %s308
          %311 = dma.vmem_to_smem %s309, 64, [#allocation5], [#allocation7]
        $region28: #{tpu_custom_call.1} parent=11 // pred_fallthru
          _
        // Predicated region
        $region29: #{tpu_custom_call.1} parent=11 // pred_check
          %p312 = pneg %p165
        $region30: #{tpu_custom_call.1} parent=11 // pred_check_branch
          %314 = sbr.rel (%p312) target = $region32
        $region31: #{tpu_custom_call.1} parent=11 // pred_region
          %s316 = ssub.s32 16, 16
          %317 = vsyncadd [#allocation9], %s316
          %s319 = sshll.u32 %s5, 4
          %s320 = int_to_ptr.vmem [resolvable:$true] %s319
          %322 = dma.vmem_to_smem %s320, 16, [#allocation8], [#allocation9]
        $region32: #{tpu_custom_call.1} parent=11 // pred_fallthru
          _
        // Predicated region
        $region33: #{tpu_custom_call.1} parent=11 // pred_check
          %p323 = pneg %p186
        $region34: #{tpu_custom_call.1} parent=11 // pred_check_branch
          %325 = sbr.rel (%p323) target = $region36
        $region35: #{tpu_custom_call.1} parent=11 // pred_region
          %s327 = ssub.s32 16, 16
          %328 = vsyncadd [#allocation9], %s327
          %s330 = sshll.u32 %s6, 4
          %s331 = int_to_ptr.vmem [resolvable:$true] %s330
          %333 = dma.vmem_to_smem %s331, 16, [#allocation10], [#allocation9]
        $region36: #{tpu_custom_call.1} parent=11 // pred_fallthru
          _
        // Predicated region
        $region37: #{tpu_custom_call.1} parent=11 // pred_check
          %p334 = pneg %p207
        $region38: #{tpu_custom_call.1} parent=11 // pred_check_branch
          %336 = sbr.rel (%p334) target = $region40
        $region39: #{tpu_custom_call.1} parent=11 // pred_region
          %s338 = ssub.s32 16, 16
          %339 = vsyncadd [#allocation12], %s338
          %s341 = sshll.u32 %s7, 4
          %s342 = int_to_ptr.vmem [resolvable:$true] %s341
          %344 = dma.vmem_to_smem %s342, 16, [#allocation11], [#allocation12]
        $region40: #{tpu_custom_call.1} parent=11 // pred_fallthru
          _
        // Predicated region
        $region41: #{tpu_custom_call.1} parent=11 // pred_check
          %p345 = pneg %p228
        $region42: #{tpu_custom_call.1} parent=11 // pred_check_branch
          %347 = sbr.rel (%p345) target = $region44
        $region43: #{tpu_custom_call.1} parent=11 // pred_region
          _
        $region44: #{tpu_custom_call.1} parent=11 // pred_fallthru
          _
        // Predicated region
        $region45: #{tpu_custom_call.1} parent=11 // pred_check
          %p348 = pneg %p249
        $region46: #{tpu_custom_call.1} parent=11 // pred_check_branch
          %350 = sbr.rel (%p348) target = $region48
        $region47: #{tpu_custom_call.1} parent=11 // pred_region
          _
        $region48: #{tpu_custom_call.1} parent=11 // pred_fallthru
          _
      $region12: #{tpu_custom_call.1} parent=5 // pred_fallthru
        _
      %p351 = scmp.lt.s32.totalorder %s22, 2
      // Predicated region
      $region49: #{tpu_custom_call.1} parent=5 // pred_check
        %p352 = pneg %p351
      $region50: #{tpu_custom_call.1} parent=5 // pred_check_branch
        %354 = sbr.rel (%p352) target = $region52
      $region51: #{tpu_custom_call.1} parent=5 // pred_region
        // Predicated region
        $region53: #{tpu_custom_call.1} parent=51 // pred_check
          %p355 = pneg %p54
        $region54: #{tpu_custom_call.1} parent=51 // pred_check_branch
          %357 = sbr.rel (%p355) target = $region56
        $region55: #{tpu_custom_call.1} parent=51 // pred_region
          %p358 = scmp.lt.s32.totalorder %s29, 1
          %s359 = scalar_select %p358, %s29, 1
          %s360 = smul.addr %s359, 4
          %s361 = scalar_lea.vmem %s0, %s360
        $region56: #{tpu_custom_call.1} parent=51 // pred_fallthru
          _
      $region52: #{tpu_custom_call.1} parent=5 // pred_fallthru
        _
      %p362 = scmp.le.s32.totalorder 1, %s22
      %p363 = scmp.lt.s32.totalorder %s22, 3
      %p364 = pnand %p362, %p363
      %p365 = pneg %p364
      // Predicated region
      $region57: #{tpu_custom_call.1} parent=5 // pred_check
        _
      $region58: #{tpu_custom_call.1} parent=5 // pred_check_branch
        %367 = sbr.rel (%p364) target = $region60
      $region59: #{tpu_custom_call.1} parent=5 // pred_region
        %s368 = ssub.s32 %s22, 1
        // Predicated region
        $region61: #{tpu_custom_call.1} parent=59 // pred_check
          %p369 = pneg %p144
        $region62: #{tpu_custom_call.1} parent=59 // pred_check_branch
          %371 = sbr.rel (%p369) target = $region64
        $region63: #{tpu_custom_call.1} parent=59 // pred_region
          %372 = dma.done [#allocation7], 64
        $region64: #{tpu_custom_call.1} parent=59 // pred_fallthru
          _
        // Predicated region
        $region65: #{tpu_custom_call.1} parent=59 // pred_check
          %p373 = pneg %p165
        $region66: #{tpu_custom_call.1} parent=59 // pred_check_branch
          %375 = sbr.rel (%p373) target = $region68
        $region67: #{tpu_custom_call.1} parent=59 // pred_region
          %376 = dma.done [#allocation9], 16
        $region68: #{tpu_custom_call.1} parent=59 // pred_fallthru
          _
        // Predicated region
        $region69: #{tpu_custom_call.1} parent=59 // pred_check
          %p377 = pneg %p186
        $region70: #{tpu_custom_call.1} parent=59 // pred_check_branch
          %379 = sbr.rel (%p377) target = $region72
        $region71: #{tpu_custom_call.1} parent=59 // pred_region
          %380 = dma.done [#allocation9], 16
        $region72: #{tpu_custom_call.1} parent=59 // pred_fallthru
          _
        // Predicated region
        $region73: #{tpu_custom_call.1} parent=59 // pred_check
          %p381 = pneg %p207
        $region74: #{tpu_custom_call.1} parent=59 // pred_check_branch
          %383 = sbr.rel (%p381) target = $region76
        $region75: #{tpu_custom_call.1} parent=59 // pred_region
          %384 = dma.done [#allocation12], 16
        $region76: #{tpu_custom_call.1} parent=59 // pred_fallthru
          _
        %385 = sfence
        %p386 = scmp.lt.s32.totalorder %s31, 1
        %s387 = scalar_select %p386, %s31, 1
        %s388 = smul.addr %s387, 4
        %s389 = scalar_lea.vmem %s0, %s388
        %p390 = pneg %p60
        %p391 = pneg %p57
        %p392 = pneg %p81
        %p393 = pneg %p78
        %p394 = pneg %p102
        %p395 = pneg %p99
        %p396 = pneg %p123
        %p397 = pneg %p120
        %p398 = pneg %p144
        %p399 = pneg %p141
        %p400 = pneg %p165
        %p401 = pneg %p162
        %p402 = pneg %p186
        %p403 = pneg %p183
        %p404 = pneg %p207
        %p405 = pneg %p204
        %p406 = pneg %p228
        %p407 = pneg %p225
        %p408 = pneg %p249
        %p409 = pneg %p246
        %p410 = pneg %p277
        %p411 = pneg %p274
        %s412 = sand.u32 %s264, 1
        %s413 = scalar_lea.sflag [#allocation6], %s412
        %s414 = sand.u32 %s264, 1
        %s415 = smul.addr %s414, 8
        %s416 = scalar_lea.vmem [#allocation13], %s415
        %p417 = scmp.lt.s32.totalorder %s31, 1
        %s418 = scalar_select %p417, %s31, 1
        %s419 = smul.addr %s418, 4
        %s420 = scalar_lea.vmem %s0, %s419
        %p422 = scmp.eq.s32.totalorder %s32, 0
        // Predicated region
        $region77: #{tpu_custom_call.1} parent=59 // pred_check
          %p423 = pneg %p422
        $region78: #{tpu_custom_call.1} parent=59 // pred_check_branch
          %425 = sbr.rel (%p423) target = $region80
        $region79: #{tpu_custom_call.1} parent=59 // pred_region
          %v426 = vld [vmem:[%s420] sm:$0xf]
          %v427 = vld [vmem:[%s2] sm:$0xf]
          %v428 = vld [vmem:[%s2 + $0x4] sm:$0xf]
          %v429 = vld [vmem:[%s2 + $0x8] sm:$0xf]
          %v430 = vld [vmem:[%s2 + $0xc] sm:$0xf]
          %v435 = vunpack.c.l.b16 %v427
          %v436 = vunpack.c.l.b16 %v428
          %v437 = vunpack.c.l.b16 %v429
          %v438 = vunpack.c.l.b16 %v430
          %v439 = vpack.c.b16 %v436, %v435
          %v440 = vpack.c.b16 %v438, %v437
          %vm443 = vcmask 261120
          %v445 = vsel %vm443, %v426, 0
          %447 = vmatprep.subr.bf16.mxu0 0
          %448 = vmatpush1.bf16.msra.mxu0 %v439
          %449 = vmatprep.subr.bf16.mxu0 0
          %450 = vmatpush1.bf16.msra.mxu0 %v440
          %451 = vmatprep.subr.bf16.mxu0 0
          %452 = vmatpush1.bf16.msra.mxu0 0
          %453 = vmatprep.subr.bf16.mxu0 0
          %454 = vmatpush1.bf16.msra.mxu0 0
          %455 = vmatprep.subr.bf16.mxu0 0
          %456 = vmatpush1.bf16.msra.mxu0 0
          %457 = vmatprep.subr.bf16.mxu0 0
          %458 = vmatpush1.bf16.msra.mxu0 0
          %459 = vmatprep.subr.bf16.mxu0 0
          %460 = vmatpush1.bf16.msra.mxu0 0
          %461 = vmatprep.subr.bf16.mxu0 0
          %462 = vmatpush1.bf16.msra.mxu0 0
          %463 = vmatprep.subr.bf16.mxu0 0
          %464 = vmatpush1.bf16.msra.mxu0 0
          %465 = vmatprep.subr.bf16.mxu0 0
          %466 = vmatpush1.bf16.msra.mxu0 0
          %467 = vmatprep.subr.bf16.mxu0 0
          %468 = vmatpush1.bf16.msra.mxu0 0
          %469 = vmatprep.subr.bf16.mxu0 0
          %470 = vmatpush1.bf16.msra.mxu0 0
          %471 = vmatprep.subr.bf16.mxu0 0
          %472 = vmatpush1.bf16.msra.mxu0 0
          %473 = vmatprep.subr.bf16.mxu0 0
          %474 = vmatpush1.bf16.msra.mxu0 0
          %475 = vmatprep.subr.bf16.mxu0 0
          %476 = vmatpush1.bf16.msra.mxu0 0
          %477 = vmatprep.subr.bf16.mxu0 0
          %478 = vmatpush1.bf16.msra.mxu0 0
          %479 = vmatprep.mubr.bf16.mxu0 0
          %480 = vmatmul.mubr.bf16.gmra.mrb[0].mxu0 %v445
          %v481 = vpop.f32.mrb[0].mxu0
          %v482 = vadd.f32 0.0, %v481
          %v483 = vpop.f32.mrb[0].mxu0
          %v484 = vpop.f32.mrb[0].mxu0
          %v485 = vpop.f32.mrb[0].mxu0
          %486 = vdwg.mxu0
          %v487 = vld [vmem:[%s3] sm:$0xf]
          %v488 = vld [vmem:[%s3 + $0x4] sm:$0xf]
          %v489 = vld [vmem:[%s3 + $0x8] sm:$0xf]
          %v490 = vld [vmem:[%s3 + $0xc] sm:$0xf]
          %v495 = vunpack.c.l.b16 %v487
          %v496 = vunpack.c.l.b16 %v488
          %v497 = vunpack.c.l.b16 %v489
          %v498 = vunpack.c.l.b16 %v490
          %v499 = vpack.c.b16 %v496, %v495
          %v500 = vpack.c.b16 %v498, %v497
          %503 = vmatprep.subr.bf16.mxu0 0
          %504 = vmatpush1.bf16.msra.mxu0 %v499
          %505 = vmatprep.subr.bf16.mxu0 0
          %506 = vmatpush1.bf16.msra.mxu0 %v500
          %507 = vmatprep.subr.bf16.mxu0 0
          %508 = vmatpush1.bf16.msra.mxu0 0
          %509 = vmatprep.subr.bf16.mxu0 0
          %510 = vmatpush1.bf16.msra.mxu0 0
          %511 = vmatprep.subr.bf16.mxu0 0
          %512 = vmatpush1.bf16.msra.mxu0 0
          %513 = vmatprep.subr.bf16.mxu0 0
          %514 = vmatpush1.bf16.msra.mxu0 0
          %515 = vmatprep.subr.bf16.mxu0 0
          %516 = vmatpush1.bf16.msra.mxu0 0
          %517 = vmatprep.subr.bf16.mxu0 0
          %518 = vmatpush1.bf16.msra.mxu0 0
          %519 = vmatprep.subr.bf16.mxu0 0
          %520 = vmatpush1.bf16.msra.mxu0 0
          %521 = vmatprep.subr.bf16.mxu0 0
          %522 = vmatpush1.bf16.msra.mxu0 0
          %523 = vmatprep.subr.bf16.mxu0 0
          %524 = vmatpush1.bf16.msra.mxu0 0
          %525 = vmatprep.subr.bf16.mxu0 0
          %526 = vmatpush1.bf16.msra.mxu0 0
          %527 = vmatprep.subr.bf16.mxu0 0
          %528 = vmatpush1.bf16.msra.mxu0 0
          %529 = vmatprep.subr.bf16.mxu0 0
          %530 = vmatpush1.bf16.msra.mxu0 0
          %531 = vmatprep.subr.bf16.mxu0 0
          %532 = vmatpush1.bf16.msra.mxu0 0
          %533 = vmatprep.subr.bf16.mxu0 0
          %534 = vmatpush1.bf16.msra.mxu0 0
          %535 = vmatprep.mubr.bf16.mxu0 0
          %536 = vmatmul.mubr.bf16.gmra.mrb[0].mxu0 %v445
          %v537 = vpop.f32.mrb[0].mxu0
          %v538 = vadd.f32 0.0, %v537
          %v539 = vpop.f32.mrb[0].mxu0
          %v540 = vpop.f32.mrb[0].mxu0
          %v541 = vpop.f32.mrb[0].mxu0
          %542 = vdwg.mxu0
          %v543 = vpack.c.bf16 %v482, %v482
          %vm544 = vcmask 60416
          %545 = vst.msk [vmem:[#allocation2] sm:$0xf] %vm544, %v543
          %v546 = vpack.c.bf16 %v538, %v538
          %547 = vst.msk [vmem:[#allocation3] sm:$0xf] %vm544, %v546
          %s548 = scalar_lea.vmem %s2, 16
          %v549 = vld [vmem:[%s548] sm:$0xf]
          %v550 = vld [vmem:[%s548 + $0x4] sm:$0xf]
          %v551 = vld [vmem:[%s548 + $0x8] sm:$0xf]
          %v552 = vld [vmem:[%s548 + $0xc] sm:$0xf]
          %v557 = vunpack.c.l.b16 %v549
          %v558 = vunpack.c.l.b16 %v550
          %v559 = vunpack.c.l.b16 %v551
          %v560 = vunpack.c.l.b16 %v552
          %v561 = vpack.c.b16 %v558, %v557
          %v562 = vpack.c.b16 %v560, %v559
          %565 = vmatprep.subr.bf16.mxu0 0
          %566 = vmatpush1.bf16.msra.mxu0 %v561
          %567 = vmatprep.subr.bf16.mxu0 0
          %568 = vmatpush1.bf16.msra.mxu0 %v562
          %569 = vmatprep.subr.bf16.mxu0 0
          %570 = vmatpush1.bf16.msra.mxu0 0
          %571 = vmatprep.subr.bf16.mxu0 0
          %572 = vmatpush1.bf16.msra.mxu0 0
          %573 = vmatprep.subr.bf16.mxu0 0
          %574 = vmatpush1.bf16.msra.mxu0 0
          %575 = vmatprep.subr.bf16.mxu0 0
          %576 = vmatpush1.bf16.msra.mxu0 0
          %577 = vmatprep.subr.bf16.mxu0 0
          %578 = vmatpush1.bf16.msra.mxu0 0
          %579 = vmatprep.subr.bf16.mxu0 0
          %580 = vmatpush1.bf16.msra.mxu0 0
          %581 = vmatprep.subr.bf16.mxu0 0
          %582 = vmatpush1.bf16.msra.mxu0 0
          %583 = vmatprep.subr.bf16.mxu0 0
          %584 = vmatpush1.bf16.msra.mxu0 0
          %585 = vmatprep.subr.bf16.mxu0 0
          %586 = vmatpush1.bf16.msra.mxu0 0
          %587 = vmatprep.subr.bf16.mxu0 0
          %588 = vmatpush1.bf16.msra.mxu0 0
          %589 = vmatprep.subr.bf16.mxu0 0
          %590 = vmatpush1.bf16.msra.mxu0 0
          %591 = vmatprep.subr.bf16.mxu0 0
          %592 = vmatpush1.bf16.msra.mxu0 0
          %593 = vmatprep.subr.bf16.mxu0 0
          %594 = vmatpush1.bf16.msra.mxu0 0
          %595 = vmatprep.subr.bf16.mxu0 0
          %596 = vmatpush1.bf16.msra.mxu0 0
          %597 = vmatprep.mubr.bf16.mxu0 0
          %598 = vmatmul.mubr.bf16.gmra.mrb[0].mxu0 %v445
          %v599 = vpop.f32.mrb[0].mxu0
          %v600 = vadd.f32 0.0, %v599
          %v601 = vpop.f32.mrb[0].mxu0
          %v602 = vpop.f32.mrb[0].mxu0
          %v603 = vpop.f32.mrb[0].mxu0
          %604 = vdwg.mxu0
          %s605 = scalar_lea.vmem %s3, 16
          %v606 = vld [vmem:[%s605] sm:$0xf]
          %v607 = vld [vmem:[%s605 + $0x4] sm:$0xf]
          %v608 = vld [vmem:[%s605 + $0x8] sm:$0xf]
          %v609 = vld [vmem:[%s605 + $0xc] sm:$0xf]
          %v614 = vunpack.c.l.b16 %v606
          %v615 = vunpack.c.l.b16 %v607
          %v616 = vunpack.c.l.b16 %v608
          %v617 = vunpack.c.l.b16 %v609
          %v618 = vpack.c.b16 %v615, %v614
          %v619 = vpack.c.b16 %v617, %v616
          %622 = vmatprep.subr.bf16.mxu0 0
          %623 = vmatpush1.bf16.msra.mxu0 %v618
          %624 = vmatprep.subr.bf16.mxu0 0
          %625 = vmatpush1.bf16.msra.mxu0 %v619
          %626 = vmatprep.subr.bf16.mxu0 0
          %627 = vmatpush1.bf16.msra.mxu0 0
          %628 = vmatprep.subr.bf16.mxu0 0
          %629 = vmatpush1.bf16.msra.mxu0 0
          %630 = vmatprep.subr.bf16.mxu0 0
          %631 = vmatpush1.bf16.msra.mxu0 0
          %632 = vmatprep.subr.bf16.mxu0 0
          %633 = vmatpush1.bf16.msra.mxu0 0
          %634 = vmatprep.subr.bf16.mxu0 0
          %635 = vmatpush1.bf16.msra.mxu0 0
          %636 = vmatprep.subr.bf16.mxu0 0
          %637 = vmatpush1.bf16.msra.mxu0 0
          %638 = vmatprep.subr.bf16.mxu0 0
          %639 = vmatpush1.bf16.msra.mxu0 0
          %640 = vmatprep.subr.bf16.mxu0 0
          %641 = vmatpush1.bf16.msra.mxu0 0
          %642 = vmatprep.subr.bf16.mxu0 0
          %643 = vmatpush1.bf16.msra.mxu0 0
          %644 = vmatprep.subr.bf16.mxu0 0
          %645 = vmatpush1.bf16.msra.mxu0 0
          %646 = vmatprep.subr.bf16.mxu0 0
          %647 = vmatpush1.bf16.msra.mxu0 0
          %648 = vmatprep.subr.bf16.mxu0 0
          %649 = vmatpush1.bf16.msra.mxu0 0
          %650 = vmatprep.subr.bf16.mxu0 0
          %651 = vmatpush1.bf16.msra.mxu0 0
          %652 = vmatprep.subr.bf16.mxu0 0
          %653 = vmatpush1.bf16.msra.mxu0 0
          %654 = vmatprep.mubr.bf16.mxu0 0
          %655 = vmatmul.mubr.bf16.gmra.mrb[0].mxu0 %v445
          %v656 = vpop.f32.mrb[0].mxu0
          %v657 = vadd.f32 0.0, %v656
          %v658 = vpop.f32.mrb[0].mxu0
          %v659 = vpop.f32.mrb[0].mxu0
          %v660 = vpop.f32.mrb[0].mxu0
          %661 = vdwg.mxu0
          %v662 = vpack.c.bf16 %v600, %v600
          %s663 = scalar_lea.vmem [#allocation2], 4
          %664 = vst.msk [vmem:[%s663] sm:$0xf] %vm544, %v662
          %v665 = vpack.c.bf16 %v657, %v657
          %s666 = scalar_lea.vmem [#allocation3], 4
          %667 = vst.msk [vmem:[%s666] sm:$0xf] %vm544, %v665
          %s668 = scalar_lea.vmem %s2, 32
          %v669 = vld [vmem:[%s668] sm:$0xf]
          %v670 = vld [vmem:[%s668 + $0x4] sm:$0xf]
          %v671 = vld [vmem:[%s668 + $0x8] sm:$0xf]
          %v672 = vld [vmem:[%s668 + $0xc] sm:$0xf]
          %v677 = vunpack.c.l.b16 %v669
          %v678 = vunpack.c.l.b16 %v670
          %v679 = vunpack.c.l.b16 %v671
          %v680 = vunpack.c.l.b16 %v672
          %v681 = vpack.c.b16 %v678, %v677
          %v682 = vpack.c.b16 %v680, %v679
          %685 = vmatprep.subr.bf16.mxu0 0
          %686 = vmatpush1.bf16.msra.mxu0 %v681
          %687 = vmatprep.subr.bf16.mxu0 0
          %688 = vmatpush1.bf16.msra.mxu0 %v682
          %689 = vmatprep.subr.bf16.mxu0 0
          %690 = vmatpush1.bf16.msra.mxu0 0
          %691 = vmatprep.subr.bf16.mxu0 0
          %692 = vmatpush1.bf16.msra.mxu0 0
          %693 = vmatprep.subr.bf16.mxu0 0
          %694 = vmatpush1.bf16.msra.mxu0 0
          %695 = vmatprep.subr.bf16.mxu0 0
          %696 = vmatpush1.bf16.msra.mxu0 0
          %697 = vmatprep.subr.bf16.mxu0 0
          %698 = vmatpush1.bf16.msra.mxu0 0
          %699 = vmatprep.subr.bf16.mxu0 0
          %700 = vmatpush1.bf16.msra.mxu0 0
          %701 = vmatprep.subr.bf16.mxu0 0
          %702 = vmatpush1.bf16.msra.mxu0 0
          %703 = vmatprep.subr.bf16.mxu0 0
          %704 = vmatpush1.bf16.msra.mxu0 0
          %705 = vmatprep.subr.bf16.mxu0 0
          %706 = vmatpush1.bf16.msra.mxu0 0
          %707 = vmatprep.subr.bf16.mxu0 0
          %708 = vmatpush1.bf16.msra.mxu0 0
          %709 = vmatprep.subr.bf16.mxu0 0
          %710 = vmatpush1.bf16.msra.mxu0 0
          %711 = vmatprep.subr.bf16.mxu0 0
          %712 = vmatpush1.bf16.msra.mxu0 0
          %713 = vmatprep.subr.bf16.mxu0 0
          %714 = vmatpush1.bf16.msra.mxu0 0
          %715 = vmatprep.subr.bf16.mxu0 0
          %716 = vmatpush1.bf16.msra.mxu0 0
          %717 = vmatprep.mubr.bf16.mxu0 0
          %718 = vmatmul.mubr.bf16.gmra.mrb[0].mxu0 %v445
          %v719 = vpop.f32.mrb[0].mxu0
          %v720 = vadd.f32 0.0, %v719
          %v721 = vpop.f32.mrb[0].mxu0
          %v722 = vpop.f32.mrb[0].mxu0
          %v723 = vpop.f32.mrb[0].mxu0
          %724 = vdwg.mxu0
          %s725 = scalar_lea.vmem %s3, 32
          %v726 = vld [vmem:[%s725] sm:$0xf]
          %v727 = vld [vmem:[%s725 + $0x4] sm:$0xf]
          %v728 = vld [vmem:[%s725 + $0x8] sm:$0xf]
          %v729 = vld [vmem:[%s725 + $0xc] sm:$0xf]
          %v734 = vunpack.c.l.b16 %v726
          %v735 = vunpack.c.l.b16 %v727
          %v736 = vunpack.c.l.b16 %v728
          %v737 = vunpack.c.l.b16 %v729
          %v738 = vpack.c.b16 %v735, %v734
          %v739 = vpack.c.b16 %v737, %v736
          %742 = vmatprep.subr.bf16.mxu0 0
          %743 = vmatpush1.bf16.msra.mxu0 %v738
          %744 = vmatprep.subr.bf16.mxu0 0
          %745 = vmatpush1.bf16.msra.mxu0 %v739
          %746 = vmatprep.subr.bf16.mxu0 0
          %747 = vmatpush1.bf16.msra.mxu0 0
          %748 = vmatprep.subr.bf16.mxu0 0
          %749 = vmatpush1.bf16.msra.mxu0 0
          %750 = vmatprep.subr.bf16.mxu0 0
          %751 = vmatpush1.bf16.msra.mxu0 0
          %752 = vmatprep.subr.bf16.mxu0 0
          %753 = vmatpush1.bf16.msra.mxu0 0
          %754 = vmatprep.subr.bf16.mxu0 0
          %755 = vmatpush1.bf16.msra.mxu0 0
          %756 = vmatprep.subr.bf16.mxu0 0
          %757 = vmatpush1.bf16.msra.mxu0 0
          %758 = vmatprep.subr.bf16.mxu0 0
          %759 = vmatpush1.bf16.msra.mxu0 0
          %760 = vmatprep.subr.bf16.mxu0 0
          %761 = vmatpush1.bf16.msra.mxu0 0
          %762 = vmatprep.subr.bf16.mxu0 0
          %763 = vmatpush1.bf16.msra.mxu0 0
          %764 = vmatprep.subr.bf16.mxu0 0
          %765 = vmatpush1.bf16.msra.mxu0 0
          %766 = vmatprep.subr.bf16.mxu0 0
          %767 = vmatpush1.bf16.msra.mxu0 0
          %768 = vmatprep.subr.bf16.mxu0 0
          %769 = vmatpush1.bf16.msra.mxu0 0
          %770 = vmatprep.subr.bf16.mxu0 0
          %771 = vmatpush1.bf16.msra.mxu0 0
          %772 = vmatprep.subr.bf16.mxu0 0
          %773 = vmatpush1.bf16.msra.mxu0 0
          %774 = vmatprep.mubr.bf16.mxu0 0
          %775 = vmatmul.mubr.bf16.gmra.mrb[0].mxu0 %v445
          %v776 = vpop.f32.mrb[0].mxu0
          %v777 = vadd.f32 0.0, %v776
          %v778 = vpop.f32.mrb[0].mxu0
          %v779 = vpop.f32.mrb[0].mxu0
          %v780 = vpop.f32.mrb[0].mxu0
          %781 = vdwg.mxu0
          %v782 = vpack.c.bf16 %v720, %v720
          %s783 = scalar_lea.vmem [#allocation2], 8
          %784 = vst.msk [vmem:[%s783] sm:$0xf] %vm544, %v782
          %v785 = vpack.c.bf16 %v777, %v777
          %s786 = scalar_lea.vmem [#allocation3], 8
          %787 = vst.msk [vmem:[%s786] sm:$0xf] %vm544, %v785
          %s788 = scalar_lea.vmem %s2, 48
          %v789 = vld [vmem:[%s788] sm:$0xf]
          %v790 = vld [vmem:[%s788 + $0x4] sm:$0xf]
          %v791 = vld [vmem:[%s788 + $0x8] sm:$0xf]
          %v792 = vld [vmem:[%s788 + $0xc] sm:$0xf]
          %v797 = vunpack.c.l.b16 %v789
          %v798 = vunpack.c.l.b16 %v790
          %v799 = vunpack.c.l.b16 %v791
          %v800 = vunpack.c.l.b16 %v792
          %v801 = vpack.c.b16 %v798, %v797
          %v802 = vpack.c.b16 %v800, %v799
          %805 = vmatprep.subr.bf16.mxu0 0
          %806 = vmatpush1.bf16.msra.mxu0 %v801
          %807 = vmatprep.subr.bf16.mxu0 0
          %808 = vmatpush1.bf16.msra.mxu0 %v802
          %809 = vmatprep.subr.bf16.mxu0 0
          %810 = vmatpush1.bf16.msra.mxu0 0
          %811 = vmatprep.subr.bf16.mxu0 0
          %812 = vmatpush1.bf16.msra.mxu0 0
          %813 = vmatprep.subr.bf16.mxu0 0
          %814 = vmatpush1.bf16.msra.mxu0 0
          %815 = vmatprep.subr.bf16.mxu0 0
          %816 = vmatpush1.bf16.msra.mxu0 0
          %817 = vmatprep.subr.bf16.mxu0 0
          %818 = vmatpush1.bf16.msra.mxu0 0
          %819 = vmatprep.subr.bf16.mxu0 0
          %820 = vmatpush1.bf16.msra.mxu0 0
          %821 = vmatprep.subr.bf16.mxu0 0
          %822 = vmatpush1.bf16.msra.mxu0 0
          %823 = vmatprep.subr.bf16.mxu0 0
          %824 = vmatpush1.bf16.msra.mxu0 0
          %825 = vmatprep.subr.bf16.mxu0 0
          %826 = vmatpush1.bf16.msra.mxu0 0
          %827 = vmatprep.subr.bf16.mxu0 0
          %828 = vmatpush1.bf16.msra.mxu0 0
          %829 = vmatprep.subr.bf16.mxu0 0
          %830 = vmatpush1.bf16.msra.mxu0 0
          %831 = vmatprep.subr.bf16.mxu0 0
          %832 = vmatpush1.bf16.msra.mxu0 0
          %833 = vmatprep.subr.bf16.mxu0 0
          %834 = vmatpush1.bf16.msra.mxu0 0
          %835 = vmatprep.subr.bf16.mxu0 0
          %836 = vmatpush1.bf16.msra.mxu0 0
          %837 = vmatprep.mubr.bf16.mxu0 0
          %838 = vmatmul.mubr.bf16.gmra.mrb[0].mxu0 %v445
          %v839 = vpop.f32.mrb[0].mxu0
          %v840 = vadd.f32 0.0, %v839
          %v841 = vpop.f32.mrb[0].mxu0
          %v842 = vpop.f32.mrb[0].mxu0
          %v843 = vpop.f32.mrb[0].mxu0
          %844 = vdwg.mxu0
          %s845 = scalar_lea.vmem %s3, 48
          %v846 = vld [vmem:[%s845] sm:$0xf]
          %v847 = vld [vmem:[%s845 + $0x4] sm:$0xf]
          %v848 = vld [vmem:[%s845 + $0x8] sm:$0xf]
          %v849 = vld [vmem:[%s845 + $0xc] sm:$0xf]
          %v854 = vunpack.c.l.b16 %v846
          %v855 = vunpack.c.l.b16 %v847
          %v856 = vunpack.c.l.b16 %v848
          %v857 = vunpack.c.l.b16 %v849
          %v858 = vpack.c.b16 %v855, %v854
          %v859 = vpack.c.b16 %v857, %v856
          %862 = vmatprep.subr.bf16.mxu0 0
          %863 = vmatpush1.bf16.msra.mxu0 %v858
          %864 = vmatprep.subr.bf16.mxu0 0
          %865 = vmatpush1.bf16.msra.mxu0 %v859
          %866 = vmatprep.subr.bf16.mxu0 0
          %867 = vmatpush1.bf16.msra.mxu0 0
          %868 = vmatprep.subr.bf16.mxu0 0
          %869 = vmatpush1.bf16.msra.mxu0 0
          %870 = vmatprep.subr.bf16.mxu0 0
          %871 = vmatpush1.bf16.msra.mxu0 0
          %872 = vmatprep.subr.bf16.mxu0 0
          %873 = vmatpush1.bf16.msra.mxu0 0
          %874 = vmatprep.subr.bf16.mxu0 0
          %875 = vmatpush1.bf16.msra.mxu0 0
          %876 = vmatprep.subr.bf16.mxu0 0
          %877 = vmatpush1.bf16.msra.mxu0 0
          %878 = vmatprep.subr.bf16.mxu0 0
          %879 = vmatpush1.bf16.msra.mxu0 0
          %880 = vmatprep.subr.bf16.mxu0 0
          %881 = vmatpush1.bf16.msra.mxu0 0
          %882 = vmatprep.subr.bf16.mxu0 0
          %883 = vmatpush1.bf16.msra.mxu0 0
          %884 = vmatprep.subr.bf16.mxu0 0
          %885 = vmatpush1.bf16.msra.mxu0 0
          %886 = vmatprep.subr.bf16.mxu0 0
          %887 = vmatpush1.bf16.msra.mxu0 0
          %888 = vmatprep.subr.bf16.mxu0 0
          %889 = vmatpush1.bf16.msra.mxu0 0
          %890 = vmatprep.subr.bf16.mxu0 0
          %891 = vmatpush1.bf16.msra.mxu0 0
          %892 = vmatprep.subr.bf16.mxu0 0
          %893 = vmatpush1.bf16.msra.mxu0 0
          %894 = vmatprep.mubr.bf16.mxu0 0
          %895 = vmatmul.mubr.bf16.gmra.mrb[0].mxu0 %v445
          %v896 = vpop.f32.mrb[0].mxu0
          %v897 = vadd.f32 0.0, %v896
          %v898 = vpop.f32.mrb[0].mxu0
          %v899 = vpop.f32.mrb[0].mxu0
          %v900 = vpop.f32.mrb[0].mxu0
          %901 = vdwg.mxu0
          %v902 = vpack.c.bf16 %v840, %v840
          %s903 = scalar_lea.vmem [#allocation2], 12
          %904 = vst.msk [vmem:[%s903] sm:$0xf] %vm544, %v902
          %v905 = vpack.c.bf16 %v897, %v897
          %s906 = scalar_lea.vmem [#allocation3], 12
          %907 = vst.msk [vmem:[%s906] sm:$0xf] %vm544, %v905
        $region80: #{tpu_custom_call.1} parent=59 // pred_fallthru
          _
        %s908 = smul.u32 %s32, 8
        %s909 = sshra.s32 %s908, 3
        %s910 = sand.u32 %s908, 7
        %s911 = smul.addr %s909, 4
        %s912 = scalar_lea.vmem %s420, %s911
        %v913 = vld [vmem:[%s912] sm:$0xf]
        %v914 = vld [vmem:[%s1] sm:$0xf]
        %v915 = vld [vmem:[%s1 + $0x4] sm:$0xf]
        %v916 = vld [vmem:[%s1 + $0x8] sm:$0xf]
        %v917 = vld [vmem:[%s1 + $0xc] sm:$0xf]
        %v922 = vunpack.c.l.b16 %v914
        %v923 = vunpack.c.l.b16 %v915
        %v924 = vunpack.c.l.b16 %v916
        %v925 = vunpack.c.l.b16 %v917
        %v926 = vpack.c.b16 %v923, %v922
        %v927 = vpack.c.b16 %v925, %v924
        %vm930 = vcmask 261120
        %v932 = vsel %vm930, %v913, 0
        %934 = vmatprep.subr.bf16.mxu0 0
        %935 = vmatpush1.bf16.msra.mxu0 %v926
        %936 = vmatprep.subr.bf16.mxu0 0
        %937 = vmatpush1.bf16.msra.mxu0 %v927
        %938 = vmatprep.subr.bf16.mxu0 0
        %939 = vmatpush1.bf16.msra.mxu0 0
        %940 = vmatprep.subr.bf16.mxu0 0
        %941 = vmatpush1.bf16.msra.mxu0 0
        %942 = vmatprep.subr.bf16.mxu0 0
        %943 = vmatpush1.bf16.msra.mxu0 0
        %944 = vmatprep.subr.bf16.mxu0 0
        %945 = vmatpush1.bf16.msra.mxu0 0
        %946 = vmatprep.subr.bf16.mxu0 0
        %947 = vmatpush1.bf16.msra.mxu0 0
        %948 = vmatprep.subr.bf16.mxu0 0
        %949 = vmatpush1.bf16.msra.mxu0 0
        %950 = vmatprep.subr.bf16.mxu0 0
        %951 = vmatpush1.bf16.msra.mxu0 0
        %952 = vmatprep.subr.bf16.mxu0 0
        %953 = vmatpush1.bf16.msra.mxu0 0
        %954 = vmatprep.subr.bf16.mxu0 0
        %955 = vmatpush1.bf16.msra.mxu0 0
        %956 = vmatprep.subr.bf16.mxu0 0
        %957 = vmatpush1.bf16.msra.mxu0 0
        %958 = vmatprep.subr.bf16.mxu0 0
        %959 = vmatpush1.bf16.msra.mxu0 0
        %960 = vmatprep.subr.bf16.mxu0 0
        %961 = vmatpush1.bf16.msra.mxu0 0
        %962 = vmatprep.subr.bf16.mxu0 0
        %963 = vmatpush1.bf16.msra.mxu0 0
        %964 = vmatprep.subr.bf16.mxu0 0
        %965 = vmatpush1.bf16.msra.mxu0 0
        %966 = vmatprep.mubr.bf16.mxu0 0
        %967 = vmatmul.mubr.bf16.gmra.mrb[0].mxu0 %v932
        %v968 = vpop.f32.mrb[0].mxu0
        %v969 = vadd.f32 0.0, %v968
        %v970 = vpop.f32.mrb[0].mxu0
        %v971 = vpop.f32.mrb[0].mxu0
        %v972 = vpop.f32.mrb[0].mxu0
        %973 = vdwg.mxu0
        %v974 = vpack.c.bf16 %v969, %v969
        %v975 = vld [vmem:[#allocation2] sm:$0xf]
        %vm976 = vcmask 64512
        %v978 = vsel %vm976, %v974, 0
        %v981 = vsel %vm976, %v975, 0
        %983 = vmatprep.subr.bf16.mxu0 0
        %984 = vmatpush1.bf16.xpose.msra.mxu0 %v981
        %985 = vmatprep.subr.bf16.mxu0 0
        %986 = vmatpush1.bf16.xpose.msra.mxu0 0
        %987 = vmatprep.subr.bf16.mxu0 0
        %988 = vmatpush1.bf16.xpose.msra.mxu0 0
        %989 = vmatprep.subr.bf16.mxu0 0
        %990 = vmatpush1.bf16.xpose.msra.mxu0 0
        %991 = vmatprep.subr.bf16.mxu0 0
        %992 = vmatpush1.bf16.xpose.msra.mxu0 0
        %993 = vmatprep.subr.bf16.mxu0 0
        %994 = vmatpush1.bf16.xpose.msra.mxu0 0
        %995 = vmatprep.subr.bf16.mxu0 0
        %996 = vmatpush1.bf16.xpose.msra.mxu0 0
        %997 = vmatprep.subr.bf16.mxu0 0
        %998 = vmatpush1.bf16.xpose.msra.mxu0 0
        %999 = vmatprep.subr.bf16.mxu0 0
        %1000 = vmatpush1.bf16.xpose.msra.mxu0 0
        %1001 = vmatprep.subr.bf16.mxu0 0
        %1002 = vmatpush1.bf16.xpose.msra.mxu0 0
        %1003 = vmatprep.subr.bf16.mxu0 0
        %1004 = vmatpush1.bf16.xpose.msra.mxu0 0
        %1005 = vmatprep.subr.bf16.mxu0 0
        %1006 = vmatpush1.bf16.xpose.msra.mxu0 0
        %1007 = vmatprep.subr.bf16.mxu0 0
        %1008 = vmatpush1.bf16.xpose.msra.mxu0 0
        %1009 = vmatprep.subr.bf16.mxu0 0
        %1010 = vmatpush1.bf16.xpose.msra.mxu0 0
        %1011 = vmatprep.subr.bf16.mxu0 0
        %1012 = vmatpush1.bf16.xpose.msra.mxu0 0
        %1013 = vmatprep.subr.bf16.mxu0 0
        %1014 = vmatpush1.bf16.xpose.msra.mxu0 0
        %1015 = vmatprep.mubr.bf16.mxu0 0
        %1016 = vmatmul.mubr.bf16.gmra.mrb[0].mxu0 %v978
        %v1017 = vpop.f32.mrb[0].mxu0
        %v1018 = vadd.f32 0.0, %v1017
        %v1019 = vpop.f32.mrb[0].mxu0
        %v1020 = vpop.f32.mrb[0].mxu0
        %v1021 = vpop.f32.mrb[0].mxu0
        %1022 = vdwg.mxu0
        %v1023 = vsel %vm976, %v1018, -inf
        %1024 = vmax.xlane.f32.xlu0 %v1023
        %v1025 = vpop.xlane.xlu0 %1024
        %v1026 = vsub.f32 %v1018, %v1025
        %v1027 = vmul.f32 %v1026, 1.442695
        %v1028 = vpow.pop %v1027
        %v1029 = vsel %vm976, %v1028, 0.0
        %1030 = vadd.xlane.f32.xlu0 %v1029
        %v1031 = vpop.xlane.xlu0 %1030
        %v1032 = vrcp.pop %v1031
        %v1033 = vmul.f32 %v1028, %v1032
        %s1034 = sld [smem:[#allocation5]]
        %v1035 = vstv %s1034
        %v1036 = vmul.f32 %v1033, %v1035
        %s1037 = sld [smem:[#allocation5 + $0x1]]
        %v1038 = vstv %s1037
        %v1039 = vmul.f32 %v1033, %v1038
        %s1040 = sld [smem:[#allocation5 + $0x2]]
        %v1041 = vstv %s1040
        %v1042 = vmul.f32 %v1033, %v1041
        %s1043 = sld [smem:[#allocation5 + $0x3]]
        %v1044 = vstv %s1043
        %v1045 = vmul.f32 %v1033, %v1044
        %s1046 = sld [smem:[#allocation8]]
        %v1047 = vstv %s1046
        %v1048 = vmul.f32 %v1033, %v1047
        %s1049 = scalar_lea.vmem %s1, 16
        %v1050 = vld [vmem:[%s1049] sm:$0xf]
        %v1051 = vld [vmem:[%s1049 + $0x4] sm:$0xf]
        %v1052 = vld [vmem:[%s1049 + $0x8] sm:$0xf]
        %v1053 = vld [vmem:[%s1049 + $0xc] sm:$0xf]
        %v1058 = vunpack.c.l.b16 %v1050
        %v1059 = vunpack.c.l.b16 %v1051
        %v1060 = vunpack.c.l.b16 %v1052
        %v1061 = vunpack.c.l.b16 %v1053
        %v1062 = vpack.c.b16 %v1059, %v1058
        %v1063 = vpack.c.b16 %v1061, %v1060
        %1066 = vmatprep.subr.bf16.mxu0 0
        %1067 = vmatpush1.bf16.msra.mxu0 %v1062
        %1068 = vmatprep.subr.bf16.mxu0 0
        %1069 = vmatpush1.bf16.msra.mxu0 %v1063
        %1070 = vmatprep.subr.bf16.mxu0 0
        %1071 = vmatpush1.bf16.msra.mxu0 0
        %1072 = vmatprep.subr.bf16.mxu0 0
        %1073 = vmatpush1.bf16.msra.mxu0 0
        %1074 = vmatprep.subr.bf16.mxu0 0
        %1075 = vmatpush1.bf16.msra.mxu0 0
        %1076 = vmatprep.subr.bf16.mxu0 0
        %1077 = vmatpush1.bf16.msra.mxu0 0
        %1078 = vmatprep.subr.bf16.mxu0 0
        %1079 = vmatpush1.bf16.msra.mxu0 0
        %1080 = vmatprep.subr.bf16.mxu0 0
        %1081 = vmatpush1.bf16.msra.mxu0 0
        %1082 = vmatprep.subr.bf16.mxu0 0
        %1083 = vmatpush1.bf16.msra.mxu0 0
        %1084 = vmatprep.subr.bf16.mxu0 0
        %1085 = vmatpush1.bf16.msra.mxu0 0
        %1086 = vmatprep.subr.bf16.mxu0 0
        %1087 = vmatpush1.bf16.msra.mxu0 0
        %1088 = vmatprep.subr.bf16.mxu0 0
        %1089 = vmatpush1.bf16.msra.mxu0 0
        %1090 = vmatprep.subr.bf16.mxu0 0
        %1091 = vmatpush1.bf16.msra.mxu0 0
        %1092 = vmatprep.subr.bf16.mxu0 0
        %1093 = vmatpush1.bf16.msra.mxu0 0
        %1094 = vmatprep.subr.bf16.mxu0 0
        %1095 = vmatpush1.bf16.msra.mxu0 0
        %1096 = vmatprep.subr.bf16.mxu0 0
        %1097 = vmatpush1.bf16.msra.mxu0 0
        %1098 = vmatprep.mubr.bf16.mxu0 0
        %1099 = vmatmul.mubr.bf16.gmra.mrb[0].mxu0 %v932
        %v1100 = vpop.f32.mrb[0].mxu0
        %v1101 = vadd.f32 0.0, %v1100
        %v1102 = vpop.f32.mrb[0].mxu0
        %v1103 = vpop.f32.mrb[0].mxu0
        %v1104 = vpop.f32.mrb[0].mxu0
        %1105 = vdwg.mxu0
        %v1106 = vpack.c.bf16 %v1101, %v1101
        %s1107 = scalar_lea.vmem [#allocation2], 4
        %v1108 = vld [vmem:[%s1107] sm:$0xf]
        %v1110 = vsel %vm976, %v1106, 0
        %v1113 = vsel %vm976, %v1108, 0
        %1115 = vmatprep.subr.bf16.mxu0 0
        %1116 = vmatpush1.bf16.xpose.msra.mxu0 %v1113
        %1117 = vmatprep.subr.bf16.mxu0 0
        %1118 = vmatpush1.bf16.xpose.msra.mxu0 0
        %1119 = vmatprep.subr.bf16.mxu0 0
        %1120 = vmatpush1.bf16.xpose.msra.mxu0 0
        %1121 = vmatprep.subr.bf16.mxu0 0
        %1122 = vmatpush1.bf16.xpose.msra.mxu0 0
        %1123 = vmatprep.subr.bf16.mxu0 0
        %1124 = vmatpush1.bf16.xpose.msra.mxu0 0
        %1125 = vmatprep.subr.bf16.mxu0 0
        %1126 = vmatpush1.bf16.xpose.msra.mxu0 0
        %1127 = vmatprep.subr.bf16.mxu0 0
        %1128 = vmatpush1.bf16.xpose.msra.mxu0 0
        %1129 = vmatprep.subr.bf16.mxu0 0
        %1130 = vmatpush1.bf16.xpose.msra.mxu0 0
        %1131 = vmatprep.subr.bf16.mxu0 0
        %1132 = vmatpush1.bf16.xpose.msra.mxu0 0
        %1133 = vmatprep.subr.bf16.mxu0 0
        %1134 = vmatpush1.bf16.xpose.msra.mxu0 0
        %1135 = vmatprep.subr.bf16.mxu0 0
        %1136 = vmatpush1.bf16.xpose.msra.mxu0 0
        %1137 = vmatprep.subr.bf16.mxu0 0
        %1138 = vmatpush1.bf16.xpose.msra.mxu0 0
        %1139 = vmatprep.subr.bf16.mxu0 0
        %1140 = vmatpush1.bf16.xpose.msra.mxu0 0
        %1141 = vmatprep.subr.bf16.mxu0 0
        %1142 = vmatpush1.bf16.xpose.msra.mxu0 0
        %1143 = vmatprep.subr.bf16.mxu0 0
        %1144 = vmatpush1.bf16.xpose.msra.mxu0 0
        %1145 = vmatprep.subr.bf16.mxu0 0
        %1146 = vmatpush1.bf16.xpose.msra.mxu0 0
        %1147 = vmatprep.mubr.bf16.mxu0 0
        %1148 = vmatmul.mubr.bf16.gmra.mrb[0].mxu0 %v1110
        %v1149 = vpop.f32.mrb[0].mxu0
        %v1150 = vadd.f32 0.0, %v1149
        %v1151 = vpop.f32.mrb[0].mxu0
        %v1152 = vpop.f32.mrb[0].mxu0
        %v1153 = vpop.f32.mrb[0].mxu0
        %1154 = vdwg.mxu0
        %v1155 = vsel %vm976, %v1150, -inf
        %1156 = vmax.xlane.f32.xlu0 %v1155
        %v1157 = vpop.xlane.xlu0 %1156
        %v1158 = vsub.f32 %v1150, %v1157
        %v1159 = vmul.f32 %v1158, 1.442695
        %v1160 = vpow.pop %v1159
        %v1161 = vsel %vm976, %v1160, 0.0
        %1162 = vadd.xlane.f32.xlu0 %v1161
        %v1163 = vpop.xlane.xlu0 %1162
        %v1164 = vrcp.pop %v1163
        %v1165 = vmul.f32 %v1160, %v1164
        %s1166 = sld [smem:[#allocation5 + $0x80]]
        %v1167 = vstv %s1166
        %v1168 = vmul.f32 %v1165, %v1167
        %v1169 = vadd.f32 %v1036, %v1168
        %s1170 = sld [smem:[#allocation5 + $0x81]]
        %v1171 = vstv %s1170
        %v1172 = vmul.f32 %v1165, %v1171
        %v1173 = vadd.f32 %v1039, %v1172
        %s1174 = sld [smem:[#allocation5 + $0x82]]
        %v1175 = vstv %s1174
        %v1176 = vmul.f32 %v1165, %v1175
        %v1177 = vadd.f32 %v1042, %v1176
        %s1178 = sld [smem:[#allocation5 + $0x83]]
        %v1179 = vstv %s1178
        %v1180 = vmul.f32 %v1165, %v1179
        %v1181 = vadd.f32 %v1045, %v1180
        %s1182 = sld [smem:[#allocation8 + $0x1]]
        %v1183 = vstv %s1182
        %v1184 = vmul.f32 %v1165, %v1183
        %v1185 = vadd.f32 %v1048, %v1184
        %s1186 = scalar_lea.vmem %s1, 32
        %v1187 = vld [vmem:[%s1186] sm:$0xf]
        %v1188 = vld [vmem:[%s1186 + $0x4] sm:$0xf]
        %v1189 = vld [vmem:[%s1186 + $0x8] sm:$0xf]
        %v1190 = vld [vmem:[%s1186 + $0xc] sm:$0xf]
        %v1195 = vunpack.c.l.b16 %v1187
        %v1196 = vunpack.c.l.b16 %v1188
        %v1197 = vunpack.c.l.b16 %v1189
        %v1198 = vunpack.c.l.b16 %v1190
        %v1199 = vpack.c.b16 %v1196, %v1195
        %v1200 = vpack.c.b16 %v1198, %v1197
        %1203 = vmatprep.subr.bf16.mxu0 0
        %1204 = vmatpush1.bf16.msra.mxu0 %v1199
        %1205 = vmatprep.subr.bf16.mxu0 0
        %1206 = vmatpush1.bf16.msra.mxu0 %v1200
        %1207 = vmatprep.subr.bf16.mxu0 0
        %1208 = vmatpush1.bf16.msra.mxu0 0
        %1209 = vmatprep.subr.bf16.mxu0 0
        %1210 = vmatpush1.bf16.msra.mxu0 0
        %1211 = vmatprep.subr.bf16.mxu0 0
        %1212 = vmatpush1.bf16.msra.mxu0 0
        %1213 = vmatprep.subr.bf16.mxu0 0
        %1214 = vmatpush1.bf16.msra.mxu0 0
        %1215 = vmatprep.subr.bf16.mxu0 0
        %1216 = vmatpush1.bf16.msra.mxu0 0
        %1217 = vmatprep.subr.bf16.mxu0 0
        %1218 = vmatpush1.bf16.msra.mxu0 0
        %1219 = vmatprep.subr.bf16.mxu0 0
        %1220 = vmatpush1.bf16.msra.mxu0 0
        %1221 = vmatprep.subr.bf16.mxu0 0
        %1222 = vmatpush1.bf16.msra.mxu0 0
        %1223 = vmatprep.subr.bf16.mxu0 0
        %1224 = vmatpush1.bf16.msra.mxu0 0
        %1225 = vmatprep.subr.bf16.mxu0 0
        %1226 = vmatpush1.bf16.msra.mxu0 0
        %1227 = vmatprep.subr.bf16.mxu0 0
        %1228 = vmatpush1.bf16.msra.mxu0 0
        %1229 = vmatprep.subr.bf16.mxu0 0
        %1230 = vmatpush1.bf16.msra.mxu0 0
        %1231 = vmatprep.subr.bf16.mxu0 0
        %1232 = vmatpush1.bf16.msra.mxu0 0
        %1233 = vmatprep.subr.bf16.mxu0 0
        %1234 = vmatpush1.bf16.msra.mxu0 0
        %1235 = vmatprep.mubr.bf16.mxu0 0
        %1236 = vmatmul.mubr.bf16.gmra.mrb[0].mxu0 %v932
        %v1237 = vpop.f32.mrb[0].mxu0
        %v1238 = vadd.f32 0.0, %v1237
        %v1239 = vpop.f32.mrb[0].mxu0
        %v1240 = vpop.f32.mrb[0].mxu0
        %v1241 = vpop.f32.mrb[0].mxu0
        %1242 = vdwg.mxu0
        %v1243 = vpack.c.bf16 %v1238, %v1238
        %s1244 = scalar_lea.vmem [#allocation2], 8
        %v1245 = vld [vmem:[%s1244] sm:$0xf]
        %v1247 = vsel %vm976, %v1243, 0
        %v1250 = vsel %vm976, %v1245, 0
        %1252 = vmatprep.subr.bf16.mxu0 0
        %1253 = vmatpush1.bf16.xpose.msra.mxu0 %v1250
        %1254 = vmatprep.subr.bf16.mxu0 0
        %1255 = vmatpush1.bf16.xpose.msra.mxu0 0
        %1256 = vmatprep.subr.bf16.mxu0 0
        %1257 = vmatpush1.bf16.xpose.msra.mxu0 0
        %1258 = vmatprep.subr.bf16.mxu0 0
        %1259 = vmatpush1.bf16.xpose.msra.mxu0 0
        %1260 = vmatprep.subr.bf16.mxu0 0
        %1261 = vmatpush1.bf16.xpose.msra.mxu0 0
        %1262 = vmatprep.subr.bf16.mxu0 0
        %1263 = vmatpush1.bf16.xpose.msra.mxu0 0
        %1264 = vmatprep.subr.bf16.mxu0 0
        %1265 = vmatpush1.bf16.xpose.msra.mxu0 0
        %1266 = vmatprep.subr.bf16.mxu0 0
        %1267 = vmatpush1.bf16.xpose.msra.mxu0 0
        %1268 = vmatprep.subr.bf16.mxu0 0
        %1269 = vmatpush1.bf16.xpose.msra.mxu0 0
        %1270 = vmatprep.subr.bf16.mxu0 0
        %1271 = vmatpush1.bf16.xpose.msra.mxu0 0
        %1272 = vmatprep.subr.bf16.mxu0 0
        %1273 = vmatpush1.bf16.xpose.msra.mxu0 0
        %1274 = vmatprep.subr.bf16.mxu0 0
        %1275 = vmatpush1.bf16.xpose.msra.mxu0 0
        %1276 = vmatprep.subr.bf16.mxu0 0
        %1277 = vmatpush1.bf16.xpose.msra.mxu0 0
        %1278 = vmatprep.subr.bf16.mxu0 0
        %1279 = vmatpush1.bf16.xpose.msra.mxu0 0
        %1280 = vmatprep.subr.bf16.mxu0 0
        %1281 = vmatpush1.bf16.xpose.msra.mxu0 0
        %1282 = vmatprep.subr.bf16.mxu0 0
        %1283 = vmatpush1.bf16.xpose.msra.mxu0 0
        %1284 = vmatprep.mubr.bf16.mxu0 0
        %1285 = vmatmul.mubr.bf16.gmra.mrb[0].mxu0 %v1247
        %v1286 = vpop.f32.mrb[0].mxu0
        %v1287 = vadd.f32 0.0, %v1286
        %v1288 = vpop.f32.mrb[0].mxu0
        %v1289 = vpop.f32.mrb[0].mxu0
        %v1290 = vpop.f32.mrb[0].mxu0
        %1291 = vdwg.mxu0
        %v1292 = vsel %vm976, %v1287, -inf
        %1293 = vmax.xlane.f32.xlu0 %v1292
        %v1294 = vpop.xlane.xlu0 %1293
        %v1295 = vsub.f32 %v1287, %v1294
        %v1296 = vmul.f32 %v1295, 1.442695
        %v1297 = vpow.pop %v1296
        %v1298 = vsel %vm976, %v1297, 0.0
        %1299 = vadd.xlane.f32.xlu0 %v1298
        %v1300 = vpop.xlane.xlu0 %1299
        %v1301 = vrcp.pop %v1300
        %v1302 = vmul.f32 %v1297, %v1301
        %s1303 = sld [smem:[#allocation5 + $0x100]]
        %v1304 = vstv %s1303
        %v1305 = vmul.f32 %v1302, %v1304
        %v1306 = vadd.f32 %v1169, %v1305
        %s1307 = sld [smem:[#allocation5 + $0x101]]
        %v1308 = vstv %s1307
        %v1309 = vmul.f32 %v1302, %v1308
        %v1310 = vadd.f32 %v1173, %v1309
        %s1311 = sld [smem:[#allocation5 + $0x102]]
        %v1312 = vstv %s1311
        %v1313 = vmul.f32 %v1302, %v1312
        %v1314 = vadd.f32 %v1177, %v1313
        %s1315 = sld [smem:[#allocation5 + $0x103]]
        %v1316 = vstv %s1315
        %v1317 = vmul.f32 %v1302, %v1316
        %v1318 = vadd.f32 %v1181, %v1317
        %s1319 = sld [smem:[#allocation8 + $0x2]]
        %v1320 = vstv %s1319
        %v1321 = vmul.f32 %v1302, %v1320
        %v1322 = vadd.f32 %v1185, %v1321
        %s1323 = scalar_lea.vmem %s1, 48
        %v1324 = vld [vmem:[%s1323] sm:$0xf]
        %v1325 = vld [vmem:[%s1323 + $0x4] sm:$0xf]
        %v1326 = vld [vmem:[%s1323 + $0x8] sm:$0xf]
        %v1327 = vld [vmem:[%s1323 + $0xc] sm:$0xf]
        %v1332 = vunpack.c.l.b16 %v1324
        %v1333 = vunpack.c.l.b16 %v1325
        %v1334 = vunpack.c.l.b16 %v1326
        %v1335 = vunpack.c.l.b16 %v1327
        %v1336 = vpack.c.b16 %v1333, %v1332
        %v1337 = vpack.c.b16 %v1335, %v1334
        %1340 = vmatprep.subr.bf16.mxu0 0
        %1341 = vmatpush1.bf16.msra.mxu0 %v1336
        %1342 = vmatprep.subr.bf16.mxu0 0
        %1343 = vmatpush1.bf16.msra.mxu0 %v1337
        %1344 = vmatprep.subr.bf16.mxu0 0
        %1345 = vmatpush1.bf16.msra.mxu0 0
        %1346 = vmatprep.subr.bf16.mxu0 0
        %1347 = vmatpush1.bf16.msra.mxu0 0
        %1348 = vmatprep.subr.bf16.mxu0 0
        %1349 = vmatpush1.bf16.msra.mxu0 0
        %1350 = vmatprep.subr.bf16.mxu0 0
        %1351 = vmatpush1.bf16.msra.mxu0 0
        %1352 = vmatprep.subr.bf16.mxu0 0
        %1353 = vmatpush1.bf16.msra.mxu0 0
        %1354 = vmatprep.subr.bf16.mxu0 0
        %1355 = vmatpush1.bf16.msra.mxu0 0
        %1356 = vmatprep.subr.bf16.mxu0 0
        %1357 = vmatpush1.bf16.msra.mxu0 0
        %1358 = vmatprep.subr.bf16.mxu0 0
        %1359 = vmatpush1.bf16.msra.mxu0 0
        %1360 = vmatprep.subr.bf16.mxu0 0
        %1361 = vmatpush1.bf16.msra.mxu0 0
        %1362 = vmatprep.subr.bf16.mxu0 0
        %1363 = vmatpush1.bf16.msra.mxu0 0
        %1364 = vmatprep.subr.bf16.mxu0 0
        %1365 = vmatpush1.bf16.msra.mxu0 0
        %1366 = vmatprep.subr.bf16.mxu0 0
        %1367 = vmatpush1.bf16.msra.mxu0 0
        %1368 = vmatprep.subr.bf16.mxu0 0
        %1369 = vmatpush1.bf16.msra.mxu0 0
        %1370 = vmatprep.subr.bf16.mxu0 0
        %1371 = vmatpush1.bf16.msra.mxu0 0
        %1372 = vmatprep.mubr.bf16.mxu0 0
        %1373 = vmatmul.mubr.bf16.gmra.mrb[0].mxu0 %v932
        %v1374 = vpop.f32.mrb[0].mxu0
        %v1375 = vadd.f32 0.0, %v1374
        %v1376 = vpop.f32.mrb[0].mxu0
        %v1377 = vpop.f32.mrb[0].mxu0
        %v1378 = vpop.f32.mrb[0].mxu0
        %1379 = vdwg.mxu0
        %v1380 = vpack.c.bf16 %v1375, %v1375
        %s1381 = scalar_lea.vmem [#allocation2], 12
        %v1382 = vld [vmem:[%s1381] sm:$0xf]
        %v1384 = vsel %vm976, %v1380, 0
        %v1387 = vsel %vm976, %v1382, 0
        %1389 = vmatprep.subr.bf16.mxu0 0
        %1390 = vmatpush1.bf16.xpose.msra.mxu0 %v1387
        %1391 = vmatprep.subr.bf16.mxu0 0
        %1392 = vmatpush1.bf16.xpose.msra.mxu0 0
        %1393 = vmatprep.subr.bf16.mxu0 0
        %1394 = vmatpush1.bf16.xpose.msra.mxu0 0
        %1395 = vmatprep.subr.bf16.mxu0 0
        %1396 = vmatpush1.bf16.xpose.msra.mxu0 0
        %1397 = vmatprep.subr.bf16.mxu0 0
        %1398 = vmatpush1.bf16.xpose.msra.mxu0 0
        %1399 = vmatprep.subr.bf16.mxu0 0
        %1400 = vmatpush1.bf16.xpose.msra.mxu0 0
        %1401 = vmatprep.subr.bf16.mxu0 0
        %1402 = vmatpush1.bf16.xpose.msra.mxu0 0
        %1403 = vmatprep.subr.bf16.mxu0 0
        %1404 = vmatpush1.bf16.xpose.msra.mxu0 0
        %1405 = vmatprep.subr.bf16.mxu0 0
        %1406 = vmatpush1.bf16.xpose.msra.mxu0 0
        %1407 = vmatprep.subr.bf16.mxu0 0
        %1408 = vmatpush1.bf16.xpose.msra.mxu0 0
        %1409 = vmatprep.subr.bf16.mxu0 0
        %1410 = vmatpush1.bf16.xpose.msra.mxu0 0
        %1411 = vmatprep.subr.bf16.mxu0 0
        %1412 = vmatpush1.bf16.xpose.msra.mxu0 0
        %1413 = vmatprep.subr.bf16.mxu0 0
        %1414 = vmatpush1.bf16.xpose.msra.mxu0 0
        %1415 = vmatprep.subr.bf16.mxu0 0
        %1416 = vmatpush1.bf16.xpose.msra.mxu0 0
        %1417 = vmatprep.subr.bf16.mxu0 0
        %1418 = vmatpush1.bf16.xpose.msra.mxu0 0
        %1419 = vmatprep.subr.bf16.mxu0 0
        %1420 = vmatpush1.bf16.xpose.msra.mxu0 0
        %1421 = vmatprep.mubr.bf16.mxu0 0
        %1422 = vmatmul.mubr.bf16.gmra.mrb[0].mxu0 %v1384
        %v1423 = vpop.f32.mrb[0].mxu0
        %v1424 = vadd.f32 0.0, %v1423
        %v1425 = vpop.f32.mrb[0].mxu0
        %v1426 = vpop.f32.mrb[0].mxu0
        %v1427 = vpop.f32.mrb[0].mxu0
        %1428 = vdwg.mxu0
        %v1429 = vsel %vm976, %v1424, -inf
        %1430 = vmax.xlane.f32.xlu0 %v1429
        %v1431 = vpop.xlane.xlu0 %1430
        %v1432 = vsub.f32 %v1424, %v1431
        %v1433 = vmul.f32 %v1432, 1.442695
        %v1434 = vpow.pop %v1433
        %v1435 = vsel %vm976, %v1434, 0.0
        %1436 = vadd.xlane.f32.xlu0 %v1435
        %v1437 = vpop.xlane.xlu0 %1436
        %v1438 = vrcp.pop %v1437
        %v1439 = vmul.f32 %v1434, %v1438
        %s1440 = sld [smem:[#allocation5 + $0x180]]
        %v1441 = vstv %s1440
        %v1442 = vmul.f32 %v1439, %v1441
        %v1443 = vadd.f32 %v1306, %v1442
        %s1444 = sld [smem:[#allocation5 + $0x181]]
        %v1445 = vstv %s1444
        %v1446 = vmul.f32 %v1439, %v1445
        %v1447 = vadd.f32 %v1310, %v1446
        %s1448 = sld [smem:[#allocation5 + $0x182]]
        %v1449 = vstv %s1448
        %v1450 = vmul.f32 %v1439, %v1449
        %v1451 = vadd.f32 %v1314, %v1450
        %s1452 = sld [smem:[#allocation5 + $0x183]]
        %v1453 = vstv %s1452
        %v1454 = vmul.f32 %v1439, %v1453
        %v1455 = vadd.f32 %v1318, %v1454
        %s1456 = sld [smem:[#allocation8 + $0x3]]
        %v1457 = vstv %s1456
        %v1458 = vmul.f32 %v1439, %v1457
        %v1459 = vadd.f32 %v1322, %v1458
        %v1460 = vsub.f32 %v1443, %v1459
        %v1461 = vmul.f32 %v1460, %v1460
        %v1462 = vsub.f32 %v1447, %v1459
        %v1463 = vmul.f32 %v1462, %v1462
        %v1464 = vadd.f32 %v1461, %v1463
        %v1465 = vsub.f32 %v1451, %v1459
        %v1466 = vmul.f32 %v1465, %v1465
        %v1467 = vadd.f32 %v1464, %v1466
        %v1468 = vsub.f32 %v1455, %v1459
        %v1469 = vmul.f32 %v1468, %v1468
        %v1470 = vadd.f32 %v1467, %v1469
        %v1471 = vmul.f32 %v1470, 0.25
        %v1472 = vadd.f32 %v1471, 1e-05
        %v1473 = vrsqrt.pop %v1472
        %v1474 = vmul.f32 %v1460, %v1473
        %s1475 = sld [smem:[#allocation10]]
        %v1476 = vstv %s1475
        %v1477 = vmul.f32 %v1474, %v1476
        %s1478 = sld [smem:[#allocation11]]
        %v1479 = vstv %s1478
        %v1480 = vadd.f32 %v1477, %v1479
        %v1481 = vpack.c.bf16 %v1480, %v1480
        %v1482 = vld [vmem:[#allocation3] sm:$0xf]
        %v1484 = vsel %vm976, %v1481, 0
        %vm1486 = vcmask 1043456
        %v1488 = vsel %vm1486, %v1482, 0
        %1490 = vmatprep.subr.bf16.mxu0 0
        %1491 = vmatpush1.bf16.msra.mxu0 %v1488
        %1492 = vmatprep.subr.bf16.mxu0 0
        %1493 = vmatpush1.bf16.msra.mxu0 0
        %1494 = vmatprep.subr.bf16.mxu0 0
        %1495 = vmatpush1.bf16.msra.mxu0 0
        %1496 = vmatprep.subr.bf16.mxu0 0
        %1497 = vmatpush1.bf16.msra.mxu0 0
        %1498 = vmatprep.subr.bf16.mxu0 0
        %1499 = vmatpush1.bf16.msra.mxu0 0
        %1500 = vmatprep.subr.bf16.mxu0 0
        %1501 = vmatpush1.bf16.msra.mxu0 0
        %1502 = vmatprep.subr.bf16.mxu0 0
        %1503 = vmatpush1.bf16.msra.mxu0 0
        %1504 = vmatprep.subr.bf16.mxu0 0
        %1505 = vmatpush1.bf16.msra.mxu0 0
        %1506 = vmatprep.subr.bf16.mxu0 0
        %1507 = vmatpush1.bf16.msra.mxu0 0
        %1508 = vmatprep.subr.bf16.mxu0 0
        %1509 = vmatpush1.bf16.msra.mxu0 0
        %1510 = vmatprep.subr.bf16.mxu0 0
        %1511 = vmatpush1.bf16.msra.mxu0 0
        %1512 = vmatprep.subr.bf16.mxu0 0
        %1513 = vmatpush1.bf16.msra.mxu0 0
        %1514 = vmatprep.subr.bf16.mxu0 0
        %1515 = vmatpush1.bf16.msra.mxu0 0
        %1516 = vmatprep.subr.bf16.mxu0 0
        %1517 = vmatpush1.bf16.msra.mxu0 0
        %1518 = vmatprep.subr.bf16.mxu0 0
        %1519 = vmatpush1.bf16.msra.mxu0 0
        %1520 = vmatprep.subr.bf16.mxu0 0
        %1521 = vmatpush1.bf16.msra.mxu0 0
        %1522 = vmatprep.mubr.bf16.mxu0 0
        %1523 = vmatmul.mubr.bf16.gmra.mrb[0].mxu0 %v1484
        %v1524 = vpop.f32.mrb[0].mxu0
        %v1525 = vadd.f32 0.0, %v1524
        %v1526 = vpop.f32.mrb[0].mxu0
        %v1527 = vpop.f32.mrb[0].mxu0
        %v1528 = vpop.f32.mrb[0].mxu0
        %1529 = vdwg.mxu0
        %v1530 = vpack.c.bf16 %v1525, %v1525
        %vm1531 = vcmask 60416
        %1532 = vst.msk [vmem:[#allocation4] sm:$0xf] %vm1531, %v1530
        %v1533 = vmul.f32 %v1462, %v1473
        %s1534 = sld [smem:[#allocation10 + $0x1]]
        %v1535 = vstv %s1534
        %v1536 = vmul.f32 %v1533, %v1535
        %s1537 = sld [smem:[#allocation11 + $0x1]]
        %v1538 = vstv %s1537
        %v1539 = vadd.f32 %v1536, %v1538
        %v1540 = vpack.c.bf16 %v1539, %v1539
        %s1541 = scalar_lea.vmem [#allocation3], 4
        %v1542 = vld [vmem:[%s1541] sm:$0xf]
        %v1544 = vsel %vm976, %v1540, 0
        %v1547 = vsel %vm1486, %v1542, 0
        %1549 = vmatprep.subr.bf16.mxu0 0
        %1550 = vmatpush1.bf16.msra.mxu0 %v1547
        %1551 = vmatprep.subr.bf16.mxu0 0
        %1552 = vmatpush1.bf16.msra.mxu0 0
        %1553 = vmatprep.subr.bf16.mxu0 0
        %1554 = vmatpush1.bf16.msra.mxu0 0
        %1555 = vmatprep.subr.bf16.mxu0 0
        %1556 = vmatpush1.bf16.msra.mxu0 0
        %1557 = vmatprep.subr.bf16.mxu0 0
        %1558 = vmatpush1.bf16.msra.mxu0 0
        %1559 = vmatprep.subr.bf16.mxu0 0
        %1560 = vmatpush1.bf16.msra.mxu0 0
        %1561 = vmatprep.subr.bf16.mxu0 0
        %1562 = vmatpush1.bf16.msra.mxu0 0
        %1563 = vmatprep.subr.bf16.mxu0 0
        %1564 = vmatpush1.bf16.msra.mxu0 0
        %1565 = vmatprep.subr.bf16.mxu0 0
        %1566 = vmatpush1.bf16.msra.mxu0 0
        %1567 = vmatprep.subr.bf16.mxu0 0
        %1568 = vmatpush1.bf16.msra.mxu0 0
        %1569 = vmatprep.subr.bf16.mxu0 0
        %1570 = vmatpush1.bf16.msra.mxu0 0
        %1571 = vmatprep.subr.bf16.mxu0 0
        %1572 = vmatpush1.bf16.msra.mxu0 0
        %1573 = vmatprep.subr.bf16.mxu0 0
        %1574 = vmatpush1.bf16.msra.mxu0 0
        %1575 = vmatprep.subr.bf16.mxu0 0
        %1576 = vmatpush1.bf16.msra.mxu0 0
        %1577 = vmatprep.subr.bf16.mxu0 0
        %1578 = vmatpush1.bf16.msra.mxu0 0
        %1579 = vmatprep.subr.bf16.mxu0 0
        %1580 = vmatpush1.bf16.msra.mxu0 0
        %1581 = vmatprep.mubr.bf16.mxu0 0
        %1582 = vmatmul.mubr.bf16.gmra.mrb[0].mxu0 %v1544
        %v1583 = vpop.f32.mrb[0].mxu0
        %v1584 = vadd.f32 0.0, %v1583
        %v1585 = vpop.f32.mrb[0].mxu0
        %v1586 = vpop.f32.mrb[0].mxu0
        %v1587 = vpop.f32.mrb[0].mxu0
        %1588 = vdwg.mxu0
        %v1589 = vpack.c.bf16 %v1584, %v1584
        %v1591 = vunpack.c.l.b16 %v1589
        %v1592 = vpack.c.b16 %v1591, %v1591
        %1593 = vrot.lane.b32.xlu0 %v1592, 8
        %v1594 = vpop.permute.xlu0 %1593
        %vm1596 = vcmask 126016
        %1597 = vst.msk [vmem:[#allocation4] sm:$0xf] %vm1596, %v1594
        %v1598 = vmul.f32 %v1465, %v1473
        %s1599 = sld [smem:[#allocation10 + $0x2]]
        %v1600 = vstv %s1599
        %v1601 = vmul.f32 %v1598, %v1600
        %s1602 = sld [smem:[#allocation11 + $0x2]]
        %v1603 = vstv %s1602
        %v1604 = vadd.f32 %v1601, %v1603
        %v1605 = vpack.c.bf16 %v1604, %v1604
        %s1606 = scalar_lea.vmem [#allocation3], 8
        %v1607 = vld [vmem:[%s1606] sm:$0xf]
        %v1609 = vsel %vm976, %v1605, 0
        %v1612 = vsel %vm1486, %v1607, 0
        %1614 = vmatprep.subr.bf16.mxu0 0
        %1615 = vmatpush1.bf16.msra.mxu0 %v1612
        %1616 = vmatprep.subr.bf16.mxu0 0
        %1617 = vmatpush1.bf16.msra.mxu0 0
        %1618 = vmatprep.subr.bf16.mxu0 0
        %1619 = vmatpush1.bf16.msra.mxu0 0
        %1620 = vmatprep.subr.bf16.mxu0 0
        %1621 = vmatpush1.bf16.msra.mxu0 0
        %1622 = vmatprep.subr.bf16.mxu0 0
        %1623 = vmatpush1.bf16.msra.mxu0 0
        %1624 = vmatprep.subr.bf16.mxu0 0
        %1625 = vmatpush1.bf16.msra.mxu0 0
        %1626 = vmatprep.subr.bf16.mxu0 0
        %1627 = vmatpush1.bf16.msra.mxu0 0
        %1628 = vmatprep.subr.bf16.mxu0 0
        %1629 = vmatpush1.bf16.msra.mxu0 0
        %1630 = vmatprep.subr.bf16.mxu0 0
        %1631 = vmatpush1.bf16.msra.mxu0 0
        %1632 = vmatprep.subr.bf16.mxu0 0
        %1633 = vmatpush1.bf16.msra.mxu0 0
        %1634 = vmatprep.subr.bf16.mxu0 0
        %1635 = vmatpush1.bf16.msra.mxu0 0
        %1636 = vmatprep.subr.bf16.mxu0 0
        %1637 = vmatpush1.bf16.msra.mxu0 0
        %1638 = vmatprep.subr.bf16.mxu0 0
        %1639 = vmatpush1.bf16.msra.mxu0 0
        %1640 = vmatprep.subr.bf16.mxu0 0
        %1641 = vmatpush1.bf16.msra.mxu0 0
        %1642 = vmatprep.subr.bf16.mxu0 0
        %1643 = vmatpush1.bf16.msra.mxu0 0
        %1644 = vmatprep.subr.bf16.mxu0 0
        %1645 = vmatpush1.bf16.msra.mxu0 0
        %1646 = vmatprep.mubr.bf16.mxu0 0
        %1647 = vmatmul.mubr.bf16.gmra.mrb[0].mxu0 %v1609
        %v1648 = vpop.f32.mrb[0].mxu0
        %v1649 = vadd.f32 0.0, %v1648
        %v1650 = vpop.f32.mrb[0].mxu0
        %v1651 = vpop.f32.mrb[0].mxu0
        %v1652 = vpop.f32.mrb[0].mxu0
        %1653 = vdwg.mxu0
        %v1654 = vpack.c.bf16 %v1649, %v1649
        %v1656 = vunpack.c.l.b16 %v1654
        %v1657 = vpack.c.b16 %v1656, %v1656
        %1658 = vrot.lane.b32.xlu0 %v1657, 16
        %v1659 = vpop.permute.xlu0 %1658
        %vm1661 = vcmask 191616
        %1662 = vst.msk [vmem:[#allocation4] sm:$0xf] %vm1661, %v1659
        %v1663 = vmul.f32 %v1468, %v1473
        %s1664 = sld [smem:[#allocation10 + $0x3]]
        %v1665 = vstv %s1664
        %v1666 = vmul.f32 %v1663, %v1665
        %s1667 = sld [smem:[#allocation11 + $0x3]]
        %v1668 = vstv %s1667
        %v1669 = vadd.f32 %v1666, %v1668
        %v1670 = vpack.c.bf16 %v1669, %v1669
        %s1671 = scalar_lea.vmem [#allocation3], 12
        %v1672 = vld [vmem:[%s1671] sm:$0xf]
        %v1674 = vsel %vm976, %v1670, 0
        %v1677 = vsel %vm1486, %v1672, 0
        %1679 = vmatprep.subr.bf16.mxu0 0
        %1680 = vmatpush1.bf16.msra.mxu0 %v1677
        %1681 = vmatprep.subr.bf16.mxu0 0
        %1682 = vmatpush1.bf16.msra.mxu0 0
        %1683 = vmatprep.subr.bf16.mxu0 0
        %1684 = vmatpush1.bf16.msra.mxu0 0
        %1685 = vmatprep.subr.bf16.mxu0 0
        %1686 = vmatpush1.bf16.msra.mxu0 0
        %1687 = vmatprep.subr.bf16.mxu0 0
        %1688 = vmatpush1.bf16.msra.mxu0 0
        %1689 = vmatprep.subr.bf16.mxu0 0
        %1690 = vmatpush1.bf16.msra.mxu0 0
        %1691 = vmatprep.subr.bf16.mxu0 0
        %1692 = vmatpush1.bf16.msra.mxu0 0
        %1693 = vmatprep.subr.bf16.mxu0 0
        %1694 = vmatpush1.bf16.msra.mxu0 0
        %1695 = vmatprep.subr.bf16.mxu0 0
        %1696 = vmatpush1.bf16.msra.mxu0 0
        %1697 = vmatprep.subr.bf16.mxu0 0
        %1698 = vmatpush1.bf16.msra.mxu0 0
        %1699 = vmatprep.subr.bf16.mxu0 0
        %1700 = vmatpush1.bf16.msra.mxu0 0
        %1701 = vmatprep.subr.bf16.mxu0 0
        %1702 = vmatpush1.bf16.msra.mxu0 0
        %1703 = vmatprep.subr.bf16.mxu0 0
        %1704 = vmatpush1.bf16.msra.mxu0 0
        %1705 = vmatprep.subr.bf16.mxu0 0
        %1706 = vmatpush1.bf16.msra.mxu0 0
        %1707 = vmatprep.subr.bf16.mxu0 0
        %1708 = vmatpush1.bf16.msra.mxu0 0
        %1709 = vmatprep.subr.bf16.mxu0 0
        %1710 = vmatpush1.bf16.msra.mxu0 0
        %1711 = vmatprep.mubr.bf16.mxu0 0
        %1712 = vmatmul.mubr.bf16.gmra.mrb[0].mxu0 %v1674
        %v1713 = vpop.f32.mrb[0].mxu0
        %v1714 = vadd.f32 0.0, %v1713
        %v1715 = vpop.f32.mrb[0].mxu0
        %v1716 = vpop.f32.mrb[0].mxu0
        %v1717 = vpop.f32.mrb[0].mxu0
        %1718 = vdwg.mxu0
        %v1719 = vpack.c.bf16 %v1714, %v1714
        %v1721 = vunpack.c.l.b16 %v1719
        %v1722 = vpack.c.b16 %v1721, %v1721
        %1723 = vrot.lane.b32.xlu0 %v1722, 24
        %v1724 = vpop.permute.xlu0 %1723
        %vm1726 = vcmask 257216
        %1727 = vst.msk [vmem:[#allocation4] sm:$0xf] %vm1726, %v1724
        %v1728 = vld [vmem:[#allocation4] sm:$0xf]
        %v1729 = vld [vmem:[%s8] sm:$0xf]
        %v1730 = vld [vmem:[%s8 + $0x4] sm:$0xf]
        %v1731 = vld [vmem:[%s8 + $0x8] sm:$0xf]
        %v1732 = vld [vmem:[%s8 + $0xc] sm:$0xf]
        %v1733 = vld [vmem:[%s9] sm:$0x1]
        %v1735 = vlaneseq
        %v1736 = vshrl.u32 %v1735, 7
        %v1737 = vsub.s32 0, %v1736
        %v1738 = vrot.slane %v1733, %v1737
        %v1744 = vunpack.c.l.b16 %v1729
        %v1745 = vunpack.c.l.b16 %v1730
        %v1746 = vunpack.c.l.b16 %v1731
        %v1747 = vunpack.c.l.b16 %v1732
        %v1748 = vpack.c.b16 %v1745, %v1744
        %v1749 = vpack.c.b16 %v1747, %v1746
        %v1753 = vsel %vm930, %v1728, 0
        %1755 = vmatprep.subr.bf16.mxu0 0
        %1756 = vmatpush1.bf16.msra.mxu0 %v1748
        %1757 = vmatprep.subr.bf16.mxu0 0
        %1758 = vmatpush1.bf16.msra.mxu0 %v1749
        %1759 = vmatprep.subr.bf16.mxu0 0
        %1760 = vmatpush1.bf16.msra.mxu0 0
        %1761 = vmatprep.subr.bf16.mxu0 0
        %1762 = vmatpush1.bf16.msra.mxu0 0
        %1763 = vmatprep.subr.bf16.mxu0 0
        %1764 = vmatpush1.bf16.msra.mxu0 0
        %1765 = vmatprep.subr.bf16.mxu0 0
        %1766 = vmatpush1.bf16.msra.mxu0 0
        %1767 = vmatprep.subr.bf16.mxu0 0
        %1768 = vmatpush1.bf16.msra.mxu0 0
        %1769 = vmatprep.subr.bf16.mxu0 0
        %1770 = vmatpush1.bf16.msra.mxu0 0
        %1771 = vmatprep.subr.bf16.mxu0 0
        %1772 = vmatpush1.bf16.msra.mxu0 0
        %1773 = vmatprep.subr.bf16.mxu0 0
        %1774 = vmatpush1.bf16.msra.mxu0 0
        %1775 = vmatprep.subr.bf16.mxu0 0
        %1776 = vmatpush1.bf16.msra.mxu0 0
        %1777 = vmatprep.subr.bf16.mxu0 0
        %1778 = vmatpush1.bf16.msra.mxu0 0
        %1779 = vmatprep.subr.bf16.mxu0 0
        %1780 = vmatpush1.bf16.msra.mxu0 0
        %1781 = vmatprep.subr.bf16.mxu0 0
        %1782 = vmatpush1.bf16.msra.mxu0 0
        %1783 = vmatprep.subr.bf16.mxu0 0
        %1784 = vmatpush1.bf16.msra.mxu0 0
        %1785 = vmatprep.subr.bf16.mxu0 0
        %1786 = vmatpush1.bf16.msra.mxu0 0
        %1787 = vmatprep.mubr.bf16.mxu0 0
        %1788 = vmatmul.mubr.bf16.gmra.mrb[0].mxu0 %v1753
        %v1789 = vpop.f32.mrb[0].mxu0
        %v1790 = vadd.f32 %v1738, %v1789
        %v1791 = vpop.f32.mrb[0].mxu0
        %v1792 = vpop.f32.mrb[0].mxu0
        %v1793 = vpop.f32.mrb[0].mxu0
        %1794 = vdwg.mxu0
        %1795 = vst.msk [vmem:[%s416] sm:$0xff] %vm930, %v1790
        %s1796 = sand.u32 %s264, 1
        %s1797 = scalar_lea.sflag [#allocation6], %s1796
        %s1798 = sand.u32 %s264, 1
        %s1799 = smul.addr %s1798, 8
        %s1800 = scalar_lea.vmem [#allocation13], %s1799
        // Predicated region
        $region81: #{tpu_custom_call.1} parent=59 // pred_check
          %p1801 = pneg %p274
        $region82: #{tpu_custom_call.1} parent=59 // pred_check_branch
          %1803 = sbr.rel (%p1801) target = $region84
        $region83: #{tpu_custom_call.1} parent=59 // pred_region
          %s1805 = ssub.s32 128, 128
          %1806 = vsyncadd %s1797, %s1805
          %s1807 = sadd.s32 %s32, %s31
          %s1808 = smul.addr %s1807, 128
          %s1809 = scalar_lea.hbm %s10, %s1808
          %s1811 = sshll.u32 %s1800, 4
          %s1812 = int_to_ptr.vmem [resolvable:$true] %s1811
          %1814 = dma.vmem_to_hbm [thread:$0]  %s1812, 128, %s1809, %s1797
        $region84: #{tpu_custom_call.1} parent=59 // pred_fallthru
          _
      $region60: #{tpu_custom_call.1} parent=5 // pred_fallthru
        _
      %p1815 = scmp.le.s32.totalorder 2, %s22
      // Predicated region
      $region85: #{tpu_custom_call.1} parent=5 // pred_check
        %p1816 = pneg %p1815
      $region86: #{tpu_custom_call.1} parent=5 // pred_check_branch
        %1818 = sbr.rel (%p1816) target = $region88
      $region87: #{tpu_custom_call.1} parent=5 // pred_region
        %s1819 = ssub.s32 %s22, 2
        // Predicated region
        $region89: #{tpu_custom_call.1} parent=87 // pred_check
          %p1820 = pneg %p280
        $region90: #{tpu_custom_call.1} parent=87 // pred_check_branch
          %1822 = sbr.rel (%p1820) target = $region92
        $region91: #{tpu_custom_call.1} parent=87 // pred_region
          %s1823 = sand.u32 %s265, 1
          %s1824 = scalar_lea.sflag [#allocation6], %s1823
          %s1825 = sand.u32 %s265, 1
          %s1826 = smul.addr %s1825, 8
          %s1827 = scalar_lea.vmem [#allocation13], %s1826
          %1828 = dma.done %s1824, 128
        $region92: #{tpu_custom_call.1} parent=87 // pred_fallthru
          _
      $region88: #{tpu_custom_call.1} parent=5 // pred_fallthru
        _
    $region6: #{tpu_custom_call.1} parent=1 // loop_footer
      %s26 = sadd.s32 1, %s22
    $region7: #{tpu_custom_call.1} parent=1 // loop_footer_branch
      %21 = sbr.rel target = $region3
    $region8: #{tpu_custom_call.1} parent=1 // loop_exit
      _
    %1829 = vsyncpa [#allocation6], 1
    %s1830 = scalar_lea.sflag [#allocation6], 1
    %1831 = vsyncpa %s1830, 1
    %1832 = vsyncpa [#allocation7], 1
    %s1833 = scalar_lea.sflag [#allocation7], 1
    %1834 = vsyncpa %s1833, 1
    %1835 = vsyncpa [#allocation9], 1
    %1836 = vsyncpa [#allocation12], 1

// kernel: tpu_custom_call.1
$region0: #{tpu_custom_call.1}
  #allocation0 [shape = 'u32[]', space=smem, size = 0x4, offset = 0x4, fixed_abs, tag = 'smem constant byte address 0x4 - core index']
  #allocation1 [shape = 'u32[144,128]{1,0:T(1,128)}', space=vmem, size = 0x12000, scoped, tag = 'internal scratch']
  #allocation2 [shape = 'bf16[4,8,8]{2,1,0:T(8,128)(2,1)}', space=vmem, size = 0x2000, scoped, tag = 'scratch operand']
  #allocation3 [shape = 'bf16[4,8,8]{2,1,0:T(8,128)(2,1)}', space=vmem, size = 0x2000, scoped, tag = 'scratch operand']
  #allocation4 [shape = 'bf16[8,32]{1,0:T(8,128)(2,1)}', space=vmem, size = 0x800, scoped, tag = 'scratch operand']
  %s0 = inlined_call_operand.vmem [shape: bf16[2,8,32], index: 0, kind: input, shape index: {}]
  %s1 = inlined_call_operand.vmem [shape: bf16[4,32,8], index: 1, kind: input, shape index: {}]
  %s2 = inlined_call_operand.vmem [shape: bf16[4,32,8], index: 2, kind: input, shape index: {}]
  %s3 = inlined_call_operand.vmem [shape: bf16[4,32,8], index: 3, kind: input, shape index: {}]
  %s4 = inlined_call_operand.vmem [shape: f32[4,4], index: 4, kind: input, shape index: {}]
  %s5 = inlined_call_operand.vmem [shape: f32[1,4], index: 5, kind: input, shape index: {}]
  %s6 = inlined_call_operand.vmem [shape: f32[1,4], index: 6, kind: input, shape index: {}]
  %s7 = inlined_call_operand.vmem [shape: f32[1,4], index: 7, kind: input, shape index: {}]
  %s8 = inlined_call_operand.vmem [shape: bf16[32,32], index: 8, kind: input, shape index: {}]
  %s9 = inlined_call_operand.vmem [shape: f32[1,32], index: 9, kind: input, shape index: {}]
  %s10 = inlined_call_operand.hbm [shape: f32[2,8,32], index: 10, kind: output, shape index: {}]
  %s11 = sld [smem:[#allocation0]]
  $region93: #{tpu_custom_call.1} parent=0
    _
  %s13 = ssub.s32 1, %s11
  %s14 = scalar_select 0, %s13, %s11
  $region1: #{tpu_custom_call.1} parent=0
    #allocation5 [shape = 'u8[2048]{0}', space=smem, size = 0x800, scoped, tag = 'input window, operand 4, single buffered']
    #allocation6 [shape = 's32[2]{0}', space=sflag, size = 0x8, scoped, tag = 'scoped memory for tpu_custom_call.1']
    #allocation7 [shape = 's32[2]{0}', space=sflag, size = 0x8, scoped, tag = 'scoped memory for tpu_custom_call.1']
    #allocation8 [shape = 'u8[512]{0}', space=smem, size = 0x200, scoped, tag = 'input window, operand 5, single buffered']
    #allocation9 [shape = 's32[1]{0}', space=sflag, size = 0x4, scoped, tag = 'scoped memory for tpu_custom_call.1']
    #allocation10 [shape = 'u8[512]{0}', space=smem, size = 0x200, scoped, tag = 'input window, operand 6, single buffered']
    #allocation11 [shape = 'u8[512]{0}', space=smem, size = 0x200, scoped, tag = 'input window, operand 7, single buffered']
    #allocation12 [shape = 's32[1]{0}', space=sflag, size = 0x4, scoped, tag = 'scoped memory for tpu_custom_call.1']
    #allocation13 [shape = 'u8[8192]{0}', space=vmem, size = 0x2000, scoped, tag = 'output window, operand 0']
    %15 = vsyncpa [#allocation7], 0
    %16 = vsyncpa [#allocation9], 0
    %17 = vsyncpa [#allocation12], 0
    %18 = vsyncpa [#allocation6], 0
    %s19 = scalar_lea.sflag [#allocation6], 1
    %20 = vsyncpa %s19, 0
    loop: start=0, step=1, limit=4
    $region2: #{tpu_custom_call.1} parent=1 // loop_pre_header
      _
    $region3: #{tpu_custom_call.1} parent=1 // loop_header
      %s22 = sphi 0, %s26
      %p23 = scmp.ge.s32.totalorder %s22, 4
      %s29 = sphi 0, %s41
      %s30 = sphi 0, %s37
      %s31 = sphi 0, %s29
      %s32 = sphi 0, %s30
      %s33 = sphi 0, %s31
      %s34 = sphi 0, %s32
      %s44 = sphi 0, %s46
      %s47 = sphi 0, %s44
      %s48 = sphi 0, %s47
      %s64 = sphi 0, %s48
      %s68 = sphi 0, %s68
      %s70 = sphi 0, %s68
      %s71 = sphi 0, %s70
      %s85 = sphi 0, %s71
      %s89 = sphi 0, %s89
      %s91 = sphi 0, %s89
      %s92 = sphi 0, %s91
      %s106 = sphi 0, %s92
      %s110 = sphi 0, %s110
      %s112 = sphi 0, %s110
      %s113 = sphi 0, %s112
      %s127 = sphi 0, %s113
      %s131 = sphi 0, %s131
      %s133 = sphi 0, %s131
      %s134 = sphi 0, %s133
      %s148 = sphi 0, %s134
      %s152 = sphi 0, %s152
      %s154 = sphi 0, %s152
      %s155 = sphi 0, %s154
      %s169 = sphi 0, %s155
      %s173 = sphi 0, %s173
      %s175 = sphi 0, %s173
      %s176 = sphi 0, %s175
      %s190 = sphi 0, %s176
      %s194 = sphi 0, %s194
      %s196 = sphi 0, %s194
      %s197 = sphi 0, %s196
      %s211 = sphi 0, %s197
      %s215 = sphi 0, %s215
      %s217 = sphi 0, %s215
      %s218 = sphi 0, %s217
      %s232 = sphi 0, %s218
      %s236 = sphi 0, %s236
      %s238 = sphi 0, %s236
      %s239 = sphi 0, %s238
      %s253 = sphi 0, %s239
      %s261 = sphi 0, %s263
      %s264 = sphi 0, %s261
      %s265 = sphi 0, %s264
      %s281 = sphi 0, %s265
    $region4: #{tpu_custom_call.1} parent=1 // loop_header_branch
      %25 = sbr.rel (%p23) target = $region8
    $region5: #{tpu_custom_call.1} parent=1 // loop_body
      %s27 = ssub.s32 %s22, 1
      %s28 = ssub.s32 %s22, 2
      %s35 = sadd.s32 1, %s30
      %p36 = scmp.ge.s32.totalorder %s35, 1
      %s37 = scalar_select %p36, 0, %s35
      %s38 = sadd.s32 1, %s29
      %s39 = scalar_select %p36, %s38, %s29
      %p40 = scmp.ge.s32.totalorder %s39, 2
      %s41 = scalar_select %p40, 0, %s39
      %s42 = ssub.s32 %s29, %s41
      %p43 = scmp.eq.s32.totalorder %s42, 0
      %s45 = sadd.s32 %s44, 1
      %s46 = scalar_select %p43, %s44, %s45
      %p49 = pneg %p43
      %p50 = scmp.eq.s32.totalorder %s22, 1
      %p51 = por %p49, %p50
      %p52 = scmp.ne.s32.totalorder %s44, %s47
      %p53 = scmp.eq.s32.totalorder %s22, 0
      %p54 = por %p52, %p53
      %p55 = scmp.ne.s32.totalorder %s44, %s47
      %p56 = scmp.eq.s32.totalorder %s27, 1
      %p57 = por %p55, %p56
      %p58 = scmp.ne.s32.totalorder %s47, %s48
      %p59 = scmp.eq.s32.totalorder %s27, 0
      %p60 = por %p58, %p59
      %p61 = scmp.ne.s32.totalorder %s47, %s48
      %p62 = scmp.eq.s32.totalorder %s28, 1
      %p63 = por %p61, %p62
      %p65 = scmp.ne.s32.totalorder %s48, %s64
      %p66 = scmp.eq.s32.totalorder %s28, 0
      %p67 = por %p65, %p66
      %s69 = sadd.s32 %s68, 1
      %p72 = scmp.eq.s32.totalorder %s22, 1
      %p73 = scmp.ne.s32.totalorder %s68, %s70
      %p74 = scmp.eq.s32.totalorder %s22, 0
      %p75 = por %p73, %p74
      %p76 = scmp.ne.s32.totalorder %s68, %s70
      %p77 = scmp.eq.s32.totalorder %s27, 1
      %p78 = por %p76, %p77
      %p79 = scmp.ne.s32.totalorder %s70, %s71
      %p80 = scmp.eq.s32.totalorder %s27, 0
      %p81 = por %p79, %p80
      %p82 = scmp.ne.s32.totalorder %s70, %s71
      %p83 = scmp.eq.s32.totalorder %s28, 1
      %p84 = por %p82, %p83
      %p86 = scmp.ne.s32.totalorder %s71, %s85
      %p87 = scmp.eq.s32.totalorder %s28, 0
      %p88 = por %p86, %p87
      %s90 = sadd.s32 %s89, 1
      %p93 = scmp.eq.s32.totalorder %s22, 1
      %p94 = scmp.ne.s32.totalorder %s89, %s91
      %p95 = scmp.eq.s32.totalorder %s22, 0
      %p96 = por %p94, %p95
      %p97 = scmp.ne.s32.totalorder %s89, %s91
      %p98 = scmp.eq.s32.totalorder %s27, 1
      %p99 = por %p97, %p98
      %p100 = scmp.ne.s32.totalorder %s91, %s92
      %p101 = scmp.eq.s32.totalorder %s27, 0
      %p102 = por %p100, %p101
      %p103 = scmp.ne.s32.totalorder %s91, %s92
      %p104 = scmp.eq.s32.totalorder %s28, 1
      %p105 = por %p103, %p104
      %p107 = scmp.ne.s32.totalorder %s92, %s106
      %p108 = scmp.eq.s32.totalorder %s28, 0
      %p109 = por %p107, %p108
      %s111 = sadd.s32 %s110, 1
      %p114 = scmp.eq.s32.totalorder %s22, 1
      %p115 = scmp.ne.s32.totalorder %s110, %s112
      %p116 = scmp.eq.s32.totalorder %s22, 0
      %p117 = por %p115, %p116
      %p118 = scmp.ne.s32.totalorder %s110, %s112
      %p119 = scmp.eq.s32.totalorder %s27, 1
      %p120 = por %p118, %p119
      %p121 = scmp.ne.s32.totalorder %s112, %s113
      %p122 = scmp.eq.s32.totalorder %s27, 0
      %p123 = por %p121, %p122
      %p124 = scmp.ne.s32.totalorder %s112, %s113
      %p125 = scmp.eq.s32.totalorder %s28, 1
      %p126 = por %p124, %p125
      %p128 = scmp.ne.s32.totalorder %s113, %s127
      %p129 = scmp.eq.s32.totalorder %s28, 0
      %p130 = por %p128, %p129
      %s132 = sadd.s32 %s131, 1
      %p135 = scmp.eq.s32.totalorder %s22, 1
      %p136 = scmp.ne.s32.totalorder %s131, %s133
      %p137 = scmp.eq.s32.totalorder %s22, 0
      %p138 = por %p136, %p137
      %p139 = scmp.ne.s32.totalorder %s131, %s133
      %p140 = scmp.eq.s32.totalorder %s27, 1
      %p141 = por %p139, %p140
      %p142 = scmp.ne.s32.totalorder %s133, %s134
      %p143 = scmp.eq.s32.totalorder %s27, 0
      %p144 = por %p142, %p143
      %p145 = scmp.ne.s32.totalorder %s133, %s134
      %p146 = scmp.eq.s32.totalorder %s28, 1
      %p147 = por %p145, %p146
      %p149 = scmp.ne.s32.totalorder %s134, %s148
      %p150 = scmp.eq.s32.totalorder %s28, 0
      %p151 = por %p149, %p150
      %s153 = sadd.s32 %s152, 1
      %p156 = scmp.eq.s32.totalorder %s22, 1
      %p157 = scmp.ne.s32.totalorder %s152, %s154
      %p158 = scmp.eq.s32.totalorder %s22, 0
      %p159 = por %p157, %p158
      %p160 = scmp.ne.s32.totalorder %s152, %s154
      %p161 = scmp.eq.s32.totalorder %s27, 1
      %p162 = por %p160, %p161
      %p163 = scmp.ne.s32.totalorder %s154, %s155
      %p164 = scmp.eq.s32.totalorder %s27, 0
      %p165 = por %p163, %p164
      %p166 = scmp.ne.s32.totalorder %s154, %s155
      %p167 = scmp.eq.s32.totalorder %s28, 1
      %p168 = por %p166, %p167
      %p170 = scmp.ne.s32.totalorder %s155, %s169
      %p171 = scmp.eq.s32.totalorder %s28, 0
      %p172 = por %p170, %p171
      %s174 = sadd.s32 %s173, 1
      %p177 = scmp.eq.s32.totalorder %s22, 1
      %p178 = scmp.ne.s32.totalorder %s173, %s175
      %p179 = scmp.eq.s32.totalorder %s22, 0
      %p180 = por %p178, %p179
      %p181 = scmp.ne.s32.totalorder %s173, %s175
      %p182 = scmp.eq.s32.totalorder %s27, 1
      %p183 = por %p181, %p182
      %p184 = scmp.ne.s32.totalorder %s175, %s176
      %p185 = scmp.eq.s32.totalorder %s27, 0
      %p186 = por %p184, %p185
      %p187 = scmp.ne.s32.totalorder %s175, %s176
      %p188 = scmp.eq.s32.totalorder %s28, 1
      %p189 = por %p187, %p188
      %p191 = scmp.ne.s32.totalorder %s176, %s190
      %p192 = scmp.eq.s32.totalorder %s28, 0
      %p193 = por %p191, %p192
      %s195 = sadd.s32 %s194, 1
      %p198 = scmp.eq.s32.totalorder %s22, 1
      %p199 = scmp.ne.s32.totalorder %s194, %s196
      %p200 = scmp.eq.s32.totalorder %s22, 0
      %p201 = por %p199, %p200
      %p202 = scmp.ne.s32.totalorder %s194, %s196
      %p203 = scmp.eq.s32.totalorder %s27, 1
      %p204 = por %p202, %p203
      %p205 = scmp.ne.s32.totalorder %s196, %s197
      %p206 = scmp.eq.s32.totalorder %s27, 0
      %p207 = por %p205, %p206
      %p208 = scmp.ne.s32.totalorder %s196, %s197
      %p209 = scmp.eq.s32.totalorder %s28, 1
      %p210 = por %p208, %p209
      %p212 = scmp.ne.s32.totalorder %s197, %s211
      %p213 = scmp.eq.s32.totalorder %s28, 0
      %p214 = por %p212, %p213
      %s216 = sadd.s32 %s215, 1
      %p219 = scmp.eq.s32.totalorder %s22, 1
      %p220 = scmp.ne.s32.totalorder %s215, %s217
      %p221 = scmp.eq.s32.totalorder %s22, 0
      %p222 = por %p220, %p221
      %p223 = scmp.ne.s32.totalorder %s215, %s217
      %p224 = scmp.eq.s32.totalorder %s27, 1
      %p225 = por %p223, %p224
      %p226 = scmp.ne.s32.totalorder %s217, %s218
      %p227 = scmp.eq.s32.totalorder %s27, 0
      %p228 = por %p226, %p227
      %p229 = scmp.ne.s32.totalorder %s217, %s218
      %p230 = scmp.eq.s32.totalorder %s28, 1
      %p231 = por %p229, %p230
      %p233 = scmp.ne.s32.totalorder %s218, %s232
      %p234 = scmp.eq.s32.totalorder %s28, 0
      %p235 = por %p233, %p234
      %s237 = sadd.s32 %s236, 1
      %p240 = scmp.eq.s32.totalorder %s22, 1
      %p241 = scmp.ne.s32.totalorder %s236, %s238
      %p242 = scmp.eq.s32.totalorder %s22, 0
      %p243 = por %p241, %p242
      %p244 = scmp.ne.s32.totalorder %s236, %s238
      %p245 = scmp.eq.s32.totalorder %s27, 1
      %p246 = por %p244, %p245
      %p247 = scmp.ne.s32.totalorder %s238, %s239
      %p248 = scmp.eq.s32.totalorder %s27, 0
      %p249 = por %p247, %p248
      %p250 = scmp.ne.s32.totalorder %s238, %s239
      %p251 = scmp.eq.s32.totalorder %s28, 1
      %p252 = por %p250, %p251
      %p254 = scmp.ne.s32.totalorder %s239, %s253
      %p255 = scmp.eq.s32.totalorder %s28, 0
      %p256 = por %p254, %p255
      %s257 = ssub.s32 %s29, %s41
      %s258 = ssub.s32 %s30, %s37
      %s259 = sor.u32 %s257, %s258
      %p260 = scmp.eq.s32.totalorder %s259, 0
      %s262 = sadd.s32 %s261, 1
      %s263 = scalar_select %p260, %s261, %s262
      %p266 = pneg %p260
      %p267 = scmp.eq.s32.totalorder %s22, 1
      %p268 = por %p266, %p267
      %p269 = scmp.ne.s32.totalorder %s261, %s264
      %p270 = scmp.eq.s32.totalorder %s22, 0
      %p271 = por %p269, %p270
      %p272 = scmp.ne.s32.totalorder %s261, %s264
      %p273 = scmp.eq.s32.totalorder %s27, 1
      %p274 = por %p272, %p273
      %p275 = scmp.ne.s32.totalorder %s264, %s265
      %p276 = scmp.eq.s32.totalorder %s27, 0
      %p277 = por %p275, %p276
      %p278 = scmp.ne.s32.totalorder %s264, %s265
      %p279 = scmp.eq.s32.totalorder %s28, 1
      %p280 = por %p278, %p279
      %p282 = scmp.ne.s32.totalorder %s265, %s281
      %p283 = scmp.eq.s32.totalorder %s28, 0
      %p284 = por %p282, %p283
      %p285 = scmp.le.s32.totalorder 1, %s22
      %p286 = scmp.lt.s32.totalorder %s22, 3
      %p287 = pnand %p285, %p286
      %p288 = pneg %p287
      // Predicated region
      $region9: #{tpu_custom_call.1} parent=5 // pred_check
        _
      $region10: #{tpu_custom_call.1} parent=5 // pred_check_branch
        %290 = sbr.rel (%p287) target = $region12
      $region11: #{tpu_custom_call.1} parent=5 // pred_region
        %s291 = ssub.s32 %s22, 1
        // Predicated region
        $region13: #{tpu_custom_call.1} parent=11 // pred_check
          %p292 = pneg %p81
        $region14: #{tpu_custom_call.1} parent=11 // pred_check_branch
          %294 = sbr.rel (%p292) target = $region16
        $region15: #{tpu_custom_call.1} parent=11 // pred_region
          _
        $region16: #{tpu_custom_call.1} parent=11 // pred_fallthru
          _
        // Predicated region
        $region17: #{tpu_custom_call.1} parent=11 // pred_check
          %p295 = pneg %p102
        $region18: #{tpu_custom_call.1} parent=11 // pred_check_branch
          %297 = sbr.rel (%p295) target = $region20
        $region19: #{tpu_custom_call.1} parent=11 // pred_region
          _
        $region20: #{tpu_custom_call.1} parent=11 // pred_fallthru
          _
        // Predicated region
        $region21: #{tpu_custom_call.1} parent=11 // pred_check
          %p298 = pneg %p123
        $region22: #{tpu_custom_call.1} parent=11 // pred_check_branch
          %300 = sbr.rel (%p298) target = $region24
        $region23: #{tpu_custom_call.1} parent=11 // pred_region
          _
        $region24: #{tpu_custom_call.1} parent=11 // pred_fallthru
          _
        // Predicated region
        $region25: #{tpu_custom_call.1} parent=11 // pred_check
          %p301 = pneg %p144
        $region26: #{tpu_custom_call.1} parent=11 // pred_check_branch
          %303 = sbr.rel (%p301) target = $region28
        $region27: #{tpu_custom_call.1} parent=11 // pred_region
          %s305 = ssub.s32 64, 64
          %306 = vsyncadd [#allocation7], %s305
          %s308 = sshll.u32 %s4, 4
          %s309 = int_to_ptr.vmem [resolvable:$true] %s308
          %311 = dma.vmem_to_smem %s309, 64, [#allocation5], [#allocation7]
        $region28: #{tpu_custom_call.1} parent=11 // pred_fallthru
          _
        // Predicated region
        $region29: #{tpu_custom_call.1} parent=11 // pred_check
          %p312 = pneg %p165
        $region30: #{tpu_custom_call.1} parent=11 // pred_check_branch
          %314 = sbr.rel (%p312) target = $region32
        $region31: #{tpu_custom_call.1} parent=11 // pred_region
          %s316 = ssub.s32 16, 16
          %317 = vsyncadd [#allocation9], %s316
          %s319 = sshll.u32 %s5, 4
          %s320 = int_to_ptr.vmem [resolvable:$true] %s319
          %322 = dma.vmem_to_smem %s320, 16, [#allocation8], [#allocation9]
        $region32: #{tpu_custom_call.1} parent=11 // pred_fallthru
          _
        // Predicated region
        $region33: #{tpu_custom_call.1} parent=11 // pred_check
          %p323 = pneg %p186
        $region34: #{tpu_custom_call.1} parent=11 // pred_check_branch
          %325 = sbr.rel (%p323) target = $region36
        $region35: #{tpu_custom_call.1} parent=11 // pred_region
          %s327 = ssub.s32 16, 16
          %328 = vsyncadd [#allocation9], %s327
          %s330 = sshll.u32 %s6, 4
          %s331 = int_to_ptr.vmem [resolvable:$true] %s330
          %333 = dma.vmem_to_smem %s331, 16, [#allocation10], [#allocation9]
        $region36: #{tpu_custom_call.1} parent=11 // pred_fallthru
          _
        // Predicated region
        $region37: #{tpu_custom_call.1} parent=11 // pred_check
          %p334 = pneg %p207
        $region38: #{tpu_custom_call.1} parent=11 // pred_check_branch
          %336 = sbr.rel (%p334) target = $region40
        $region39: #{tpu_custom_call.1} parent=11 // pred_region
          %s338 = ssub.s32 16, 16
          %339 = vsyncadd [#allocation12], %s338
          %s341 = sshll.u32 %s7, 4
          %s342 = int_to_ptr.vmem [resolvable:$true] %s341
          %344 = dma.vmem_to_smem %s342, 16, [#allocation11], [#allocation12]
        $region40: #{tpu_custom_call.1} parent=11 // pred_fallthru
          _
        // Predicated region
        $region41: #{tpu_custom_call.1} parent=11 // pred_check
          %p345 = pneg %p228
        $region42: #{tpu_custom_call.1} parent=11 // pred_check_branch
          %347 = sbr.rel (%p345) target = $region44
        $region43: #{tpu_custom_call.1} parent=11 // pred_region
          _
        $region44: #{tpu_custom_call.1} parent=11 // pred_fallthru
          _
        // Predicated region
        $region45: #{tpu_custom_call.1} parent=11 // pred_check
          %p348 = pneg %p249
        $region46: #{tpu_custom_call.1} parent=11 // pred_check_branch
          %350 = sbr.rel (%p348) target = $region48
        $region47: #{tpu_custom_call.1} parent=11 // pred_region
          _
        $region48: #{tpu_custom_call.1} parent=11 // pred_fallthru
          _
      $region12: #{tpu_custom_call.1} parent=5 // pred_fallthru
        _
      %p351 = scmp.lt.s32.totalorder %s22, 2
      // Predicated region
      $region49: #{tpu_custom_call.1} parent=5 // pred_check
        %p352 = pneg %p351
      $region50: #{tpu_custom_call.1} parent=5 // pred_check_branch
        %354 = sbr.rel (%p352) target = $region52
      $region51: #{tpu_custom_call.1} parent=5 // pred_region
        // Predicated region
        $region53: #{tpu_custom_call.1} parent=51 // pred_check
          %p355 = pneg %p54
        $region54: #{tpu_custom_call.1} parent=51 // pred_check_branch
          %357 = sbr.rel (%p355) target = $region56
        $region55: #{tpu_custom_call.1} parent=51 // pred_region
          %p358 = scmp.lt.s32.totalorder %s29, 1
          %s359 = scalar_select %p358, %s29, 1
          %s360 = smul.addr %s359, 4
          %s361 = scalar_lea.vmem %s0, %s360
        $region56: #{tpu_custom_call.1} parent=51 // pred_fallthru
          _
      $region52: #{tpu_custom_call.1} parent=5 // pred_fallthru
        _
      %p362 = scmp.le.s32.totalorder 1, %s22
      %p363 = scmp.lt.s32.totalorder %s22, 3
      %p364 = pnand %p362, %p363
      %p365 = pneg %p364
      // Predicated region
      $region57: #{tpu_custom_call.1} parent=5 // pred_check
        _
      $region58: #{tpu_custom_call.1} parent=5 // pred_check_branch
        %367 = sbr.rel (%p364) target = $region60
      $region59: #{tpu_custom_call.1} parent=5 // pred_region
        %s368 = ssub.s32 %s22, 1
        // Predicated region
        $region61: #{tpu_custom_call.1} parent=59 // pred_check
          %p369 = pneg %p144
        $region62: #{tpu_custom_call.1} parent=59 // pred_check_branch
          %371 = sbr.rel (%p369) target = $region64
        $region63: #{tpu_custom_call.1} parent=59 // pred_region
          %372 = dma.done [#allocation7], 64
        $region64: #{tpu_custom_call.1} parent=59 // pred_fallthru
          _
        // Predicated region
        $region65: #{tpu_custom_call.1} parent=59 // pred_check
          %p373 = pneg %p165
        $region66: #{tpu_custom_call.1} parent=59 // pred_check_branch
          %375 = sbr.rel (%p373) target = $region68
        $region67: #{tpu_custom_call.1} parent=59 // pred_region
          %376 = dma.done [#allocation9], 16
        $region68: #{tpu_custom_call.1} parent=59 // pred_fallthru
          _
        // Predicated region
        $region69: #{tpu_custom_call.1} parent=59 // pred_check
          %p377 = pneg %p186
        $region70: #{tpu_custom_call.1} parent=59 // pred_check_branch
          %379 = sbr.rel (%p377) target = $region72
        $region71: #{tpu_custom_call.1} parent=59 // pred_region
          %380 = dma.done [#allocation9], 16
        $region72: #{tpu_custom_call.1} parent=59 // pred_fallthru
          _
        // Predicated region
        $region73: #{tpu_custom_call.1} parent=59 // pred_check
          %p381 = pneg %p207
        $region74: #{tpu_custom_call.1} parent=59 // pred_check_branch
          %383 = sbr.rel (%p381) target = $region76
        $region75: #{tpu_custom_call.1} parent=59 // pred_region
          %384 = dma.done [#allocation12], 16
        $region76: #{tpu_custom_call.1} parent=59 // pred_fallthru
          _
        %385 = sfence
        %p386 = scmp.lt.s32.totalorder %s31, 1
        %s387 = scalar_select %p386, %s31, 1
        %s388 = smul.addr %s387, 4
        %s389 = scalar_lea.vmem %s0, %s388
        %p390 = pneg %p60
        %p391 = pneg %p57
        %p392 = pneg %p81
        %p393 = pneg %p78
        %p394 = pneg %p102
        %p395 = pneg %p99
        %p396 = pneg %p123
        %p397 = pneg %p120
        %p398 = pneg %p144
        %p399 = pneg %p141
        %p400 = pneg %p165
        %p401 = pneg %p162
        %p402 = pneg %p186
        %p403 = pneg %p183
        %p404 = pneg %p207
        %p405 = pneg %p204
        %p406 = pneg %p228
        %p407 = pneg %p225
        %p408 = pneg %p249
        %p409 = pneg %p246
        %p410 = pneg %p277
        %p411 = pneg %p274
        %s412 = sand.u32 %s264, 1
        %s413 = scalar_lea.sflag [#allocation6], %s412
        %s414 = sand.u32 %s264, 1
        %s415 = smul.addr %s414, 8
        %s416 = scalar_lea.vmem [#allocation13], %s415
        %p417 = scmp.lt.s32.totalorder %s31, 1
        %s418 = scalar_select %p417, %s31, 1
        %s419 = smul.addr %s418, 4
        %s420 = scalar_lea.vmem %s0, %s419
        %p422 = scmp.eq.s32.totalorder %s32, 0
        // Predicated region
        $region77: #{tpu_custom_call.1} parent=59 // pred_check
          %p423 = pneg %p422
        $region78: #{tpu_custom_call.1} parent=59 // pred_check_branch
          %425 = sbr.rel (%p423) target = $region80
        $region79: #{tpu_custom_call.1} parent=59 // pred_region
          %v426 = vld [vmem:[%s420] sm:$0xf]
          %v427 = vld [vmem:[%s2] sm:$0xf]
          %v428 = vld [vmem:[%s2 + $0x4] sm:$0xf]
          %v429 = vld [vmem:[%s2 + $0x8] sm:$0xf]
          %v430 = vld [vmem:[%s2 + $0xc] sm:$0xf]
          %v435 = vunpack.c.l.b16 %v427
          %v436 = vunpack.c.l.b16 %v428
          %v437 = vunpack.c.l.b16 %v429
          %v438 = vunpack.c.l.b16 %v430
          %v439 = vpack.c.b16 %v436, %v435
          %v440 = vpack.c.b16 %v438, %v437
          %vm443 = vcmask 261120
          %v445 = vsel %vm443, %v426, 0
          %447 = vmatprep.subr.bf16.mxu0 0
          %448 = vmatpush1.bf16.msra.mxu0 %v439
          %449 = vmatprep.subr.bf16.mxu0 0
          %450 = vmatpush1.bf16.msra.mxu0 %v440
          %451 = vmatprep.subr.bf16.mxu0 0
          %452 = vmatpush1.bf16.msra.mxu0 0
          %453 = vmatprep.subr.bf16.mxu0 0
          %454 = vmatpush1.bf16.msra.mxu0 0
          %455 = vmatprep.subr.bf16.mxu0 0
          %456 = vmatpush1.bf16.msra.mxu0 0
          %457 = vmatprep.subr.bf16.mxu0 0
          %458 = vmatpush1.bf16.msra.mxu0 0
          %459 = vmatprep.subr.bf16.mxu0 0
          %460 = vmatpush1.bf16.msra.mxu0 0
          %461 = vmatprep.subr.bf16.mxu0 0
          %462 = vmatpush1.bf16.msra.mxu0 0
          %463 = vmatprep.subr.bf16.mxu0 0
          %464 = vmatpush1.bf16.msra.mxu0 0
          %465 = vmatprep.subr.bf16.mxu0 0
          %466 = vmatpush1.bf16.msra.mxu0 0
          %467 = vmatprep.subr.bf16.mxu0 0
          %468 = vmatpush1.bf16.msra.mxu0 0
          %469 = vmatprep.subr.bf16.mxu0 0
          %470 = vmatpush1.bf16.msra.mxu0 0
          %471 = vmatprep.subr.bf16.mxu0 0
          %472 = vmatpush1.bf16.msra.mxu0 0
          %473 = vmatprep.subr.bf16.mxu0 0
          %474 = vmatpush1.bf16.msra.mxu0 0
          %475 = vmatprep.subr.bf16.mxu0 0
          %476 = vmatpush1.bf16.msra.mxu0 0
          %477 = vmatprep.subr.bf16.mxu0 0
          %478 = vmatpush1.bf16.msra.mxu0 0
          %479 = vmatprep.mubr.bf16.mxu0 0
          %480 = vmatmul.mubr.bf16.gmra.mrb[0].mxu0 %v445
          %v481 = vpop.f32.mrb[0].mxu0
          %v482 = vadd.f32 0.0, %v481
          %v483 = vpop.f32.mrb[0].mxu0
          %v484 = vpop.f32.mrb[0].mxu0
          %v485 = vpop.f32.mrb[0].mxu0
          %486 = vdwg.mxu0
          %v487 = vld [vmem:[%s3] sm:$0xf]
          %v488 = vld [vmem:[%s3 + $0x4] sm:$0xf]
          %v489 = vld [vmem:[%s3 + $0x8] sm:$0xf]
          %v490 = vld [vmem:[%s3 + $0xc] sm:$0xf]
          %v495 = vunpack.c.l.b16 %v487
          %v496 = vunpack.c.l.b16 %v488
          %v497 = vunpack.c.l.b16 %v489
          %v498 = vunpack.c.l.b16 %v490
          %v499 = vpack.c.b16 %v496, %v495
          %v500 = vpack.c.b16 %v498, %v497
          %503 = vmatprep.subr.bf16.mxu0 0
          %504 = vmatpush1.bf16.msra.mxu0 %v499
          %505 = vmatprep.subr.bf16.mxu0 0
          %506 = vmatpush1.bf16.msra.mxu0 %v500
          %507 = vmatprep.subr.bf16.mxu0 0
          %508 = vmatpush1.bf16.msra.mxu0 0
          %509 = vmatprep.subr.bf16.mxu0 0
          %510 = vmatpush1.bf16.msra.mxu0 0
          %511 = vmatprep.subr.bf16.mxu0 0
          %512 = vmatpush1.bf16.msra.mxu0 0
          %513 = vmatprep.subr.bf16.mxu0 0
          %514 = vmatpush1.bf16.msra.mxu0 0
          %515 = vmatprep.subr.bf16.mxu0 0
          %516 = vmatpush1.bf16.msra.mxu0 0
          %517 = vmatprep.subr.bf16.mxu0 0
          %518 = vmatpush1.bf16.msra.mxu0 0
          %519 = vmatprep.subr.bf16.mxu0 0
          %520 = vmatpush1.bf16.msra.mxu0 0
          %521 = vmatprep.subr.bf16.mxu0 0
          %522 = vmatpush1.bf16.msra.mxu0 0
          %523 = vmatprep.subr.bf16.mxu0 0
          %524 = vmatpush1.bf16.msra.mxu0 0
          %525 = vmatprep.subr.bf16.mxu0 0
          %526 = vmatpush1.bf16.msra.mxu0 0
          %527 = vmatprep.subr.bf16.mxu0 0
          %528 = vmatpush1.bf16.msra.mxu0 0
          %529 = vmatprep.subr.bf16.mxu0 0
          %530 = vmatpush1.bf16.msra.mxu0 0
          %531 = vmatprep.subr.bf16.mxu0 0
          %532 = vmatpush1.bf16.msra.mxu0 0
          %533 = vmatprep.subr.bf16.mxu0 0
          %534 = vmatpush1.bf16.msra.mxu0 0
          %535 = vmatprep.mubr.bf16.mxu0 0
          %536 = vmatmul.mubr.bf16.gmra.mrb[0].mxu0 %v445
          %v537 = vpop.f32.mrb[0].mxu0
          %v538 = vadd.f32 0.0, %v537
          %v539 = vpop.f32.mrb[0].mxu0
          %v540 = vpop.f32.mrb[0].mxu0
          %v541 = vpop.f32.mrb[0].mxu0
          %542 = vdwg.mxu0
          %v543 = vpack.c.bf16 %v482, %v482
          %vm544 = vcmask 60416
          %545 = vst.msk [vmem:[#allocation2] sm:$0xf] %vm544, %v543
          %v546 = vpack.c.bf16 %v538, %v538
          %547 = vst.msk [vmem:[#allocation3] sm:$0xf] %vm544, %v546
          %s548 = scalar_lea.vmem %s2, 16
          %v549 = vld [vmem:[%s548] sm:$0xf]
          %v550 = vld [vmem:[%s548 + $0x4] sm:$0xf]
          %v551 = vld [vmem:[%s548 + $0x8] sm:$0xf]
          %v552 = vld [vmem:[%s548 + $0xc] sm:$0xf]
          %v557 = vunpack.c.l.b16 %v549
          %v558 = vunpack.c.l.b16 %v550
          %v559 = vunpack.c.l.b16 %v551
          %v560 = vunpack.c.l.b16 %v552
          %v561 = vpack.c.b16 %v558, %v557
          %v562 = vpack.c.b16 %v560, %v559
          %565 = vmatprep.subr.bf16.mxu0 0
          %566 = vmatpush1.bf16.msra.mxu0 %v561
          %567 = vmatprep.subr.bf16.mxu0 0
          %568 = vmatpush1.bf16.msra.mxu0 %v562
          %569 = vmatprep.subr.bf16.mxu0 0
          %570 = vmatpush1.bf16.msra.mxu0 0
          %571 = vmatprep.subr.bf16.mxu0 0
          %572 = vmatpush1.bf16.msra.mxu0 0
          %573 = vmatprep.subr.bf16.mxu0 0
          %574 = vmatpush1.bf16.msra.mxu0 0
          %575 = vmatprep.subr.bf16.mxu0 0
          %576 = vmatpush1.bf16.msra.mxu0 0
          %577 = vmatprep.subr.bf16.mxu0 0
          %578 = vmatpush1.bf16.msra.mxu0 0
          %579 = vmatprep.subr.bf16.mxu0 0
          %580 = vmatpush1.bf16.msra.mxu0 0
          %581 = vmatprep.subr.bf16.mxu0 0
          %582 = vmatpush1.bf16.msra.mxu0 0
          %583 = vmatprep.subr.bf16.mxu0 0
          %584 = vmatpush1.bf16.msra.mxu0 0
          %585 = vmatprep.subr.bf16.mxu0 0
          %586 = vmatpush1.bf16.msra.mxu0 0
          %587 = vmatprep.subr.bf16.mxu0 0
          %588 = vmatpush1.bf16.msra.mxu0 0
          %589 = vmatprep.subr.bf16.mxu0 0
          %590 = vmatpush1.bf16.msra.mxu0 0
          %591 = vmatprep.subr.bf16.mxu0 0
          %592 = vmatpush1.bf16.msra.mxu0 0
          %593 = vmatprep.subr.bf16.mxu0 0
          %594 = vmatpush1.bf16.msra.mxu0 0
          %595 = vmatprep.subr.bf16.mxu0 0
          %596 = vmatpush1.bf16.msra.mxu0 0
          %597 = vmatprep.mubr.bf16.mxu0 0
          %598 = vmatmul.mubr.bf16.gmra.mrb[0].mxu0 %v445
          %v599 = vpop.f32.mrb[0].mxu0
          %v600 = vadd.f32 0.0, %v599
          %v601 = vpop.f32.mrb[0].mxu0
          %v602 = vpop.f32.mrb[0].mxu0
          %v603 = vpop.f32.mrb[0].mxu0
          %604 = vdwg.mxu0
          %s605 = scalar_lea.vmem %s3, 16
          %v606 = vld [vmem:[%s605] sm:$0xf]
          %v607 = vld [vmem:[%s605 + $0x4] sm:$0xf]
          %v608 = vld [vmem:[%s605 + $0x8] sm:$0xf]
          %v609 = vld [vmem:[%s605 + $0xc] sm:$0xf]
          %v614 = vunpack.c.l.b16 %v606
          %v615 = vunpack.c.l.b16 %v607
          %v616 = vunpack.c.l.b16 %v608
          %v617 = vunpack.c.l.b16 %v609
          %v618 = vpack.c.b16 %v615, %v614
          %v619 = vpack.c.b16 %v617, %v616
          %622 = vmatprep.subr.bf16.mxu0 0
          %623 = vmatpush1.bf16.msra.mxu0 %v618
          %624 = vmatprep.subr.bf16.mxu0 0
          %625 = vmatpush1.bf16.msra.mxu0 %v619
          %626 = vmatprep.subr.bf16.mxu0 0
          %627 = vmatpush1.bf16.msra.mxu0 0
          %628 = vmatprep.subr.bf16.mxu0 0
          %629 = vmatpush1.bf16.msra.mxu0 0
          %630 = vmatprep.subr.bf16.mxu0 0
          %631 = vmatpush1.bf16.msra.mxu0 0
          %632 = vmatprep.subr.bf16.mxu0 0
          %633 = vmatpush1.bf16.msra.mxu0 0
          %634 = vmatprep.subr.bf16.mxu0 0
          %635 = vmatpush1.bf16.msra.mxu0 0
          %636 = vmatprep.subr.bf16.mxu0 0
          %637 = vmatpush1.bf16.msra.mxu0 0
          %638 = vmatprep.subr.bf16.mxu0 0
          %639 = vmatpush1.bf16.msra.mxu0 0
          %640 = vmatprep.subr.bf16.mxu0 0
          %641 = vmatpush1.bf16.msra.mxu0 0
          %642 = vmatprep.subr.bf16.mxu0 0
          %643 = vmatpush1.bf16.msra.mxu0 0
          %644 = vmatprep.subr.bf16.mxu0 0
          %645 = vmatpush1.bf16.msra.mxu0 0
          %646 = vmatprep.subr.bf16.mxu0 0
          %647 = vmatpush1.bf16.msra.mxu0 0
          %648 = vmatprep.subr.bf16.mxu0 0
          %649 = vmatpush1.bf16.msra.mxu0 0
          %650 = vmatprep.subr.bf16.mxu0 0
          %651 = vmatpush1.bf16.msra.mxu0 0
          %652 = vmatprep.subr.bf16.mxu0 0
          %653 = vmatpush1.bf16.msra.mxu0 0
          %654 = vmatprep.mubr.bf16.mxu0 0
          %655 = vmatmul.mubr.bf16.gmra.mrb[0].mxu0 %v445
          %v656 = vpop.f32.mrb[0].mxu0
          %v657 = vadd.f32 0.0, %v656
          %v658 = vpop.f32.mrb[0].mxu0
          %v659 = vpop.f32.mrb[0].mxu0
          %v660 = vpop.f32.mrb[0].mxu0
          %661 = vdwg.mxu0
          %v662 = vpack.c.bf16 %v600, %v600
          %s663 = scalar_lea.vmem [#allocation2], 4
          %664 = vst.msk [vmem:[%s663] sm:$0xf] %vm544, %v662
          %v665 = vpack.c.bf16 %v657, %v657
          %s666 = scalar_lea.vmem [#allocation3], 4
          %667 = vst.msk [vmem:[%s666] sm:$0xf] %vm544, %v665
          %s668 = scalar_lea.vmem %s2, 32
          %v669 = vld [vmem:[%s668] sm:$0xf]
          %v670 = vld [vmem:[%s668 + $0x4] sm:$0xf]
          %v671 = vld [vmem:[%s668 + $0x8] sm:$0xf]
          %v672 = vld [vmem:[%s668 + $0xc] sm:$0xf]
          %v677 = vunpack.c.l.b16 %v669
          %v678 = vunpack.c.l.b16 %v670
          %v679 = vunpack.c.l.b16 %v671
          %v680 = vunpack.c.l.b16 %v672
          %v681 = vpack.c.b16 %v678, %v677
          %v682 = vpack.c.b16 %v680, %v679
          %685 = vmatprep.subr.bf16.mxu0 0
          %686 = vmatpush1.bf16.msra.mxu0 %v681
          %687 = vmatprep.subr.bf16.mxu0 0
          %688 = vmatpush1.bf16.msra.mxu0 %v682
          %689 = vmatprep.subr.bf16.mxu0 0
          %690 = vmatpush1.bf16.msra.mxu0 0
          %691 = vmatprep.subr.bf16.mxu0 0
          %692 = vmatpush1.bf16.msra.mxu0 0
          %693 = vmatprep.subr.bf16.mxu0 0
          %694 = vmatpush1.bf16.msra.mxu0 0
          %695 = vmatprep.subr.bf16.mxu0 0
          %696 = vmatpush1.bf16.msra.mxu0 0
          %697 = vmatprep.subr.bf16.mxu0 0
          %698 = vmatpush1.bf16.msra.mxu0 0
          %699 = vmatprep.subr.bf16.mxu0 0
          %700 = vmatpush1.bf16.msra.mxu0 0
          %701 = vmatprep.subr.bf16.mxu0 0
          %702 = vmatpush1.bf16.msra.mxu0 0
          %703 = vmatprep.subr.bf16.mxu0 0
          %704 = vmatpush1.bf16.msra.mxu0 0
          %705 = vmatprep.subr.bf16.mxu0 0
          %706 = vmatpush1.bf16.msra.mxu0 0
          %707 = vmatprep.subr.bf16.mxu0 0
          %708 = vmatpush1.bf16.msra.mxu0 0
          %709 = vmatprep.subr.bf16.mxu0 0
          %710 = vmatpush1.bf16.msra.mxu0 0
          %711 = vmatprep.subr.bf16.mxu0 0
          %712 = vmatpush1.bf16.msra.mxu0 0
          %713 = vmatprep.subr.bf16.mxu0 0
          %714 = vmatpush1.bf16.msra.mxu0 0
          %715 = vmatprep.subr.bf16.mxu0 0
          %716 = vmatpush1.bf16.msra.mxu0 0
          %717 = vmatprep.mubr.bf16.mxu0 0
          %718 = vmatmul.mubr.bf16.gmra.mrb[0].mxu0 %v445
          %v719 = vpop.f32.mrb[0].mxu0
          %v720 = vadd.f32 0.0, %v719
          %v721 = vpop.f32.mrb[0].mxu0
          %v722 = vpop.f32.mrb[0].mxu0
          %v723 = vpop.f32.mrb[0].mxu0
          %724 = vdwg.mxu0
          %s725 = scalar_lea.vmem %s3, 32
          %v726 = vld [vmem:[%s725] sm:$0xf]
          %v727 = vld [vmem:[%s725 + $0x4] sm:$0xf]
          %v728 = vld [vmem:[%s725 + $0x8] sm:$0xf]
          %v729 = vld [vmem:[%s725 + $0xc] sm:$0xf]
          %v734 = vunpack.c.l.b16 %v726
          %v735 = vunpack.c.l.b16 %v727
          %v736 = vunpack.c.l.b16 %v728
          %v737 = vunpack.c.l.b16 %v729
          %v738 = vpack.c.b16 %v735, %v734
          %v739 = vpack.c.b16 %v737, %v736
          %742 = vmatprep.subr.bf16.mxu0 0
          %743 = vmatpush1.bf16.msra.mxu0 %v738
          %744 = vmatprep.subr.bf16.mxu0 0
          %745 = vmatpush1.bf16.msra.mxu0 %v739
          %746 = vmatprep.subr.bf16.mxu0 0
          %747 = vmatpush1.bf16.msra.mxu0 0
          %748 = vmatprep.subr.bf16.mxu0 0
          %749 = vmatpush1.bf16.msra.mxu0 0
          %750 = vmatprep.subr.bf16.mxu0 0
          %751 = vmatpush1.bf16.msra.mxu0 0
          %752 = vmatprep.subr.bf16.mxu0 0
          %753 = vmatpush1.bf16.msra.mxu0 0
          %754 = vmatprep.subr.bf16.mxu0 0
          %755 = vmatpush1.bf16.msra.mxu0 0
          %756 = vmatprep.subr.bf16.mxu0 0
          %757 = vmatpush1.bf16.msra.mxu0 0
          %758 = vmatprep.subr.bf16.mxu0 0
          %759 = vmatpush1.bf16.msra.mxu0 0
          %760 = vmatprep.subr.bf16.mxu0 0
          %761 = vmatpush1.bf16.msra.mxu0 0
          %762 = vmatprep.subr.bf16.mxu0 0
          %763 = vmatpush1.bf16.msra.mxu0 0
          %764 = vmatprep.subr.bf16.mxu0 0
          %765 = vmatpush1.bf16.msra.mxu0 0
          %766 = vmatprep.subr.bf16.mxu0 0
          %767 = vmatpush1.bf16.msra.mxu0 0
          %768 = vmatprep.subr.bf16.mxu0 0
          %769 = vmatpush1.bf16.msra.mxu0 0
          %770 = vmatprep.subr.bf16.mxu0 0
          %771 = vmatpush1.bf16.msra.mxu0 0
          %772 = vmatprep.subr.bf16.mxu0 0
          %773 = vmatpush1.bf16.msra.mxu0 0
          %774 = vmatprep.mubr.bf16.mxu0 0
          %775 = vmatmul.mubr.bf16.gmra.mrb[0].mxu0 %v445
          %v776 = vpop.f32.mrb[0].mxu0
          %v777 = vadd.f32 0.0, %v776
          %v778 = vpop.f32.mrb[0].mxu0
          %v779 = vpop.f32.mrb[0].mxu0
          %v780 = vpop.f32.mrb[0].mxu0
          %781 = vdwg.mxu0
          %v782 = vpack.c.bf16 %v720, %v720
          %s783 = scalar_lea.vmem [#allocation2], 8
          %784 = vst.msk [vmem:[%s783] sm:$0xf] %vm544, %v782
          %v785 = vpack.c.bf16 %v777, %v777
          %s786 = scalar_lea.vmem [#allocation3], 8
          %787 = vst.msk [vmem:[%s786] sm:$0xf] %vm544, %v785
          %s788 = scalar_lea.vmem %s2, 48
          %v789 = vld [vmem:[%s788] sm:$0xf]
          %v790 = vld [vmem:[%s788 + $0x4] sm:$0xf]
          %v791 = vld [vmem:[%s788 + $0x8] sm:$0xf]
          %v792 = vld [vmem:[%s788 + $0xc] sm:$0xf]
          %v797 = vunpack.c.l.b16 %v789
          %v798 = vunpack.c.l.b16 %v790
          %v799 = vunpack.c.l.b16 %v791
          %v800 = vunpack.c.l.b16 %v792
          %v801 = vpack.c.b16 %v798, %v797
          %v802 = vpack.c.b16 %v800, %v799
          %805 = vmatprep.subr.bf16.mxu0 0
          %806 = vmatpush1.bf16.msra.mxu0 %v801
          %807 = vmatprep.subr.bf16.mxu0 0
          %808 = vmatpush1.bf16.msra.mxu0 %v802
          %809 = vmatprep.subr.bf16.mxu0 0
          %810 = vmatpush1.bf16.msra.mxu0 0
          %811 = vmatprep.subr.bf16.mxu0 0
          %812 = vmatpush1.bf16.msra.mxu0 0
          %813 = vmatprep.subr.bf16.mxu0 0
          %814 = vmatpush1.bf16.msra.mxu0 0
          %815 = vmatprep.subr.bf16.mxu0 0
          %816 = vmatpush1.bf16.msra.mxu0 0
          %817 = vmatprep.subr.bf16.mxu0 0
          %818 = vmatpush1.bf16.msra.mxu0 0
          %819 = vmatprep.subr.bf16.mxu0 0
          %820 = vmatpush1.bf16.msra.mxu0 0
          %821 = vmatprep.subr.bf16.mxu0 0
          %822 = vmatpush1.bf16.msra.mxu0 0
          %823 = vmatprep.subr.bf16.mxu0 0
          %824 = vmatpush1.bf16.msra.mxu0 0
          %825 = vmatprep.subr.bf16.mxu0 0
          %826 = vmatpush1.bf16.msra.mxu0 0
          %827 = vmatprep.subr.bf16.mxu0 0
          %828 = vmatpush1.bf16.msra.mxu0 0
          %829 = vmatprep.subr.bf16.mxu0 0
          %830 = vmatpush1.bf16.msra.mxu0 0
          %831 = vmatprep.subr.bf16.mxu0 0
          %832 = vmatpush1.bf16.msra.mxu0 0
          %833 = vmatprep.subr.bf16.mxu0 0
          %834 = vmatpush1.bf16.msra.mxu0 0
          %835 = vmatprep.subr.bf16.mxu0 0
          %836 = vmatpush1.bf16.msra.mxu0 0
          %837 = vmatprep.mubr.bf16.mxu0 0
          %838 = vmatmul.mubr.bf16.gmra.mrb[0].mxu0 %v445
          %v839 = vpop.f32.mrb[0].mxu0
          %v840 = vadd.f32 0.0, %v839
          %v841 = vpop.f32.mrb[0].mxu0
          %v842 = vpop.f32.mrb[0].mxu0
          %v843 = vpop.f32.mrb[0].mxu0
          %844 = vdwg.mxu0
          %s845 = scalar_lea.vmem %s3, 48
          %v846 = vld [vmem:[%s845] sm:$0xf]
          %v847 = vld [vmem:[%s845 + $0x4] sm:$0xf]
          %v848 = vld [vmem:[%s845 + $0x8] sm:$0xf]
          %v849 = vld [vmem:[%s845 + $0xc] sm:$0xf]
          %v854 = vunpack.c.l.b16 %v846
          %v855 = vunpack.c.l.b16 %v847
          %v856 = vunpack.c.l.b16 %v848
          %v857 = vunpack.c.l.b16 %v849
          %v858 = vpack.c.b16 %v855, %v854
          %v859 = vpack.c.b16 %v857, %v856
          %862 = vmatprep.subr.bf16.mxu0 0
          %863 = vmatpush1.bf16.msra.mxu0 %v858
          %864 = vmatprep.subr.bf16.mxu0 0
          %865 = vmatpush1.bf16.msra.mxu0 %v859
          %866 = vmatprep.subr.bf16.mxu0 0
          %867 = vmatpush1.bf16.msra.mxu0 0
          %868 = vmatprep.subr.bf16.mxu0 0
          %869 = vmatpush1.bf16.msra.mxu0 0
          %870 = vmatprep.subr.bf16.mxu0 0
          %871 = vmatpush1.bf16.msra.mxu0 0
          %872 = vmatprep.subr.bf16.mxu0 0
          %873 = vmatpush1.bf16.msra.mxu0 0
          %874 = vmatprep.subr.bf16.mxu0 0
          %875 = vmatpush1.bf16.msra.mxu0 0
          %876 = vmatprep.subr.bf16.mxu0 0
          %877 = vmatpush1.bf16.msra.mxu0 0
          %878 = vmatprep.subr.bf16.mxu0 0
          %879 = vmatpush1.bf16.msra.mxu0 0
          %880 = vmatprep.subr.bf16.mxu0 0
          %881 = vmatpush1.bf16.msra.mxu0 0
          %882 = vmatprep.subr.bf16.mxu0 0
          %883 = vmatpush1.bf16.msra.mxu0 0
          %884 = vmatprep.subr.bf16.mxu0 0
          %885 = vmatpush1.bf16.msra.mxu0 0
          %886 = vmatprep.subr.bf16.mxu0 0
          %887 = vmatpush1.bf16.msra.mxu0 0
          %888 = vmatprep.subr.bf16.mxu0 0
          %889 = vmatpush1.bf16.msra.mxu0 0
          %890 = vmatprep.subr.bf16.mxu0 0
          %891 = vmatpush1.bf16.msra.mxu0 0
          %892 = vmatprep.subr.bf16.mxu0 0
          %893 = vmatpush1.bf16.msra.mxu0 0
          %894 = vmatprep.mubr.bf16.mxu0 0
          %895 = vmatmul.mubr.bf16.gmra.mrb[0].mxu0 %v445
          %v896 = vpop.f32.mrb[0].mxu0
          %v897 = vadd.f32 0.0, %v896
          %v898 = vpop.f32.mrb[0].mxu0
          %v899 = vpop.f32.mrb[0].mxu0
          %v900 = vpop.f32.mrb[0].mxu0
          %901 = vdwg.mxu0
          %v902 = vpack.c.bf16 %v840, %v840
          %s903 = scalar_lea.vmem [#allocation2], 12
          %904 = vst.msk [vmem:[%s903] sm:$0xf] %vm544, %v902
          %v905 = vpack.c.bf16 %v897, %v897
          %s906 = scalar_lea.vmem [#allocation3], 12
          %907 = vst.msk [vmem:[%s906] sm:$0xf] %vm544, %v905
        $region80: #{tpu_custom_call.1} parent=59 // pred_fallthru
          _
        %s908 = smul.u32 %s32, 8
        %s909 = sshra.s32 %s908, 3
        %s910 = sand.u32 %s908, 7
        %s911 = smul.addr %s909, 4
        %s912 = scalar_lea.vmem %s420, %s911
        %v913 = vld [vmem:[%s912] sm:$0xf]
        %v914 = vld [vmem:[%s1] sm:$0xf]
        %v915 = vld [vmem:[%s1 + $0x4] sm:$0xf]
        %v916 = vld [vmem:[%s1 + $0x8] sm:$0xf]
        %v917 = vld [vmem:[%s1 + $0xc] sm:$0xf]
        %v922 = vunpack.c.l.b16 %v914
        %v923 = vunpack.c.l.b16 %v915
        %v924 = vunpack.c.l.b16 %v916
        %v925 = vunpack.c.l.b16 %v917
        %v926 = vpack.c.b16 %v923, %v922
        %v927 = vpack.c.b16 %v925, %v924
        %vm930 = vcmask 261120
        %v932 = vsel %vm930, %v913, 0
        %934 = vmatprep.subr.bf16.mxu0 0
        %935 = vmatpush1.bf16.msra.mxu0 %v926
        %936 = vmatprep.subr.bf16.mxu0 0
        %937 = vmatpush1.bf16.msra.mxu0 %v927
        %938 = vmatprep.subr.bf16.mxu0 0
        %939 = vmatpush1.bf16.msra.mxu0 0
        %940 = vmatprep.subr.bf16.mxu0 0
        %941 = vmatpush1.bf16.msra.mxu0 0
        %942 = vmatprep.subr.bf16.mxu0 0
        %943 = vmatpush1.bf16.msra.mxu0 0
        %944 = vmatprep.subr.bf16.mxu0 0
        %945 = vmatpush1.bf16.msra.mxu0 0
        %946 = vmatprep.subr.bf16.mxu0 0
        %947 = vmatpush1.bf16.msra.mxu0 0
        %948 = vmatprep.subr.bf16.mxu0 0
        %949 = vmatpush1.bf16.msra.mxu0 0
        %950 = vmatprep.subr.bf16.mxu0 0
        %951 = vmatpush1.bf16.msra.mxu0 0
        %952 = vmatprep.subr.bf16.mxu0 0
        %953 = vmatpush1.bf16.msra.mxu0 0
        %954 = vmatprep.subr.bf16.mxu0 0
        %955 = vmatpush1.bf16.msra.mxu0 0
        %956 = vmatprep.subr.bf16.mxu0 0
        %957 = vmatpush1.bf16.msra.mxu0 0
        %958 = vmatprep.subr.bf16.mxu0 0
        %959 = vmatpush1.bf16.msra.mxu0 0
        %960 = vmatprep.subr.bf16.mxu0 0
        %961 = vmatpush1.bf16.msra.mxu0 0
        %962 = vmatprep.subr.bf16.mxu0 0
        %963 = vmatpush1.bf16.msra.mxu0 0
        %964 = vmatprep.subr.bf16.mxu0 0
        %965 = vmatpush1.bf16.msra.mxu0 0
        %966 = vmatprep.mubr.bf16.mxu0 0
        %967 = vmatmul.mubr.bf16.gmra.mrb[0].mxu0 %v932
        %v968 = vpop.f32.mrb[0].mxu0
        %v969 = vadd.f32 0.0, %v968
        %v970 = vpop.f32.mrb[0].mxu0
        %v971 = vpop.f32.mrb[0].mxu0
        %v972 = vpop.f32.mrb[0].mxu0
        %973 = vdwg.mxu0
        %v974 = vpack.c.bf16 %v969, %v969
        %v975 = vld [vmem:[#allocation2] sm:$0xf]
        %vm976 = vcmask 64512
        %v978 = vsel %vm976, %v974, 0
        %v981 = vsel %vm976, %v975, 0
        %983 = vmatprep.subr.bf16.mxu0 0
        %984 = vmatpush1.bf16.xpose.msra.mxu0 %v981
        %985 = vmatprep.subr.bf16.mxu0 0
        %986 = vmatpush1.bf16.xpose.msra.mxu0 0
        %987 = vmatprep.subr.bf16.mxu0 0
        %988 = vmatpush1.bf16.xpose.msra.mxu0 0
        %989 = vmatprep.subr.bf16.mxu0 0
        %990 = vmatpush1.bf16.xpose.msra.mxu0 0
        %991 = vmatprep.subr.bf16.mxu0 0
        %992 = vmatpush1.bf16.xpose.msra.mxu0 0
        %993 = vmatprep.subr.bf16.mxu0 0
        %994 = vmatpush1.bf16.xpose.msra.mxu0 0
        %995 = vmatprep.subr.bf16.mxu0 0
        %996 = vmatpush1.bf16.xpose.msra.mxu0 0
        %997 = vmatprep.subr.bf16.mxu0 0
        %998 = vmatpush1.bf16.xpose.msra.mxu0 0
        %999 = vmatprep.subr.bf16.mxu0 0
        %1000 = vmatpush1.bf16.xpose.msra.mxu0 0
        %1001 = vmatprep.subr.bf16.mxu0 0
        %1002 = vmatpush1.bf16.xpose.msra.mxu0 0
        %1003 = vmatprep.subr.bf16.mxu0 0
        %1004 = vmatpush1.bf16.xpose.msra.mxu0 0
        %1005 = vmatprep.subr.bf16.mxu0 0
        %1006 = vmatpush1.bf16.xpose.msra.mxu0 0
        %1007 = vmatprep.subr.bf16.mxu0 0
        %1008 = vmatpush1.bf16.xpose.msra.mxu0 0
        %1009 = vmatprep.subr.bf16.mxu0 0
        %1010 = vmatpush1.bf16.xpose.msra.mxu0 0
        %1011 = vmatprep.subr.bf16.mxu0 0
        %1012 = vmatpush1.bf16.xpose.msra.mxu0 0
        %1013 = vmatprep.subr.bf16.mxu0 0
        %1014 = vmatpush1.bf16.xpose.msra.mxu0 0
        %1015 = vmatprep.mubr.bf16.mxu0 0
        %1016 = vmatmul.mubr.bf16.gmra.mrb[0].mxu0 %v978
        %v1017 = vpop.f32.mrb[0].mxu0
        %v1018 = vadd.f32 0.0, %v1017
        %v1019 = vpop.f32.mrb[0].mxu0
        %v1020 = vpop.f32.mrb[0].mxu0
        %v1021 = vpop.f32.mrb[0].mxu0
        %1022 = vdwg.mxu0
        %v1023 = vsel %vm976, %v1018, -inf
        %1024 = vmax.xlane.f32.xlu0 %v1023
        %v1025 = vpop.xlane.xlu0 %1024
        %v1026 = vsub.f32 %v1018, %v1025
        %v1027 = vmul.f32 %v1026, 1.442695
        %v1028 = vpow.pop %v1027
        %v1029 = vsel %vm976, %v1028, 0.0
        %1030 = vadd.xlane.f32.xlu0 %v1029
        %v1031 = vpop.xlane.xlu0 %1030
        %v1032 = vrcp.pop %v1031
        %v1033 = vmul.f32 %v1028, %v1032
        %s1034 = sld [smem:[#allocation5]]
        %v1035 = vstv %s1034
        %v1036 = vmul.f32 %v1033, %v1035
        %s1037 = sld [smem:[#allocation5 + $0x1]]
        %v1038 = vstv %s1037
        %v1039 = vmul.f32 %v1033, %v1038
        %s1040 = sld [smem:[#allocation5 + $0x2]]
        %v1041 = vstv %s1040
        %v1042 = vmul.f32 %v1033, %v1041
        %s1043 = sld [smem:[#allocation5 + $0x3]]
        %v1044 = vstv %s1043
        %v1045 = vmul.f32 %v1033, %v1044
        %s1046 = sld [smem:[#allocation8]]
        %v1047 = vstv %s1046
        %v1048 = vmul.f32 %v1033, %v1047
        %s1049 = scalar_lea.vmem %s1, 16
        %v1050 = vld [vmem:[%s1049] sm:$0xf]
        %v1051 = vld [vmem:[%s1049 + $0x4] sm:$0xf]
        %v1052 = vld [vmem:[%s1049 + $0x8] sm:$0xf]
        %v1053 = vld [vmem:[%s1049 + $0xc] sm:$0xf]
        %v1058 = vunpack.c.l.b16 %v1050
        %v1059 = vunpack.c.l.b16 %v1051
        %v1060 = vunpack.c.l.b16 %v1052
        %v1061 = vunpack.c.l.b16 %v1053
        %v1062 = vpack.c.b16 %v1059, %v1058
        %v1063 = vpack.c.b16 %v1061, %v1060
        %1066 = vmatprep.subr.bf16.mxu0 0
        %1067 = vmatpush1.bf16.msra.mxu0 %v1062
        %1068 = vmatprep.subr.bf16.mxu0 0
        %1069 = vmatpush1.bf16.msra.mxu0 %v1063
        %1070 = vmatprep.subr.bf16.mxu0 0
        %1071 = vmatpush1.bf16.msra.mxu0 0
        %1072 = vmatprep.subr.bf16.mxu0 0
        %1073 = vmatpush1.bf16.msra.mxu0 0
        %1074 = vmatprep.subr.bf16.mxu0 0
        %1075 = vmatpush1.bf16.msra.mxu0 0
        %1076 = vmatprep.subr.bf16.mxu0 0
        %1077 = vmatpush1.bf16.msra.mxu0 0
        %1078 = vmatprep.subr.bf16.mxu0 0
        %1079 = vmatpush1.bf16.msra.mxu0 0
        %1080 = vmatprep.subr.bf16.mxu0 0
        %1081 = vmatpush1.bf16.msra.mxu0 0
        %1082 = vmatprep.subr.bf16.mxu0 0
        %1083 = vmatpush1.bf16.msra.mxu0 0
        %1084 = vmatprep.subr.bf16.mxu0 0
        %1085 = vmatpush1.bf16.msra.mxu0 0
        %1086 = vmatprep.subr.bf16.mxu0 0
        %1087 = vmatpush1.bf16.msra.mxu0 0
        %1088 = vmatprep.subr.bf16.mxu0 0
        %1089 = vmatpush1.bf16.msra.mxu0 0
        %1090 = vmatprep.subr.bf16.mxu0 0
        %1091 = vmatpush1.bf16.msra.mxu0 0
        %1092 = vmatprep.subr.bf16.mxu0 0
        %1093 = vmatpush1.bf16.msra.mxu0 0
        %1094 = vmatprep.subr.bf16.mxu0 0
        %1095 = vmatpush1.bf16.msra.mxu0 0
        %1096 = vmatprep.subr.bf16.mxu0 0
        %1097 = vmatpush1.bf16.msra.mxu0 0
        %1098 = vmatprep.mubr.bf16.mxu0 0
        %1099 = vmatmul.mubr.bf16.gmra.mrb[0].mxu0 %v932
        %v1100 = vpop.f32.mrb[0].mxu0
        %v1101 = vadd.f32 0.0, %v1100
        %v1102 = vpop.f32.mrb[0].mxu0
        %v1103 = vpop.f32.mrb[0].mxu0
        %v1104 = vpop.f32.mrb[0].mxu0
        %1105 = vdwg.mxu0
        %v1106 = vpack.c.bf16 %v1101, %v1101
        %s1107 = scalar_lea.vmem [#allocation2], 4
        %v1108 = vld [vmem:[%s1107] sm:$0xf]
        %v1110 = vsel %vm976, %v1106, 0
        %v1113 = vsel %vm976, %v1108, 0
        %1115 = vmatprep.subr.bf16.mxu0 0
        %1116 = vmatpush1.bf16.xpose.msra.mxu0 %v1113
        %1117 = vmatprep.subr.bf16.mxu0 0
        %1118 = vmatpush1.bf16.xpose.msra.mxu0 0
        %1119 = vmatprep.subr.bf16.mxu0 0
        %1120 = vmatpush1.bf16.xpose.msra.mxu0 0
        %1121 = vmatprep.subr.bf16.mxu0 0
        %1122 = vmatpush1.bf16.xpose.msra.mxu0 0
        %1123 = vmatprep.subr.bf16.mxu0 0
        %1124 = vmatpush1.bf16.xpose.msra.mxu0 0
        %1125 = vmatprep.subr.bf16.mxu0 0
        %1126 = vmatpush1.bf16.xpose.msra.mxu0 0
        %1127 = vmatprep.subr.bf16.mxu0 0
        %1128 = vmatpush1.bf16.xpose.msra.mxu0 0
        %1129 = vmatprep.subr.bf16.mxu0 0
        %1130 = vmatpush1.bf16.xpose.msra.mxu0 0
        %1131 = vmatprep.subr.bf16.mxu0 0
        %1132 = vmatpush1.bf16.xpose.msra.mxu0 0
        %1133 = vmatprep.subr.bf16.mxu0 0
        %1134 = vmatpush1.bf16.xpose.msra.mxu0 0
        %1135 = vmatprep.subr.bf16.mxu0 0
        %1136 = vmatpush1.bf16.xpose.msra.mxu0 0
        %1137 = vmatprep.subr.bf16.mxu0 0
        %1138 = vmatpush1.bf16.xpose.msra.mxu0 0
        %1139 = vmatprep.subr.bf16.mxu0 0
        %1140 = vmatpush1.bf16.xpose.msra.mxu0 0
        %1141 = vmatprep.subr.bf16.mxu0 0
        %1142 = vmatpush1.bf16.xpose.msra.mxu0 0
        %1143 = vmatprep.subr.bf16.mxu0 0
        %1144 = vmatpush1.bf16.xpose.msra.mxu0 0
        %1145 = vmatprep.subr.bf16.mxu0 0
        %1146 = vmatpush1.bf16.xpose.msra.mxu0 0
        %1147 = vmatprep.mubr.bf16.mxu0 0
        %1148 = vmatmul.mubr.bf16.gmra.mrb[0].mxu0 %v1110
        %v1149 = vpop.f32.mrb[0].mxu0
        %v1150 = vadd.f32 0.0, %v1149
        %v1151 = vpop.f32.mrb[0].mxu0
        %v1152 = vpop.f32.mrb[0].mxu0
        %v1153 = vpop.f32.mrb[0].mxu0
        %1154 = vdwg.mxu0
        %v1155 = vsel %vm976, %v1150, -inf
        %1156 = vmax.xlane.f32.xlu0 %v1155
        %v1157 = vpop.xlane.xlu0 %1156
        %v1158 = vsub.f32 %v1150, %v1157
        %v1159 = vmul.f32 %v1158, 1.442695
        %v1160 = vpow.pop %v1159
        %v1161 = vsel %vm976, %v1160, 0.0
        %1162 = vadd.xlane.f32.xlu0 %v1161
        %v1163 = vpop.xlane.xlu0 %1162
        %v1164 = vrcp.pop %v1163
        %v1165 = vmul.f32 %v1160, %v1164
        %s1166 = sld [smem:[#allocation5 + $0x80]]
        %v1167 = vstv %s1166
        %v1168 = vmul.f32 %v1165, %v1167
        %v1169 = vadd.f32 %v1036, %v1168
        %s1170 = sld [smem:[#allocation5 + $0x81]]
        %v1171 = vstv %s1170
        %v1172 = vmul.f32 %v1165, %v1171
        %v1173 = vadd.f32 %v1039, %v1172
        %s1174 = sld [smem:[#allocation5 + $0x82]]
        %v1175 = vstv %s1174
        %v1176 = vmul.f32 %v1165, %v1175
        %v1177 = vadd.f32 %v1042, %v1176
        %s1178 = sld [smem:[#allocation5 + $0x83]]
        %v1179 = vstv %s1178
        %v1180 = vmul.f32 %v1165, %v1179
        %v1181 = vadd.f32 %v1045, %v1180
        %s1182 = sld [smem:[#allocation8 + $0x1]]
        %v1183 = vstv %s1182
        %v1184 = vmul.f32 %v1165, %v1183
        %v1185 = vadd.f32 %v1048, %v1184
        %s1186 = scalar_lea.vmem %s1, 32
        %v1187 = vld [vmem:[%s1186] sm:$0xf]
        %v1188 = vld [vmem:[%s1186 + $0x4] sm:$0xf]
        %v1189 = vld [vmem:[%s1186 + $0x8] sm:$0xf]
        %v1190 = vld [vmem:[%s1186 + $0xc] sm:$0xf]
        %v1195 = vunpack.c.l.b16 %v1187
        %v1196 = vunpack.c.l.b16 %v1188
        %v1197 = vunpack.c.l.b16 %v1189
        %v1198 = vunpack.c.l.b16 %v1190
        %v1199 = vpack.c.b16 %v1196, %v1195
        %v1200 = vpack.c.b16 %v1198, %v1197
        %1203 = vmatprep.subr.bf16.mxu0 0
        %1204 = vmatpush1.bf16.msra.mxu0 %v1199
        %1205 = vmatprep.subr.bf16.mxu0 0
        %1206 = vmatpush1.bf16.msra.mxu0 %v1200
        %1207 = vmatprep.subr.bf16.mxu0 0
        %1208 = vmatpush1.bf16.msra.mxu0 0
        %1209 = vmatprep.subr.bf16.mxu0 0
        %1210 = vmatpush1.bf16.msra.mxu0 0
        %1211 = vmatprep.subr.bf16.mxu0 0
        %1212 = vmatpush1.bf16.msra.mxu0 0
        %1213 = vmatprep.subr.bf16.mxu0 0
        %1214 = vmatpush1.bf16.msra.mxu0 0
        %1215 = vmatprep.subr.bf16.mxu0 0
        %1216 = vmatpush1.bf16.msra.mxu0 0
        %1217 = vmatprep.subr.bf16.mxu0 0
        %1218 = vmatpush1.bf16.msra.mxu0 0
        %1219 = vmatprep.subr.bf16.mxu0 0
        %1220 = vmatpush1.bf16.msra.mxu0 0
        %1221 = vmatprep.subr.bf16.mxu0 0
        %1222 = vmatpush1.bf16.msra.mxu0 0
        %1223 = vmatprep.subr.bf16.mxu0 0
        %1224 = vmatpush1.bf16.msra.mxu0 0
        %1225 = vmatprep.subr.bf16.mxu0 0
        %1226 = vmatpush1.bf16.msra.mxu0 0
        %1227 = vmatprep.subr.bf16.mxu0 0
        %1228 = vmatpush1.bf16.msra.mxu0 0
        %1229 = vmatprep.subr.bf16.mxu0 0
        %1230 = vmatpush1.bf16.msra.mxu0 0
        %1231 = vmatprep.subr.bf16.mxu0 0
        %1232 = vmatpush1.bf16.msra.mxu0 0
        %1233 = vmatprep.subr.bf16.mxu0 0
        %1234 = vmatpush1.bf16.msra.mxu0 0
        %1235 = vmatprep.mubr.bf16.mxu0 0
        %1236 = vmatmul.mubr.bf16.gmra.mrb[0].mxu0 %v932
        %v1237 = vpop.f32.mrb[0].mxu0
        %v1238 = vadd.f32 0.0, %v1237
        %v1239 = vpop.f32.mrb[0].mxu0
        %v1240 = vpop.f32.mrb[0].mxu0
        %v1241 = vpop.f32.mrb[0].mxu0
        %1242 = vdwg.mxu0
        %v1243 = vpack.c.bf16 %v1238, %v1238
        %s1244 = scalar_lea.vmem [#allocation2], 8
        %v1245 = vld [vmem:[%s1244] sm:$0xf]
        %v1247 = vsel %vm976, %v1243, 0
        %v1250 = vsel %vm976, %v1245, 0
        %1252 = vmatprep.subr.bf16.mxu0 0
        %1253 = vmatpush1.bf16.xpose.msra.mxu0 %v1250
        %1254 = vmatprep.subr.bf16.mxu0 0
        %1255 = vmatpush1.bf16.xpose.msra.mxu0 0
        %1256 = vmatprep.subr.bf16.mxu0 0
        %1257 = vmatpush1.bf16.xpose.msra.mxu0 0
        %1258 = vmatprep.subr.bf16.mxu0 0
        %1259 = vmatpush1.bf16.xpose.msra.mxu0 0
        %1260 = vmatprep.subr.bf16.mxu0 0
        %1261 = vmatpush1.bf16.xpose.msra.mxu0 0
        %1262 = vmatprep.subr.bf16.mxu0 0
        %1263 = vmatpush1.bf16.xpose.msra.mxu0 0
        %1264 = vmatprep.subr.bf16.mxu0 0
        %1265 = vmatpush1.bf16.xpose.msra.mxu0 0
        %1266 = vmatprep.subr.bf16.mxu0 0
        %1267 = vmatpush1.bf16.xpose.msra.mxu0 0
        %1268 = vmatprep.subr.bf16.mxu0 0
        %1269 = vmatpush1.bf16.xpose.msra.mxu0 0
        %1270 = vmatprep.subr.bf16.mxu0 0
        %1271 = vmatpush1.bf16.xpose.msra.mxu0 0
        %1272 = vmatprep.subr.bf16.mxu0 0
        %1273 = vmatpush1.bf16.xpose.msra.mxu0 0
        %1274 = vmatprep.subr.bf16.mxu0 0
        %1275 = vmatpush1.bf16.xpose.msra.mxu0 0
        %1276 = vmatprep.subr.bf16.mxu0 0
        %1277 = vmatpush1.bf16.xpose.msra.mxu0 0
        %1278 = vmatprep.subr.bf16.mxu0 0
        %1279 = vmatpush1.bf16.xpose.msra.mxu0 0
        %1280 = vmatprep.subr.bf16.mxu0 0
        %1281 = vmatpush1.bf16.xpose.msra.mxu0 0
        %1282 = vmatprep.subr.bf16.mxu0 0
        %1283 = vmatpush1.bf16.xpose.msra.mxu0 0
        %1284 = vmatprep.mubr.bf16.mxu0 0
        %1285 = vmatmul.mubr.bf16.gmra.mrb[0].mxu0 %v1247
        %v1286 = vpop.f32.mrb[0].mxu0
        %v1287 = vadd.f32 0.0, %v1286
        %v1288 = vpop.f32.mrb[0].mxu0
        %v1289 = vpop.f32.mrb[0].mxu0
        %v1290 = vpop.f32.mrb[0].mxu0
        %1291 = vdwg.mxu0
        %v1292 = vsel %vm976, %v1287, -inf
        %1293 = vmax.xlane.f32.xlu0 %v1292
        %v1294 = vpop.xlane.xlu0 %1293
        %v1295 = vsub.f32 %v1287, %v1294
        %v1296 = vmul.f32 %v1295, 1.442695
        %v1297 = vpow.pop %v1296
        %v1298 = vsel %vm976, %v1297, 0.0
        %1299 = vadd.xlane.f32.xlu0 %v1298
        %v1300 = vpop.xlane.xlu0 %1299
        %v1301 = vrcp.pop %v1300
        %v1302 = vmul.f32 %v1297, %v1301
        %s1303 = sld [smem:[#allocation5 + $0x100]]
        %v1304 = vstv %s1303
        %v1305 = vmul.f32 %v1302, %v1304
        %v1306 = vadd.f32 %v1169, %v1305
        %s1307 = sld [smem:[#allocation5 + $0x101]]
        %v1308 = vstv %s1307
        %v1309 = vmul.f32 %v1302, %v1308
        %v1310 = vadd.f32 %v1173, %v1309
        %s1311 = sld [smem:[#allocation5 + $0x102]]
        %v1312 = vstv %s1311
        %v1313 = vmul.f32 %v1302, %v1312
        %v1314 = vadd.f32 %v1177, %v1313
        %s1315 = sld [smem:[#allocation5 + $0x103]]
        %v1316 = vstv %s1315
        %v1317 = vmul.f32 %v1302, %v1316
        %v1318 = vadd.f32 %v1181, %v1317
        %s1319 = sld [smem:[#allocation8 + $0x2]]
        %v1320 = vstv %s1319
        %v1321 = vmul.f32 %v1302, %v1320
        %v1322 = vadd.f32 %v1185, %v1321
        %s1323 = scalar_lea.vmem %s1, 48
        %v1324 = vld [vmem:[%s1323] sm:$0xf]
        %v1325 = vld [vmem:[%s1323 + $0x4] sm:$0xf]
        %v1326 = vld [vmem:[%s1323 + $0x8] sm:$0xf]
        %v1327 = vld [vmem:[%s1323 + $0xc] sm:$0xf]
        %v1332 = vunpack.c.l.b16 %v1324
        %v1333 = vunpack.c.l.b16 %v1325
        %v1334 = vunpack.c.l.b16 %v1326
        %v1335 = vunpack.c.l.b16 %v1327
        %v1336 = vpack.c.b16 %v1333, %v1332
        %v1337 = vpack.c.b16 %v1335, %v1334
        %1340 = vmatprep.subr.bf16.mxu0 0
        %1341 = vmatpush1.bf16.msra.mxu0 %v1336
        %1342 = vmatprep.subr.bf16.mxu0 0
        %1343 = vmatpush1.bf16.msra.mxu0 %v1337
        %1344 = vmatprep.subr.bf16.mxu0 0
        %1345 = vmatpush1.bf16.msra.mxu0 0
        %1346 = vmatprep.subr.bf16.mxu0 0
        %1347 = vmatpush1.bf16.msra.mxu0 0
        %1348 = vmatprep.subr.bf16.mxu0 0
        %1349 = vmatpush1.bf16.msra.mxu0 0
        %1350 = vmatprep.subr.bf16.mxu0 0
        %1351 = vmatpush1.bf16.msra.mxu0 0
        %1352 = vmatprep.subr.bf16.mxu0 0
        %1353 = vmatpush1.bf16.msra.mxu0 0
        %1354 = vmatprep.subr.bf16.mxu0 0
        %1355 = vmatpush1.bf16.msra.mxu0 0
        %1356 = vmatprep.subr.bf16.mxu0 0
        %1357 = vmatpush1.bf16.msra.mxu0 0
        %1358 = vmatprep.subr.bf16.mxu0 0
        %1359 = vmatpush1.bf16.msra.mxu0 0
        %1360 = vmatprep.subr.bf16.mxu0 0
        %1361 = vmatpush1.bf16.msra.mxu0 0
        %1362 = vmatprep.subr.bf16.mxu0 0
        %1363 = vmatpush1.bf16.msra.mxu0 0
        %1364 = vmatprep.subr.bf16.mxu0 0
        %1365 = vmatpush1.bf16.msra.mxu0 0
        %1366 = vmatprep.subr.bf16.mxu0 0
        %1367 = vmatpush1.bf16.msra.mxu0 0
        %1368 = vmatprep.subr.bf16.mxu0 0
        %1369 = vmatpush1.bf16.msra.mxu0 0
        %1370 = vmatprep.subr.bf16.mxu0 0
        %1371 = vmatpush1.bf16.msra.mxu0 0
        %1372 = vmatprep.mubr.bf16.mxu0 0
        %1373 = vmatmul.mubr.bf16.gmra.mrb[0].mxu0 %v932
        %v1374 = vpop.f32.mrb[0].mxu0
        %v1375 = vadd.f32 0.0, %v1374
        %v1376 = vpop.f32.mrb[0].mxu0
        %v1377 = vpop.f32.mrb[0].mxu0
        %v1378 = vpop.f32.mrb[0].mxu0
        %1379 = vdwg.mxu0
        %v1380 = vpack.c.bf16 %v1375, %v1375
        %s1381 = scalar_lea.vmem [#allocation2], 12
        %v1382 = vld [vmem:[%s1381] sm:$0xf]
        %v1384 = vsel %vm976, %v1380, 0
        %v1387 = vsel %vm976, %v1382, 0
        %1389 = vmatprep.subr.bf16.mxu0 0
        %1390 = vmatpush1.bf16.xpose.msra.mxu0 %v1387
        %1391 = vmatprep.subr.bf16.mxu0 0
        %1392 = vmatpush1.bf16.xpose.msra.mxu0 0
        %1393 = vmatprep.subr.bf16.mxu0 0
        %1394 = vmatpush1.bf16.xpose.msra.mxu0 0
        %1395 = vmatprep.subr.bf16.mxu0 0
        %1396 = vmatpush1.bf16.xpose.msra.mxu0 0
        %1397 = vmatprep.subr.bf16.mxu0 0
        %1398 = vmatpush1.bf16.xpose.msra.mxu0 0
        %1399 = vmatprep.subr.bf16.mxu0 0
        %1400 = vmatpush1.bf16.xpose.msra.mxu0 0
        %1401 = vmatprep.subr.bf16.mxu0 0
        %1402 = vmatpush1.bf16.xpose.msra.mxu0 0
        %1403 = vmatprep.subr.bf16.mxu0 0
        %1404 = vmatpush1.bf16.xpose.msra.mxu0 0
        %1405 = vmatprep.subr.bf16.mxu0 0
        %1406 = vmatpush1.bf16.xpose.msra.mxu0 0
        %1407 = vmatprep.subr.bf16.mxu0 0
        %1408 = vmatpush1.bf16.xpose.msra.mxu0 0
        %1409 = vmatprep.subr.bf16.mxu0 0
        %1410 = vmatpush1.bf16.xpose.msra.mxu0 0
        %1411 = vmatprep.subr.bf16.mxu0 0
        %1412 = vmatpush1.bf16.xpose.msra.mxu0 0
        %1413 = vmatprep.subr.bf16.mxu0 0
        %1414 = vmatpush1.bf16.xpose.msra.mxu0 0
        %1415 = vmatprep.subr.bf16.mxu0 0
        %1416 = vmatpush1.bf16.xpose.msra.mxu0 0
        %1417 = vmatprep.subr.bf16.mxu0 0
        %1418 = vmatpush1.bf16.xpose.msra.mxu0 0
        %1419 = vmatprep.subr.bf16.mxu0 0
        %1420 = vmatpush1.bf16.xpose.msra.mxu0 0
        %1421 = vmatprep.mubr.bf16.mxu0 0
        %1422 = vmatmul.mubr.bf16.gmra.mrb[0].mxu0 %v1384
        %v1423 = vpop.f32.mrb[0].mxu0
        %v1424 = vadd.f32 0.0, %v1423
        %v1425 = vpop.f32.mrb[0].mxu0
        %v1426 = vpop.f32.mrb[0].mxu0
        %v1427 = vpop.f32.mrb[0].mxu0
        %1428 = vdwg.mxu0
        %v1429 = vsel %vm976, %v1424, -inf
        %1430 = vmax.xlane.f32.xlu0 %v1429
        %v1431 = vpop.xlane.xlu0 %1430
        %v1432 = vsub.f32 %v1424, %v1431
        %v1433 = vmul.f32 %v1432, 1.442695
        %v1434 = vpow.pop %v1433
        %v1435 = vsel %vm976, %v1434, 0.0
        %1436 = vadd.xlane.f32.xlu0 %v1435
        %v1437 = vpop.xlane.xlu0 %1436
        %v1438 = vrcp.pop %v1437
        %v1439 = vmul.f32 %v1434, %v1438
        %s1440 = sld [smem:[#allocation5 + $0x180]]
        %v1441 = vstv %s1440
        %v1442 = vmul.f32 %v1439, %v1441
        %v1443 = vadd.f32 %v1306, %v1442
        %s1444 = sld [smem:[#allocation5 + $0x181]]
        %v1445 = vstv %s1444
        %v1446 = vmul.f32 %v1439, %v1445
        %v1447 = vadd.f32 %v1310, %v1446
        %s1448 = sld [smem:[#allocation5 + $0x182]]
        %v1449 = vstv %s1448
        %v1450 = vmul.f32 %v1439, %v1449
        %v1451 = vadd.f32 %v1314, %v1450
        %s1452 = sld [smem:[#allocation5 + $0x183]]
        %v1453 = vstv %s1452
        %v1454 = vmul.f32 %v1439, %v1453
        %v1455 = vadd.f32 %v1318, %v1454
        %s1456 = sld [smem:[#allocation8 + $0x3]]
        %v1457 = vstv %s1456
        %v1458 = vmul.f32 %v1439, %v1457
        %v1459 = vadd.f32 %v1322, %v1458
        %v1460 = vsub.f32 %v1443, %v1459
        %v1461 = vmul.f32 %v1460, %v1460
        %v1462 = vsub.f32 %v1447, %v1459
        %v1463 = vmul.f32 %v1462, %v1462
        %v1464 = vadd.f32 %v1461, %v1463
        %v1465 = vsub.f32 %v1451, %v1459
        %v1466 = vmul.f32 %v1465, %v1465
        %v1467 = vadd.f32 %v1464, %v1466
        %v1468 = vsub.f32 %v1455, %v1459
        %v1469 = vmul.f32 %v1468, %v1468
        %v1470 = vadd.f32 %v1467, %v1469
        %v1471 = vmul.f32 %v1470, 0.25
        %v1472 = vadd.f32 %v1471, 1e-05
        %v1473 = vrsqrt.pop %v1472
        %v1474 = vmul.f32 %v1460, %v1473
        %s1475 = sld [smem:[#allocation10]]
        %v1476 = vstv %s1475
        %v1477 = vmul.f32 %v1474, %v1476
        %s1478 = sld [smem:[#allocation11]]
        %v1479 = vstv %s1478
        %v1480 = vadd.f32 %v1477, %v1479
        %v1481 = vpack.c.bf16 %v1480, %v1480
        %v1482 = vld [vmem:[#allocation3] sm:$0xf]
        %v1484 = vsel %vm976, %v1481, 0
        %vm1486 = vcmask 1043456
        %v1488 = vsel %vm1486, %v1482, 0
        %1490 = vmatprep.subr.bf16.mxu0 0
        %1491 = vmatpush1.bf16.msra.mxu0 %v1488
        %1492 = vmatprep.subr.bf16.mxu0 0
        %1493 = vmatpush1.bf16.msra.mxu0 0
        %1494 = vmatprep.subr.bf16.mxu0 0
        %1495 = vmatpush1.bf16.msra.mxu0 0
        %1496 = vmatprep.subr.bf16.mxu0 0
        %1497 = vmatpush1.bf16.msra.mxu0 0
        %1498 = vmatprep.subr.bf16.mxu0 0
        %1499 = vmatpush1.bf16.msra.mxu0 0
        %1500 = vmatprep.subr.bf16.mxu0 0
        %1501 = vmatpush1.bf16.msra.mxu0 0
        %1502 = vmatprep.subr.bf16.mxu0 0
        %1503 = vmatpush1.bf16.msra.mxu0 0
        %1504 = vmatprep.subr.bf16.mxu0 0
        %1505 = vmatpush1.bf16.msra.mxu0 0
        %1506 = vmatprep.subr.bf16.mxu0 0
        %1507 = vmatpush1.bf16.msra.mxu0 0
        %1508 = vmatprep.subr.bf16.mxu0 0
        %1509 = vmatpush1.bf16.msra.mxu0 0
        %1510 = vmatprep.subr.bf16.mxu0 0
        %1511 = vmatpush1.bf16.msra.mxu0 0
        %1512 = vmatprep.subr.bf16.mxu0 0
        %1513 = vmatpush1.bf16.msra.mxu0 0
        %1514 = vmatprep.subr.bf16.mxu0 0
        %1515 = vmatpush1.bf16.msra.mxu0 0
        %1516 = vmatprep.subr.bf16.mxu0 0
        %1517 = vmatpush1.bf16.msra.mxu0 0
        %1518 = vmatprep.subr.bf16.mxu0 0
        %1519 = vmatpush1.bf16.msra.mxu0 0
        %1520 = vmatprep.subr.bf16.mxu0 0
        %1521 = vmatpush1.bf16.msra.mxu0 0
        %1522 = vmatprep.mubr.bf16.mxu0 0
        %1523 = vmatmul.mubr.bf16.gmra.mrb[0].mxu0 %v1484
        %v1524 = vpop.f32.mrb[0].mxu0
        %v1525 = vadd.f32 0.0, %v1524
        %v1526 = vpop.f32.mrb[0].mxu0
        %v1527 = vpop.f32.mrb[0].mxu0
        %v1528 = vpop.f32.mrb[0].mxu0
        %1529 = vdwg.mxu0
        %v1530 = vpack.c.bf16 %v1525, %v1525
        %vm1531 = vcmask 60416
        %1532 = vst.msk [vmem:[#allocation4] sm:$0xf] %vm1531, %v1530
        %v1533 = vmul.f32 %v1462, %v1473
        %s1534 = sld [smem:[#allocation10 + $0x1]]
        %v1535 = vstv %s1534
        %v1536 = vmul.f32 %v1533, %v1535
        %s1537 = sld [smem:[#allocation11 + $0x1]]
        %v1538 = vstv %s1537
        %v1539 = vadd.f32 %v1536, %v1538
        %v1540 = vpack.c.bf16 %v1539, %v1539
        %s1541 = scalar_lea.vmem [#allocation3], 4
        %v1542 = vld [vmem:[%s1541] sm:$0xf]
        %v1544 = vsel %vm976, %v1540, 0
        %v1547 = vsel %vm1486, %v1542, 0
        %1549 = vmatprep.subr.bf16.mxu0 0
        %1550 = vmatpush1.bf16.msra.mxu0 %v1547
        %1551 = vmatprep.subr.bf16.mxu0 0
        %1552 = vmatpush1.bf16.msra.mxu0 0
        %1553 = vmatprep.subr.bf16.mxu0 0
        %1554 = vmatpush1.bf16.msra.mxu0 0
        %1555 = vmatprep.subr.bf16.mxu0 0
        %1556 = vmatpush1.bf16.msra.mxu0 0
        %1557 = vmatprep.subr.bf16.mxu0 0
        %1558 = vmatpush1.bf16.msra.mxu0 0
        %1559 = vmatprep.subr.bf16.mxu0 0
        %1560 = vmatpush1.bf16.msra.mxu0 0
        %1561 = vmatprep.subr.bf16.mxu0 0
        %1562 = vmatpush1.bf16.msra.mxu0 0
        %1563 = vmatprep.subr.bf16.mxu0 0
        %1564 = vmatpush1.bf16.msra.mxu0 0
        %1565 = vmatprep.subr.bf16.mxu0 0
        %1566 = vmatpush1.bf16.msra.mxu0 0
        %1567 = vmatprep.subr.bf16.mxu0 0
        %1568 = vmatpush1.bf16.msra.mxu0 0
        %1569 = vmatprep.subr.bf16.mxu0 0
        %1570 = vmatpush1.bf16.msra.mxu0 0
        %1571 = vmatprep.subr.bf16.mxu0 0
        %1572 = vmatpush1.bf16.msra.mxu0 0
        %1573 = vmatprep.subr.bf16.mxu0 0
        %1574 = vmatpush1.bf16.msra.mxu0 0
        %1575 = vmatprep.subr.bf16.mxu0 0
        %1576 = vmatpush1.bf16.msra.mxu0 0
        %1577 = vmatprep.subr.bf16.mxu0 0
        %1578 = vmatpush1.bf16.msra.mxu0 0
        %1579 = vmatprep.subr.bf16.mxu0 0
        %1580 = vmatpush1.bf16.msra.mxu0 0
        %1581 = vmatprep.mubr.bf16.mxu0 0
        %1582 = vmatmul.mubr.bf16.gmra.mrb[0].mxu0 %v1544
        %v1583 = vpop.f32.mrb[0].mxu0
        %v1584 = vadd.f32 0.0, %v1583
        %v1585 = vpop.f32.mrb[0].mxu0
        %v1586 = vpop.f32.mrb[0].mxu0
        %v1587 = vpop.f32.mrb[0].mxu0
        %1588 = vdwg.mxu0
        %v1589 = vpack.c.bf16 %v1584, %v1584
        %v1591 = vunpack.c.l.b16 %v1589
        %v1592 = vpack.c.b16 %v1591, %v1591
        %1593 = vrot.lane.b32.xlu0 %v1592, 8
        %v1594 = vpop.permute.xlu0 %1593
        %vm1596 = vcmask 126016
        %1597 = vst.msk [vmem:[#allocation4] sm:$0xf] %vm1596, %v1594
        %v1598 = vmul.f32 %v1465, %v1473
        %s1599 = sld [smem:[#allocation10 + $0x2]]
        %v1600 = vstv %s1599
        %v1601 = vmul.f32 %v1598, %v1600
        %s1602 = sld [smem:[#allocation11 + $0x2]]
        %v1603 = vstv %s1602
        %v1604 = vadd.f32 %v1601, %v1603
        %v1605 = vpack.c.bf16 %v1604, %v1604
        %s1606 = scalar_lea.vmem [#allocation3], 8
        %v1607 = vld [vmem:[%s1606] sm:$0xf]
        %v1609 = vsel %vm976, %v1605, 0
        %v1612 = vsel %vm1486, %v1607, 0
        %1614 = vmatprep.subr.bf16.mxu0 0
        %1615 = vmatpush1.bf16.msra.mxu0 %v1612
        %1616 = vmatprep.subr.bf16.mxu0 0
        %1617 = vmatpush1.bf16.msra.mxu0 0
        %1618 = vmatprep.subr.bf16.mxu0 0
        %1619 = vmatpush1.bf16.msra.mxu0 0
        %1620 = vmatprep.subr.bf16.mxu0 0
        %1621 = vmatpush1.bf16.msra.mxu0 0
        %1622 = vmatprep.subr.bf16.mxu0 0
        %1623 = vmatpush1.bf16.msra.mxu0 0
        %1624 = vmatprep.subr.bf16.mxu0 0
        %1625 = vmatpush1.bf16.msra.mxu0 0
        %1626 = vmatprep.subr.bf16.mxu0 0
        %1627 = vmatpush1.bf16.msra.mxu0 0
        %1628 = vmatprep.subr.bf16.mxu0 0
        %1629 = vmatpush1.bf16.msra.mxu0 0
        %1630 = vmatprep.subr.bf16.mxu0 0
        %1631 = vmatpush1.bf16.msra.mxu0 0
        %1632 = vmatprep.subr.bf16.mxu0 0
        %1633 = vmatpush1.bf16.msra.mxu0 0
        %1634 = vmatprep.subr.bf16.mxu0 0
        %1635 = vmatpush1.bf16.msra.mxu0 0
        %1636 = vmatprep.subr.bf16.mxu0 0
        %1637 = vmatpush1.bf16.msra.mxu0 0
        %1638 = vmatprep.subr.bf16.mxu0 0
        %1639 = vmatpush1.bf16.msra.mxu0 0
        %1640 = vmatprep.subr.bf16.mxu0 0
        %1641 = vmatpush1.bf16.msra.mxu0 0
        %1642 = vmatprep.subr.bf16.mxu0 0
        %1643 = vmatpush1.bf16.msra.mxu0 0
        %1644 = vmatprep.subr.bf16.mxu0 0
        %1645 = vmatpush1.bf16.msra.mxu0 0
        %1646 = vmatprep.mubr.bf16.mxu0 0
        %1647 = vmatmul.mubr.bf16.gmra.mrb[0].mxu0 %v1609
        %v1648 = vpop.f32.mrb[0].mxu0
        %v1649 = vadd.f32 0.0, %v1648
        %v1650 = vpop.f32.mrb[0].mxu0
        %v1651 = vpop.f32.mrb[0].mxu0
        %v1652 = vpop.f32.mrb[0].mxu0
        %1653 = vdwg.mxu0
        %v1654 = vpack.c.bf16 %v1649, %v1649
        %v1656 = vunpack.c.l.b16 %v1654
        %v1657 = vpack.c.b16 %v1656, %v1656
        %1658 = vrot.lane.b32.xlu0 %v1657, 16
        %v1659 = vpop.permute.xlu0 %1658
        %vm1661 = vcmask 191616
        %1662 = vst.msk [vmem:[#allocation4] sm:$0xf] %vm1661, %v1659
        %v1663 = vmul.f32 %v1468, %v1473
        %s1664 = sld [smem:[#allocation10 + $0x3]]
        %v1665 = vstv %s1664
        %v1666 = vmul.f32 %v1663, %v1665
        %s1667 = sld [smem:[#allocation11 + $0x3]]
        %v1668 = vstv %s1667
        %v1669 = vadd.f32 %v1666, %v1668
        %v1670 = vpack.c.bf16 %v1669, %v1669
        %s1671 = scalar_lea.vmem [#allocation3], 12
        %v1672 = vld [vmem:[%s1671] sm:$0xf]
        %v1674 = vsel %vm976, %v1670, 0
        %v1677 = vsel %vm1486, %v1672, 0
        %1679 = vmatprep.subr.bf16.mxu0 0
        %1680 = vmatpush1.bf16.msra.mxu0 %v1677
        %1681 = vmatprep.subr.bf16.mxu0 0
        %1682 = vmatpush1.bf16.msra.mxu0 0
        %1683 = vmatprep.subr.bf16.mxu0 0
        %1684 = vmatpush1.bf16.msra.mxu0 0
        %1685 = vmatprep.subr.bf16.mxu0 0
        %1686 = vmatpush1.bf16.msra.mxu0 0
        %1687 = vmatprep.subr.bf16.mxu0 0
        %1688 = vmatpush1.bf16.msra.mxu0 0
        %1689 = vmatprep.subr.bf16.mxu0 0
        %1690 = vmatpush1.bf16.msra.mxu0 0
        %1691 = vmatprep.subr.bf16.mxu0 0
        %1692 = vmatpush1.bf16.msra.mxu0 0
        %1693 = vmatprep.subr.bf16.mxu0 0
        %1694 = vmatpush1.bf16.msra.mxu0 0
        %1695 = vmatprep.subr.bf16.mxu0 0
        %1696 = vmatpush1.bf16.msra.mxu0 0
        %1697 = vmatprep.subr.bf16.mxu0 0
        %1698 = vmatpush1.bf16.msra.mxu0 0
        %1699 = vmatprep.subr.bf16.mxu0 0
        %1700 = vmatpush1.bf16.msra.mxu0 0
        %1701 = vmatprep.subr.bf16.mxu0 0
        %1702 = vmatpush1.bf16.msra.mxu0 0
        %1703 = vmatprep.subr.bf16.mxu0 0
        %1704 = vmatpush1.bf16.msra.mxu0 0
        %1705 = vmatprep.subr.bf16.mxu0 0
        %1706 = vmatpush1.bf16.msra.mxu0 0
        %1707 = vmatprep.subr.bf16.mxu0 0
        %1708 = vmatpush1.bf16.msra.mxu0 0
        %1709 = vmatprep.subr.bf16.mxu0 0
        %1710 = vmatpush1.bf16.msra.mxu0 0
        %1711 = vmatprep.mubr.bf16.mxu0 0
        %1712 = vmatmul.mubr.bf16.gmra.mrb[0].mxu0 %v1674
        %v1713 = vpop.f32.mrb[0].mxu0
        %v1714 = vadd.f32 0.0, %v1713
        %v1715 = vpop.f32.mrb[0].mxu0
        %v1716 = vpop.f32.mrb[0].mxu0
        %v1717 = vpop.f32.mrb[0].mxu0
        %1718 = vdwg.mxu0
        %v1719 = vpack.c.bf16 %v1714, %v1714
        %v1721 = vunpack.c.l.b16 %v1719
        %v1722 = vpack.c.b16 %v1721, %v1721
        %1723 = vrot.lane.b32.xlu0 %v1722, 24
        %v1724 = vpop.permute.xlu0 %1723
        %vm1726 = vcmask 257216
        %1727 = vst.msk [vmem:[#allocation4] sm:$0xf] %vm1726, %v1724
        %v1728 = vld [vmem:[#allocation4] sm:$0xf]
        %v1729 = vld [vmem:[%s8] sm:$0xf]
        %v1730 = vld [vmem:[%s8 + $0x4] sm:$0xf]
        %v1731 = vld [vmem:[%s8 + $0x8] sm:$0xf]
        %v1732 = vld [vmem:[%s8 + $0xc] sm:$0xf]
        %v1733 = vld [vmem:[%s9] sm:$0x1]
        %v1735 = vlaneseq
        %v1736 = vshrl.u32 %v1735, 7
        %v1737 = vsub.s32 0, %v1736
        %v1738 = vrot.slane %v1733, %v1737
        %v1744 = vunpack.c.l.b16 %v1729
        %v1745 = vunpack.c.l.b16 %v1730
        %v1746 = vunpack.c.l.b16 %v1731
        %v1747 = vunpack.c.l.b16 %v1732
        %v1748 = vpack.c.b16 %v1745, %v1744
        %v1749 = vpack.c.b16 %v1747, %v1746
        %v1753 = vsel %vm930, %v1728, 0
        %1755 = vmatprep.subr.bf16.mxu0 0
        %1756 = vmatpush1.bf16.msra.mxu0 %v1748
        %1757 = vmatprep.subr.bf16.mxu0 0
        %1758 = vmatpush1.bf16.msra.mxu0 %v1749
        %1759 = vmatprep.subr.bf16.mxu0 0
        %1760 = vmatpush1.bf16.msra.mxu0 0
        %1761 = vmatprep.subr.bf16.mxu0 0
        %1762 = vmatpush1.bf16.msra.mxu0 0
        %1763 = vmatprep.subr.bf16.mxu0 0
        %1764 = vmatpush1.bf16.msra.mxu0 0
        %1765 = vmatprep.subr.bf16.mxu0 0
        %1766 = vmatpush1.bf16.msra.mxu0 0
        %1767 = vmatprep.subr.bf16.mxu0 0
        %1768 = vmatpush1.bf16.msra.mxu0 0
        %1769 = vmatprep.subr.bf16.mxu0 0
        %1770 = vmatpush1.bf16.msra.mxu0 0
        %1771 = vmatprep.subr.bf16.mxu0 0
        %1772 = vmatpush1.bf16.msra.mxu0 0
        %1773 = vmatprep.subr.bf16.mxu0 0
        %1774 = vmatpush1.bf16.msra.mxu0 0
        %1775 = vmatprep.subr.bf16.mxu0 0
        %1776 = vmatpush1.bf16.msra.mxu0 0
        %1777 = vmatprep.subr.bf16.mxu0 0
        %1778 = vmatpush1.bf16.msra.mxu0 0
        %1779 = vmatprep.subr.bf16.mxu0 0
        %1780 = vmatpush1.bf16.msra.mxu0 0
        %1781 = vmatprep.subr.bf16.mxu0 0
        %1782 = vmatpush1.bf16.msra.mxu0 0
        %1783 = vmatprep.subr.bf16.mxu0 0
        %1784 = vmatpush1.bf16.msra.mxu0 0
        %1785 = vmatprep.subr.bf16.mxu0 0
        %1786 = vmatpush1.bf16.msra.mxu0 0
        %1787 = vmatprep.mubr.bf16.mxu0 0
        %1788 = vmatmul.mubr.bf16.gmra.mrb[0].mxu0 %v1753
        %v1789 = vpop.f32.mrb[0].mxu0
        %v1790 = vadd.f32 %v1738, %v1789
        %v1791 = vpop.f32.mrb[0].mxu0
        %v1792 = vpop.f32.mrb[0].mxu0
        %v1793 = vpop.f32.mrb[0].mxu0
        %1794 = vdwg.mxu0
        %1795 = vst.msk [vmem:[%s416] sm:$0xff] %vm930, %v1790
        %s1796 = sand.u32 %s264, 1
        %s1797 = scalar_lea.sflag [#allocation6], %s1796
        %s1798 = sand.u32 %s264, 1
        %s1799 = smul.addr %s1798, 8
        %s1800 = scalar_lea.vmem [#allocation13], %s1799
        // Predicated region
        $region81: #{tpu_custom_call.1} parent=59 // pred_check
          %p1801 = pneg %p274
        $region82: #{tpu_custom_call.1} parent=59 // pred_check_branch
          %1803 = sbr.rel (%p1801) target = $region84
        $region83: #{tpu_custom_call.1} parent=59 // pred_region
          %s1805 = ssub.s32 128, 128
          %1806 = vsyncadd %s1797, %s1805
          %s1807 = sadd.s32 %s32, %s31
          %s1808 = smul.addr %s1807, 128
          %s1809 = scalar_lea.hbm %s10, %s1808
          %s1811 = sshll.u32 %s1800, 4
          %s1812 = int_to_ptr.vmem [resolvable:$true] %s1811
          %1814 = dma.vmem_to_hbm [thread:$0]  %s1812, 128, %s1809, %s1797
        $region84: #{tpu_custom_call.1} parent=59 // pred_fallthru
          _
      $region60: #{tpu_custom_call.1} parent=5 // pred_fallthru
        _
      %p1815 = scmp.le.s32.totalorder 2, %s22
      // Predicated region
      $region85: #{tpu_custom_call.1} parent=5 // pred_check
        %p1816 = pneg %p1815
      $region86: #{tpu_custom_call.1} parent=5 // pred_check_branch
        %1818 = sbr.rel (%p1816) target = $region88
      $region87: #{tpu_custom_call.1} parent=5 // pred_region
        %s1819 = ssub.s32 %s22, 2
        // Predicated region
        $region89: #{tpu_custom_call.1} parent=87 // pred_check
          %p1820 = pneg %p280
        $region90: #{tpu_custom_call.1} parent=87 // pred_check_branch
          %1822 = sbr.rel (%p1820) target = $region92
        $region91: #{tpu_custom_call.1} parent=87 // pred_region
          %s1823 = sand.u32 %s265, 1
          %s1824 = scalar_lea.sflag [#allocation6], %s1823
          %s1825 = sand.u32 %s265, 1
          %s1826 = smul.addr %s1825, 8
          %s1827 = scalar_lea.vmem [#allocation13], %s1826
          %1828 = dma.done %s1824, 128
        $region92: #{tpu_custom_call.1} parent=87 // pred_fallthru
          _
      $region88: #{tpu_custom_call.1} parent=5 // pred_fallthru
        _
    $region6: #{tpu_custom_call.1} parent=1 // loop_footer
      %s26 = sadd.s32 1, %s22
    $region7: #{tpu_custom_call.1} parent=1 // loop_footer_branch
      %21 = sbr.rel target = $region3
    $region8: #{tpu_custom_call.1} parent=1 // loop_exit
      _
    %1829 = vsyncpa [#allocation6], 1
    %s1830 = scalar_lea.sflag [#allocation6], 1
    %1831 = vsyncpa %s1830, 1
    %1832 = vsyncpa [#allocation7], 1
    %s1833 = scalar_lea.sflag [#allocation7], 1
    %1834 = vsyncpa %s1833, 1
    %1835 = vsyncpa [#allocation9], 1
    %1836 = vsyncpa [#allocation12], 1

</llo_original>
